<compile_context>
chip_gen: v5e
topology: v5e:2x2
jax: 0.10.0
libtpu: 0.0.40
codegen_flags: <defaults>
</compile_context>

<pallas_src>
import functools

import jax
import jax.numpy as jnp
from jax.experimental import pallas as pl
from jax.experimental.pallas import tpu as pltpu


# ---------------------------------------------------------------------------
# helpers
# ---------------------------------------------------------------------------
def _round_up(x, m):
    return ((x + m - 1) // m) * m


def _layer_norm(x, w, b, eps=1e-5):
    mu = jnp.mean(x, axis=-1, keepdims=True)
    var = jnp.mean(jnp.square(x - mu), axis=-1, keepdims=True)
    return (x - mu) * jax.lax.rsqrt(var + eps) * w + b


# ---------------------------------------------------------------------------
# fused kernel: one grid step == (batch b, encoder layer l)
#   layer 0       : input 1x1x1 conv -> VMEM scratch
#   every layer   : self-attention + FFN (post-norm), activation stays in VMEM
#   last layer    : residual + output 1x1x1 conv, lane-dense (C_out, L) store
# ---------------------------------------------------------------------------
def _encoder_kernel(
    x_ref, mask_ref, w_in_ref, w_out_ref,
    wproj_ref, bqk_ref, battn_ref,
    ln1w_ref, ln1b_ref, w1_ref, b1_ref, w2_ref, b2_ref,
    ln2w_ref, ln2b_ref,
    o_ref,
    x_sc, xin_sc,
    *, nhead, head_dim, res_attn, approx_recip,
):
    f32 = jnp.float32
    bf16 = jnp.bfloat16
    H, hd = nhead, head_dim
    D = H * hd

    layer = pl.program_id(1)
    last = pl.num_programs(1) - 1

    # ---- layer 0: input 1x1x1 Minkowski conv == per-point linear (no bias) -----
    @pl.when(layer == 0)
    def _():
        xin = jnp.dot(x_ref[0], w_in_ref[...], preferred_element_type=f32)  # (L, D)
        x_sc[...] = xin
        xin_sc[...] = xin

    x = x_sc[...]                                       # (L, D) f32, resident activation
    L = x.shape[0]

    # key padding mask: large finite negative (no NaN even for fully padded rows)
    key_bias = jnp.where(mask_ref[0] > 0.5,
                         jnp.float32(0.0), jnp.float32(-1e30))          # (1, L)

    # ---- fused projection: [Wq*scale | Wk | Wv@Wo (per head)] in ONE matmul ----
    xb = x.astype(bf16)
    proj = jnp.dot(xb, wproj_ref[0], preferred_element_type=f32)        # (L, 2D + H*D)
    qk = proj[:, :2 * D] + bqk_ref[0]                                   # (L, 2D), scale folded

    # ---- per-head attention (static loop; one (L,L) tile live at a time) -------
    attn = jnp.zeros((L, D), f32)
    for h in range(H):
        qh = qk[:, h * hd:(h + 1) * hd].astype(bf16)                    # (L, hd)
        kh = qk[:, D + h * hd:D + (h + 1) * hd].astype(bf16)            # (L, hd)
        s = jax.lax.dot_general(qh, kh, (((1,), (1,)), ((), ())),
                                preferred_element_type=f32)             # (L, L)
        s = s + key_bias
        m = jnp.max(s, axis=-1, keepdims=True)
        p = jnp.exp(s - m)                                              # s dead after this
        den = jnp.sum(p, axis=-1, keepdims=True)
        vh = proj[:, 2 * D + h * D:2 * D + (h + 1) * D].astype(bf16)    # (L, D) = x @ (Wv_h @ Wo_h)
        oh = jnp.dot(p.astype(bf16), vh, preferred_element_type=f32)    # (L, D), K = L dense
        if approx_recip:
            inv = pl.reciprocal(den, approx=True)                       # EUP slot
        else:
            inv = 1.0 / den                                             # exact fallback
        attn = attn + oh * inv                                          # normalize AFTER PV
    attn = attn + battn_ref[0]                                          # folded bv@Wo + bo

    # ---- post-norm residual 1 ---------------------------------------------------
    y1 = _layer_norm(x + attn, ln1w_ref[0], ln1b_ref[0])

    # ---- feed-forward: linear1 -> SiLU -> linear2 --------------------------------
    h1 = jnp.dot(y1.astype(bf16), w1_ref[0], preferred_element_type=f32) + b1_ref[0]
    h1 = h1 * jax.nn.sigmoid(h1)                                        # SiLU
    ff = jnp.dot(h1.astype(bf16), w2_ref[0], preferred_element_type=f32) + b2_ref[0]

    # ---- post-norm residual 2 ----------------------------------------------------
    x_out = _layer_norm(y1 + ff, ln2w_ref[0], ln2b_ref[0])
    x_sc[...] = x_out                                                   # carry to next layer

    # ---- last layer: residual + output 1x1x1 conv, lane-dense (C_out, L) store --
    @pl.when(layer == last)
    def _():
        if res_attn:
            xf = x_out + xin_sc[...]
        else:
            xf = x_out
        # (D, C_out) x (L, D) contracted over D -> (C_out, L): lane dim = L (dense store)
        o_ref[0] = jax.lax.dot_general(
            w_out_ref[...], xf.astype(bf16),
            dimension_numbers=(((0,), (1,)), ((), ())),
            preferred_element_type=f32)


def sparse_transformer_pallas(x, mask, packed, *, nhead, head_dim, res_attn,
                              approx_recip=True):
    B, L, C_in = x.shape
    num_layers = packed["wproj"].shape[0]
    D = nhead * head_dim
    C_out = packed["w_out"].shape[1]

    per_layer = ["wproj", "bqk", "battn", "ln1w", "ln1b",
                 "w1", "b1", "w2", "b2", "ln2w", "ln2b"]

    def layer_spec(a):
        nd = a.ndim
        return pl.BlockSpec((1,) + a.shape[1:],
                            lambda b, l, nd=nd: (l,) + (0,) * (nd - 1))

    def const_spec(a):
        nd = a.ndim
        return pl.BlockSpec(a.shape, lambda b, l, nd=nd: (0,) * nd)

    kern = functools.partial(_encoder_kernel, nhead=nhead, head_dim=head_dim,
                             res_attn=res_attn, approx_recip=approx_recip)
    return pl.pallas_call(
        kern,
        out_shape=jax.ShapeDtypeStruct((B, C_out, L), jnp.float32),
        grid=(B, num_layers),
        in_specs=[pl.BlockSpec((1, L, C_in), lambda b, l: (b, 0, 0)),
                  pl.BlockSpec((1, 1, L), lambda b, l: (b, 0, 0)),
                  const_spec(packed["w_in"]), const_spec(packed["w_out"])]
                 + [layer_spec(packed[n]) for n in per_layer],
        out_specs=pl.BlockSpec((1, C_out, L), lambda b, l: (b, 0, 0)),
        scratch_shapes=[pltpu.VMEM((L, D), jnp.float32),    # resident activation
                        pltpu.VMEM((L, D), jnp.float32)],   # input-conv output (residual)
        compiler_params=pltpu.CompilerParams(
            dimension_semantics=("parallel", "arbitrary"),   # batches across TCs on v7x
            vmem_limit_bytes=32 * 1024 * 1024),
    )(x, mask, packed["w_in"], packed["w_out"], *[packed[n] for n in per_layer])


# ---------------------------------------------------------------------------
# host glue: scatter sparse points into padded dense batches, run kernel, gather.
# Assumes batch-sorted coordinates (the PyTorch module asserts this too).
# ---------------------------------------------------------------------------
@functools.partial(jax.jit,
                   static_argnames=("nhead", "head_dim", "num_batches", "l_pad", "res_attn"))
def sparse_transformer_forward(coords, feats, packed, *, nhead, head_dim,
                               num_batches, l_pad, res_attn=True):
    n = coords.shape[0]
    batch_idx = coords[:, 0]
    counts = jnp.bincount(batch_idx, length=num_batches)
    offsets = jnp.cumsum(counts) - counts
    pos = (jnp.arange(n, dtype=jnp.int32) - offsets[batch_idx]).astype(jnp.int32)

    c_in = feats.shape[1]
    # bf16 inputs: halves the per-grid-step input DMA (matmul path casts to bf16 anyway)
    x = jnp.zeros((num_batches, l_pad, c_in), jnp.bfloat16
                  ).at[batch_idx, pos].set(feats.astype(jnp.bfloat16))
    mask = jnp.zeros((num_batches, 1, l_pad), jnp.bfloat16
                     ).at[batch_idx, 0, pos].set(1.0)

    y = sparse_transformer_pallas(x, mask, packed,
                                  nhead=nhead, head_dim=head_dim, res_attn=res_attn)
    # y is (B, C_out, L) (lane-dense store); gather valid points back -> (N, C_out)
    return y[batch_idx, :, pos]


# ---------------------------------------------------------------------------
# parameters: PyTorch-layout init + packing into the kernel layout
# ---------------------------------------------------------------------------
def init_params(key, input_dim, head_dim, num_layers):
    nhead = input_dim // head_dim
    inner = nhead * head_dim
    dff = inner                                      # dim_feedforward = inner_dim
    keys = jax.random.split(key, 2 + num_layers)

    def w(k, shape, s=0.05):
        return jax.random.normal(k, shape, jnp.float32) * s

    params = {
        "w_in": w(keys[0], (input_dim, inner), 0.1),   # Minkowski 1x1x1 conv, bias=False
        "w_out": w(keys[1], (inner, input_dim), 0.1),
        "layers": [],
    }
    for li in range(num_layers):
        ks = jax.random.split(keys[2 + li], 8)
        params["layers"].append({
            "in_proj_weight": w(ks[0], (3 * inner, inner)),   # PyTorch MHA layout [q;k;v]
            "in_proj_bias": w(ks[1], (3 * inner,)),
            "out_proj_weight": w(ks[2], (inner, inner)),
            "out_proj_bias": w(ks[3], (inner,)),
            "linear1_weight": w(ks[4], (dff, inner)),
            "linear1_bias": w(ks[5], (dff,)),
            "linear2_weight": w(ks[6], (inner, dff)),
            "linear2_bias": w(ks[7], (inner,)),
            "ln1_weight": jnp.ones((inner,), jnp.float32),
            "ln1_bias": jnp.zeros((inner,), jnp.float32),
            "ln2_weight": jnp.ones((inner,), jnp.float32),
            "ln2_bias": jnp.zeros((inner,), jnp.float32),
        })
    return params


def pack_params(raw, nhead, head_dim):
    """PyTorch-layout weights -> fused kernel layout.

    Per layer:
      wproj = [Wq*scale | Wk | Wv_h @ Wo_h per head]   (D, 2D + H*D)   bf16
      bqk   = [bq*scale | bk]                          (1, 2D)         f32
      battn = bv @ Wo + bo                             (1, D)          f32
    """
    H, hd = nhead, head_dim
    D = H * hd
    scale = 1.0 / (hd ** 0.5)

    def per_layer(lp):
        wq = lp["in_proj_weight"][:D].T * scale            # (D, D), scale folded
        wk = lp["in_proj_weight"][D:2 * D].T               # (D, D)
        wv = lp["in_proj_weight"][2 * D:].T                # (D, D)
        wo = lp["out_proj_weight"].T                       # (D, D), y = a @ wo
        # fold Wo into V per head: wvo[:, h*D:(h+1)*D] = Wv[:, h*hd:(h+1)*hd] @ wo[h*hd:(h+1)*hd, :]
        wvo = jnp.einsum("dhk,hke->dhe",
                         wv.reshape(D, H, hd), wo.reshape(H, hd, D)).reshape(D, H * D)
        wproj = jnp.concatenate([wq, wk, wvo], axis=1)     # (D, 2D + H*D)

        bq = lp["in_proj_bias"][:D] * scale
        bk = lp["in_proj_bias"][D:2 * D]
        bv = lp["in_proj_bias"][2 * D:]
        bqk = jnp.concatenate([bq, bk]).reshape(1, 2 * D)
        battn = (bv @ wo + lp["out_proj_bias"]).reshape(1, D)

        dff = lp["linear1_weight"].shape[0]
        return dict(
            wproj=wproj, bqk=bqk, battn=battn,
            w1=lp["linear1_weight"].T, b1=lp["linear1_bias"].reshape(1, dff),
            w2=lp["linear2_weight"].T, b2=lp["linear2_bias"].reshape(1, D),
            ln1w=lp["ln1_weight"].reshape(1, D), ln1b=lp["ln1_bias"].reshape(1, D),
            ln2w=lp["ln2_weight"].reshape(1, D), ln2b=lp["ln2_bias"].reshape(1, D),
        )

    layers = [per_layer(lp) for lp in raw["layers"]]
    stacked = {k: jnp.stack([l[k] for l in layers], axis=0) for k in layers[0]}
    # MXU operands in bf16; biases / layernorm params stay f32
    for k in ("wproj", "w1", "w2"):
        stacked[k] = stacked[k].astype(jnp.bfloat16)
    return dict(
        w_in=raw["w_in"].astype(jnp.bfloat16),
        w_out=raw["w_out"].astype(jnp.bfloat16),
        **stacked,
    )


# ---------------------------------------------------------------------------
# demo
# ---------------------------------------------------------------------------
if __name__ == "__main__":
    input_dim = 32
    attention_head_dim = 8
    num_layers = 2
    nhead = input_dim // attention_head_dim

    key = jax.random.PRNGKey(0)
    kc, kf, kp = jax.random.split(key, 3)

    # small synthetic sparse tensor: 2 batches with 10 and 6 points (batch-sorted coords)
    counts = [10, 6]
    n_points = sum(counts)
    batch_col = jnp.concatenate(
        [jnp.full((c,), i, jnp.int32) for i, c in enumerate(counts)])
    spatial = jax.random.randint(kc, (n_points, 3), 0, 16, dtype=jnp.int32)
    coords = jnp.concatenate([batch_col[:, None], spatial], axis=1)      # (N, 4)
    feats = jax.random.normal(kf, (n_points, input_dim), jnp.float32)    # (N, C)

    raw_params = init_params(kp, input_dim, attention_head_dim, num_layers)
    packed = pack_params(raw_params, nhead, attention_head_dim)

    num_batches = len(counts)
    l_pad = max(128, _round_up(max(counts), 128))   # lane-dense sequence padding

    out = sparse_transformer_forward(
        coords, feats, packed,
        nhead=nhead, head_dim=attention_head_dim,
        num_batches=num_batches, l_pad=l_pad, res_attn=True)
    out = jax.block_until_ready(out)

    assert out.shape == (n_points, input_dim)
    assert bool(jnp.all(jnp.isfinite(out)))
    print("KERNEL_OK")
</pallas_src>

<mosaic_0001>
module attributes {stable_mosaic.version = 11 : i64} {
  func.func @_encoder_kernel(%arg0: i32, %arg1: i32, %arg2: memref<1x128x32xbf16, #tpu.memory_space<vmem>>, %arg3: memref<1x1x128xbf16, #tpu.memory_space<vmem>>, %arg4: memref<32x32xbf16, #tpu.memory_space<vmem>>, %arg5: memref<32x32xbf16, #tpu.memory_space<vmem>>, %arg6: memref<1x32x192xbf16, #tpu.memory_space<vmem>>, %arg7: memref<1x1x64xf32, #tpu.memory_space<vmem>>, %arg8: memref<1x1x32xf32, #tpu.memory_space<vmem>>, %arg9: memref<1x1x32xf32, #tpu.memory_space<vmem>>, %arg10: memref<1x1x32xf32, #tpu.memory_space<vmem>>, %arg11: memref<1x32x32xbf16, #tpu.memory_space<vmem>>, %arg12: memref<1x1x32xf32, #tpu.memory_space<vmem>>, %arg13: memref<1x32x32xbf16, #tpu.memory_space<vmem>>, %arg14: memref<1x1x32xf32, #tpu.memory_space<vmem>>, %arg15: memref<1x1x32xf32, #tpu.memory_space<vmem>>, %arg16: memref<1x1x32xf32, #tpu.memory_space<vmem>>, %arg17: memref<1x32x128xf32, #tpu.memory_space<vmem>>, %arg18: memref<128x32xf32, #tpu.memory_space<vmem>>, %arg19: memref<128x32xf32, #tpu.memory_space<vmem>>) attributes {dimension_semantics = [#tpu.dimension_semantics<parallel>, #tpu.dimension_semantics<arbitrary>], iteration_bounds = array<i64: 2, 2>, scalar_prefetch = 0 : i64, scratch_operands = 2 : i64, tpu.core_type = #tpu.core_type<tc>, window_params = [{transform_indices = @transform_0, window_bounds = array<i64: 1, 128, 32>}, {transform_indices = @transform_1, window_bounds = array<i64: 1, 1, 128>}, {pipeline_mode = #tpu.pipeline_mode<synchronous>, transform_indices = @transform_2, window_bounds = array<i64: 32, 32>}, {pipeline_mode = #tpu.pipeline_mode<synchronous>, transform_indices = @transform_3, window_bounds = array<i64: 32, 32>}, {transform_indices = @transform_4, window_bounds = array<i64: 1, 32, 192>}, {transform_indices = @transform_5, window_bounds = array<i64: 1, 1, 64>}, {transform_indices = @transform_6, window_bounds = array<i64: 1, 1, 32>}, {transform_indices = @transform_7, window_bounds = array<i64: 1, 1, 32>}, {transform_indices = @transform_8, window_bounds = array<i64: 1, 1, 32>}, {transform_indices = @transform_9, window_bounds = array<i64: 1, 32, 32>}, {transform_indices = @transform_10, window_bounds = array<i64: 1, 1, 32>}, {transform_indices = @transform_11, window_bounds = array<i64: 1, 32, 32>}, {transform_indices = @transform_12, window_bounds = array<i64: 1, 1, 32>}, {transform_indices = @transform_13, window_bounds = array<i64: 1, 1, 32>}, {transform_indices = @transform_14, window_bounds = array<i64: 1, 1, 32>}, {transform_indices = @transform_15, window_bounds = array<i64: 1, 32, 128>}]} {
    %c0_i32 = arith.constant 0 : i32
    %0 = arith.cmpi eq, %arg1, %c0_i32 : i32
    %1 = arith.extui %0 : i1 to i32
    %c0_i32_0 = arith.constant 0 : i32
    %2 = arith.cmpi ne, %1, %c0_i32_0 : i32
    scf.if %2 {
      %c0_74 = arith.constant 0 : index
      %c0_75 = arith.constant 0 : index
      %c0_76 = arith.constant 0 : index
      %193 = vector.load %arg2[%c0_74, %c0_75, %c0_76] : memref<1x128x32xbf16, #tpu.memory_space<vmem>>, vector<1x128x32xbf16>
      %194 = vector.shape_cast %193 : vector<1x128x32xbf16> to vector<128x32xbf16>
      %c0_77 = arith.constant 0 : index
      %c0_78 = arith.constant 0 : index
      %195 = vector.load %arg4[%c0_77, %c0_78] : memref<32x32xbf16, #tpu.memory_space<vmem>>, vector<32x32xbf16>
      %cst_79 = arith.constant dense<0.000000e+00> : vector<128x32xf32>
      %196 = tpu.matmul %194, %195, %cst_79 {dimension_numbers = #tpu.dot_dimension_numbers<[1], [0], [0], [1], [0, 0, 1, 1], [], []>} : vector<128x32xbf16>, vector<32x32xbf16>, vector<128x32xf32> -> vector<128x32xf32>
      %c0_80 = arith.constant 0 : index
      %c0_81 = arith.constant 0 : index
      %197 = vector.load %arg18[%c0_80, %c0_81] : memref<128x32xf32, #tpu.memory_space<vmem>>, vector<128x32xf32>
      tpu.vector_store %arg18[%c0_80, %c0_81], %196 {strides = array<i32>} : memref<128x32xf32, #tpu.memory_space<vmem>>, vector<128x32xf32>,
      %c0_82 = arith.constant 0 : index
      %c0_83 = arith.constant 0 : index
      %198 = vector.load %arg19[%c0_82, %c0_83] : memref<128x32xf32, #tpu.memory_space<vmem>>, vector<128x32xf32>
      tpu.vector_store %arg19[%c0_82, %c0_83], %196 {strides = array<i32>} : memref<128x32xf32, #tpu.memory_space<vmem>>, vector<128x32xf32>,
    } else {
    }
    %c0 = arith.constant 0 : index
    %c0_1 = arith.constant 0 : index
    %3 = vector.load %arg18[%c0, %c0_1] : memref<128x32xf32, #tpu.memory_space<vmem>>, vector<128x32xf32>
    %c0_2 = arith.constant 0 : index
    %c0_3 = arith.constant 0 : index
    %c0_4 = arith.constant 0 : index
    %4 = vector.load %arg3[%c0_2, %c0_3, %c0_4] : memref<1x1x128xbf16, #tpu.memory_space<vmem>>, vector<1x1x128xbf16>
    %5 = vector.shape_cast %4 : vector<1x1x128xbf16> to vector<1x128xbf16>
    %cst = arith.constant 5.000000e-01 : bf16
    %6 = vector.broadcast %cst : bf16 to vector<1x128xbf16>
    %7 = arith.cmpf ogt, %5, %6 : vector<1x128xbf16>
    %cst_5 = arith.constant 0.000000e+00 : f32
    %cst_6 = arith.constant -1.000000e+30 : f32
    %8 = vector.broadcast %cst_5 : f32 to vector<1x128xf32>
    %9 = vector.broadcast %cst_6 : f32 to vector<1x128xf32>
    %10 = arith.select %7, %8, %9 : vector<1x128xi1>, vector<1x128xf32>
    %11 = arith.truncf %3 : vector<128x32xf32> to vector<128x32xbf16>
    %c0_7 = arith.constant 0 : index
    %c0_8 = arith.constant 0 : index
    %c0_9 = arith.constant 0 : index
    %12 = vector.load %arg6[%c0_7, %c0_8, %c0_9] : memref<1x32x192xbf16, #tpu.memory_space<vmem>>, vector<1x32x192xbf16>
    %13 = vector.shape_cast %12 : vector<1x32x192xbf16> to vector<32x192xbf16>
    %cst_10 = arith.constant dense<0.000000e+00> : vector<128x192xf32>
    %14 = tpu.matmul %11, %13, %cst_10 {dimension_numbers = #tpu.dot_dimension_numbers<[1], [0], [0], [1], [0, 0, 1, 1], [], []>} : vector<128x32xbf16>, vector<32x192xbf16>, vector<128x192xf32> -> vector<128x192xf32>
    %15 = vector.extract_strided_slice %14 {offsets = [0, 0], sizes = [128, 64], strides = [1, 1]} : vector<128x192xf32> to vector<128x64xf32>
    %c0_11 = arith.constant 0 : index
    %c0_12 = arith.constant 0 : index
    %c0_13 = arith.constant 0 : index
    %16 = vector.load %arg7[%c0_11, %c0_12, %c0_13] : memref<1x1x64xf32, #tpu.memory_space<vmem>>, vector<1x1x64xf32>
    %17 = vector.shape_cast %16 : vector<1x1x64xf32> to vector<1x64xf32>
    %18 = vector.broadcast %17 : vector<1x64xf32> to vector<128x64xf32>
    %19 = arith.addf %15, %18 : vector<128x64xf32>
    %cst_14 = arith.constant 0.000000e+00 : f32
    %20 = vector.broadcast %cst_14 : f32 to vector<128x32xf32>
    %21 = vector.extract_strided_slice %19 {offsets = [0, 0], sizes = [128, 8], strides = [1, 1]} : vector<128x64xf32> to vector<128x8xf32>
    %22 = arith.truncf %21 : vector<128x8xf32> to vector<128x8xbf16>
    %23 = vector.extract_strided_slice %19 {offsets = [0, 32], sizes = [128, 8], strides = [1, 1]} : vector<128x64xf32> to vector<128x8xf32>
    %24 = arith.truncf %23 : vector<128x8xf32> to vector<128x8xbf16>
    %cst_15 = arith.constant dense<0.000000e+00> : vector<128x128xf32>
    %25 = tpu.matmul %22, %24, %cst_15 {dimension_numbers = #tpu.dot_dimension_numbers<[1], [1], [0], [0], [0, 0, 1, 0], [], []>} : vector<128x8xbf16>, vector<128x8xbf16>, vector<128x128xf32> -> vector<128x128xf32>
    %26 = vector.broadcast %10 : vector<1x128xf32> to vector<128x128xf32>
    %27 = arith.addf %25, %26 : vector<128x128xf32>
    %cst_16 = arith.constant dense<0xFF800000> : vector<128xf32>
    %28 = vector.multi_reduction <maximumf>, %27, %cst_16 [1] : vector<128x128xf32> to vector<128xf32>
    %29 = vector.shape_cast %28 : vector<128xf32> to vector<128x1xf32>
    %30 = vector.broadcast %29 : vector<128x1xf32> to vector<128x128xf32>
    %31 = arith.subf %27, %30 : vector<128x128xf32>
    %32 = math.exp %31 : vector<128x128xf32>
    %cst_17 = arith.constant dense<0.000000e+00> : vector<128xf32>
    %33 = vector.multi_reduction <add>, %32, %cst_17 [1] : vector<128x128xf32> to vector<128xf32>
    %34 = vector.shape_cast %33 : vector<128xf32> to vector<128x1xf32>
    %35 = vector.extract_strided_slice %14 {offsets = [0, 64], sizes = [128, 32], strides = [1, 1]} : vector<128x192xf32> to vector<128x32xf32>
    %36 = arith.truncf %35 : vector<128x32xf32> to vector<128x32xbf16>
    %37 = arith.truncf %32 : vector<128x128xf32> to vector<128x128xbf16>
    %cst_18 = arith.constant dense<0.000000e+00> : vector<128x32xf32>
    %38 = tpu.matmul %37, %36, %cst_18 {dimension_numbers = #tpu.dot_dimension_numbers<[1], [0], [0], [1], [0, 0, 1, 1], [], []>} : vector<128x128xbf16>, vector<128x32xbf16>, vector<128x32xf32> -> vector<128x32xf32>
    %39 = tpu.reciprocal %34 {approx = true} : vector<128x1xf32> -> vector<128x1xf32>
    %40 = vector.broadcast %39 : vector<128x1xf32> to vector<128x32xf32>
    %41 = arith.mulf %38, %40 : vector<128x32xf32>
    %42 = arith.addf %20, %41 : vector<128x32xf32>
    %43 = vector.extract_strided_slice %19 {offsets = [0, 8], sizes = [128, 8], strides = [1, 1]} : vector<128x64xf32> to vector<128x8xf32>
    %44 = arith.truncf %43 : vector<128x8xf32> to vector<128x8xbf16>
    %45 = vector.extract_strided_slice %19 {offsets = [0, 40], sizes = [128, 8], strides = [1, 1]} : vector<128x64xf32> to vector<128x8xf32>
    %46 = arith.truncf %45 : vector<128x8xf32> to vector<128x8xbf16>
    %cst_19 = arith.constant dense<0.000000e+00> : vector<128x128xf32>
    %47 = tpu.matmul %44, %46, %cst_19 {dimension_numbers = #tpu.dot_dimension_numbers<[1], [1], [0], [0], [0, 0, 1, 0], [], []>} : vector<128x8xbf16>, vector<128x8xbf16>, vector<128x128xf32> -> vector<128x128xf32>
    %48 = vector.broadcast %10 : vector<1x128xf32> to vector<128x128xf32>
    %49 = arith.addf %47, %48 : vector<128x128xf32>
    %cst_20 = arith.constant dense<0xFF800000> : vector<128xf32>
    %50 = vector.multi_reduction <maximumf>, %49, %cst_20 [1] : vector<128x128xf32> to vector<128xf32>
    %51 = vector.shape_cast %50 : vector<128xf32> to vector<128x1xf32>
    %52 = vector.broadcast %51 : vector<128x1xf32> to vector<128x128xf32>
    %53 = arith.subf %49, %52 : vector<128x128xf32>
    %54 = math.exp %53 : vector<128x128xf32>
    %cst_21 = arith.constant dense<0.000000e+00> : vector<128xf32>
    %55 = vector.multi_reduction <add>, %54, %cst_21 [1] : vector<128x128xf32> to vector<128xf32>
    %56 = vector.shape_cast %55 : vector<128xf32> to vector<128x1xf32>
    %57 = vector.extract_strided_slice %14 {offsets = [0, 96], sizes = [128, 32], strides = [1, 1]} : vector<128x192xf32> to vector<128x32xf32>
    %58 = arith.truncf %57 : vector<128x32xf32> to vector<128x32xbf16>
    %59 = arith.truncf %54 : vector<128x128xf32> to vector<128x128xbf16>
    %cst_22 = arith.constant dense<0.000000e+00> : vector<128x32xf32>
    %60 = tpu.matmul %59, %58, %cst_22 {dimension_numbers = #tpu.dot_dimension_numbers<[1], [0], [0], [1], [0, 0, 1, 1], [], []>} : vector<128x128xbf16>, vector<128x32xbf16>, vector<128x32xf32> -> vector<128x32xf32>
    %61 = tpu.reciprocal %56 {approx = true} : vector<128x1xf32> -> vector<128x1xf32>
    %62 = vector.broadcast %61 : vector<128x1xf32> to vector<128x32xf32>
    %63 = arith.mulf %60, %62 : vector<128x32xf32>
    %64 = arith.addf %42, %63 : vector<128x32xf32>
    %65 = vector.extract_strided_slice %19 {offsets = [0, 16], sizes = [128, 8], strides = [1, 1]} : vector<128x64xf32> to vector<128x8xf32>
    %66 = arith.truncf %65 : vector<128x8xf32> to vector<128x8xbf16>
    %67 = vector.extract_strided_slice %19 {offsets = [0, 48], sizes = [128, 8], strides = [1, 1]} : vector<128x64xf32> to vector<128x8xf32>
    %68 = arith.truncf %67 : vector<128x8xf32> to vector<128x8xbf16>
    %cst_23 = arith.constant dense<0.000000e+00> : vector<128x128xf32>
    %69 = tpu.matmul %66, %68, %cst_23 {dimension_numbers = #tpu.dot_dimension_numbers<[1], [1], [0], [0], [0, 0, 1, 0], [], []>} : vector<128x8xbf16>, vector<128x8xbf16>, vector<128x128xf32> -> vector<128x128xf32>
    %70 = vector.broadcast %10 : vector<1x128xf32> to vector<128x128xf32>
    %71 = arith.addf %69, %70 : vector<128x128xf32>
    %cst_24 = arith.constant dense<0xFF800000> : vector<128xf32>
    %72 = vector.multi_reduction <maximumf>, %71, %cst_24 [1] : vector<128x128xf32> to vector<128xf32>
    %73 = vector.shape_cast %72 : vector<128xf32> to vector<128x1xf32>
    %74 = vector.broadcast %73 : vector<128x1xf32> to vector<128x128xf32>
    %75 = arith.subf %71, %74 : vector<128x128xf32>
    %76 = math.exp %75 : vector<128x128xf32>
    %cst_25 = arith.constant dense<0.000000e+00> : vector<128xf32>
    %77 = vector.multi_reduction <add>, %76, %cst_25 [1] : vector<128x128xf32> to vector<128xf32>
    %78 = vector.shape_cast %77 : vector<128xf32> to vector<128x1xf32>
    %79 = vector.extract_strided_slice %14 {offsets = [0, 128], sizes = [128, 32], strides = [1, 1]} : vector<128x192xf32> to vector<128x32xf32>
    %80 = arith.truncf %79 : vector<128x32xf32> to vector<128x32xbf16>
    %81 = arith.truncf %76 : vector<128x128xf32> to vector<128x128xbf16>
    %cst_26 = arith.constant dense<0.000000e+00> : vector<128x32xf32>
    %82 = tpu.matmul %81, %80, %cst_26 {dimension_numbers = #tpu.dot_dimension_numbers<[1], [0], [0], [1], [0, 0, 1, 1], [], []>} : vector<128x128xbf16>, vector<128x32xbf16>, vector<128x32xf32> -> vector<128x32xf32>
    %83 = tpu.reciprocal %78 {approx = true} : vector<128x1xf32> -> vector<128x1xf32>
    %84 = vector.broadcast %83 : vector<128x1xf32> to vector<128x32xf32>
    %85 = arith.mulf %82, %84 : vector<128x32xf32>
    %86 = arith.addf %64, %85 : vector<128x32xf32>
    %87 = vector.extract_strided_slice %19 {offsets = [0, 24], sizes = [128, 8], strides = [1, 1]} : vector<128x64xf32> to vector<128x8xf32>
    %88 = arith.truncf %87 : vector<128x8xf32> to vector<128x8xbf16>
    %89 = vector.extract_strided_slice %19 {offsets = [0, 56], sizes = [128, 8], strides = [1, 1]} : vector<128x64xf32> to vector<128x8xf32>
    %90 = arith.truncf %89 : vector<128x8xf32> to vector<128x8xbf16>
    %cst_27 = arith.constant dense<0.000000e+00> : vector<128x128xf32>
    %91 = tpu.matmul %88, %90, %cst_27 {dimension_numbers = #tpu.dot_dimension_numbers<[1], [1], [0], [0], [0, 0, 1, 0], [], []>} : vector<128x8xbf16>, vector<128x8xbf16>, vector<128x128xf32> -> vector<128x128xf32>
    %92 = vector.broadcast %10 : vector<1x128xf32> to vector<128x128xf32>
    %93 = arith.addf %91, %92 : vector<128x128xf32>
    %cst_28 = arith.constant dense<0xFF800000> : vector<128xf32>
    %94 = vector.multi_reduction <maximumf>, %93, %cst_28 [1] : vector<128x128xf32> to vector<128xf32>
    %95 = vector.shape_cast %94 : vector<128xf32> to vector<128x1xf32>
    %96 = vector.broadcast %95 : vector<128x1xf32> to vector<128x128xf32>
    %97 = arith.subf %93, %96 : vector<128x128xf32>
    %98 = math.exp %97 : vector<128x128xf32>
    %cst_29 = arith.constant dense<0.000000e+00> : vector<128xf32>
    %99 = vector.multi_reduction <add>, %98, %cst_29 [1] : vector<128x128xf32> to vector<128xf32>
    %100 = vector.shape_cast %99 : vector<128xf32> to vector<128x1xf32>
    %101 = vector.extract_strided_slice %14 {offsets = [0, 160], sizes = [128, 32], strides = [1, 1]} : vector<128x192xf32> to vector<128x32xf32>
    %102 = arith.truncf %101 : vector<128x32xf32> to vector<128x32xbf16>
    %103 = arith.truncf %98 : vector<128x128xf32> to vector<128x128xbf16>
    %cst_30 = arith.constant dense<0.000000e+00> : vector<128x32xf32>
    %104 = tpu.matmul %103, %102, %cst_30 {dimension_numbers = #tpu.dot_dimension_numbers<[1], [0], [0], [1], [0, 0, 1, 1], [], []>} : vector<128x128xbf16>, vector<128x32xbf16>, vector<128x32xf32> -> vector<128x32xf32>
    %105 = tpu.reciprocal %100 {approx = true} : vector<128x1xf32> -> vector<128x1xf32>
    %106 = vector.broadcast %105 : vector<128x1xf32> to vector<128x32xf32>
    %107 = arith.mulf %104, %106 : vector<128x32xf32>
    %108 = arith.addf %86, %107 : vector<128x32xf32>
    %c0_31 = arith.constant 0 : index
    %c0_32 = arith.constant 0 : index
    %c0_33 = arith.constant 0 : index
    %109 = vector.load %arg8[%c0_31, %c0_32, %c0_33] : memref<1x1x32xf32, #tpu.memory_space<vmem>>, vector<1x1x32xf32>
    %110 = vector.shape_cast %109 : vector<1x1x32xf32> to vector<1x32xf32>
    %111 = vector.broadcast %110 : vector<1x32xf32> to vector<128x32xf32>
    %112 = arith.addf %108, %111 : vector<128x32xf32>
    %113 = arith.addf %3, %112 : vector<128x32xf32>
    %c0_34 = arith.constant 0 : index
    %c0_35 = arith.constant 0 : index
    %c0_36 = arith.constant 0 : index
    %114 = vector.load %arg9[%c0_34, %c0_35, %c0_36] : memref<1x1x32xf32, #tpu.memory_space<vmem>>, vector<1x1x32xf32>
    %115 = vector.shape_cast %114 : vector<1x1x32xf32> to vector<1x32xf32>
    %c0_37 = arith.constant 0 : index
    %c0_38 = arith.constant 0 : index
    %c0_39 = arith.constant 0 : index
    %116 = vector.load %arg10[%c0_37, %c0_38, %c0_39] : memref<1x1x32xf32, #tpu.memory_space<vmem>>, vector<1x1x32xf32>
    %117 = vector.shape_cast %116 : vector<1x1x32xf32> to vector<1x32xf32>
    %cst_40 = arith.constant dense<0.000000e+00> : vector<128xf32>
    %118 = vector.multi_reduction <add>, %113, %cst_40 [1] : vector<128x32xf32> to vector<128xf32>
    %119 = vector.shape_cast %118 : vector<128xf32> to vector<128x1xf32>
    %cst_41 = arith.constant 3.200000e+01 : f32
    %120 = vector.broadcast %cst_41 : f32 to vector<128x1xf32>
    %121 = arith.divf %119, %120 : vector<128x1xf32>
    %122 = vector.broadcast %121 : vector<128x1xf32> to vector<128x32xf32>
    %123 = arith.subf %113, %122 : vector<128x32xf32>
    %124 = arith.mulf %123, %123 : vector<128x32xf32>
    %cst_42 = arith.constant dense<0.000000e+00> : vector<128xf32>
    %125 = vector.multi_reduction <add>, %124, %cst_42 [1] : vector<128x32xf32> to vector<128xf32>
    %126 = vector.shape_cast %125 : vector<128xf32> to vector<128x1xf32>
    %cst_43 = arith.constant 3.200000e+01 : f32
    %127 = vector.broadcast %cst_43 : f32 to vector<128x1xf32>
    %128 = arith.divf %126, %127 : vector<128x1xf32>
    %129 = vector.broadcast %121 : vector<128x1xf32> to vector<128x32xf32>
    %130 = arith.subf %113, %129 : vector<128x32xf32>
    %cst_44 = arith.constant 9.99999974E-6 : f32
    %131 = vector.broadcast %cst_44 : f32 to vector<128x1xf32>
    %132 = arith.addf %128, %131 : vector<128x1xf32>
    %133 = math.rsqrt %132 : vector<128x1xf32>
    %134 = vector.broadcast %133 : vector<128x1xf32> to vector<128x32xf32>
    %135 = arith.mulf %130, %134 : vector<128x32xf32>
    %136 = vector.broadcast %115 : vector<1x32xf32> to vector<128x32xf32>
    %137 = arith.mulf %135, %136 : vector<128x32xf32>
    %138 = vector.broadcast %117 : vector<1x32xf32> to vector<128x32xf32>
    %139 = arith.addf %137, %138 : vector<128x32xf32>
    %140 = arith.truncf %139 : vector<128x32xf32> to vector<128x32xbf16>
    %c0_45 = arith.constant 0 : index
    %c0_46 = arith.constant 0 : index
    %c0_47 = arith.constant 0 : index
    %141 = vector.load %arg11[%c0_45, %c0_46, %c0_47] : memref<1x32x32xbf16, #tpu.memory_space<vmem>>, vector<1x32x32xbf16>
    %142 = vector.shape_cast %141 : vector<1x32x32xbf16> to vector<32x32xbf16>
    %cst_48 = arith.constant dense<0.000000e+00> : vector<128x32xf32>
    %143 = tpu.matmul %140, %142, %cst_48 {dimension_numbers = #tpu.dot_dimension_numbers<[1], [0], [0], [1], [0, 0, 1, 1], [], []>} : vector<128x32xbf16>, vector<32x32xbf16>, vector<128x32xf32> -> vector<128x32xf32>
    %c0_49 = arith.constant 0 : index
    %c0_50 = arith.constant 0 : index
    %c0_51 = arith.constant 0 : index
    %144 = vector.load %arg12[%c0_49, %c0_50, %c0_51] : memref<1x1x32xf32, #tpu.memory_space<vmem>>, vector<1x1x32xf32>
    %145 = vector.shape_cast %144 : vector<1x1x32xf32> to vector<1x32xf32>
    %146 = vector.broadcast %145 : vector<1x32xf32> to vector<128x32xf32>
    %147 = arith.addf %143, %146 : vector<128x32xf32>
    %148 = arith.negf %147 : vector<128x32xf32>
    %149 = math.exp %148 : vector<128x32xf32>
    %cst_52 = arith.constant 1.000000e+00 : f32
    %150 = vector.broadcast %cst_52 : f32 to vector<128x32xf32>
    %151 = arith.addf %150, %149 : vector<128x32xf32>
    %152 = arith.divf %150, %151 : vector<128x32xf32>
    %153 = arith.mulf %147, %152 : vector<128x32xf32>
    %154 = arith.truncf %153 : vector<128x32xf32> to vector<128x32xbf16>
    %c0_53 = arith.constant 0 : index
    %c0_54 = arith.constant 0 : index
    %c0_55 = arith.constant 0 : index
    %155 = vector.load %arg13[%c0_53, %c0_54, %c0_55] : memref<1x32x32xbf16, #tpu.memory_space<vmem>>, vector<1x32x32xbf16>
    %156 = vector.shape_cast %155 : vector<1x32x32xbf16> to vector<32x32xbf16>
    %cst_56 = arith.constant dense<0.000000e+00> : vector<128x32xf32>
    %157 = tpu.matmul %154, %156, %cst_56 {dimension_numbers = #tpu.dot_dimension_numbers<[1], [0], [0], [1], [0, 0, 1, 1], [], []>} : vector<128x32xbf16>, vector<32x32xbf16>, vector<128x32xf32> -> vector<128x32xf32>
    %c0_57 = arith.constant 0 : index
    %c0_58 = arith.constant 0 : index
    %c0_59 = arith.constant 0 : index
    %158 = vector.load %arg14[%c0_57, %c0_58, %c0_59] : memref<1x1x32xf32, #tpu.memory_space<vmem>>, vector<1x1x32xf32>
    %159 = vector.shape_cast %158 : vector<1x1x32xf32> to vector<1x32xf32>
    %160 = vector.broadcast %159 : vector<1x32xf32> to vector<128x32xf32>
    %161 = arith.addf %157, %160 : vector<128x32xf32>
    %162 = arith.addf %139, %161 : vector<128x32xf32>
    %c0_60 = arith.constant 0 : index
    %c0_61 = arith.constant 0 : index
    %c0_62 = arith.constant 0 : index
    %163 = vector.load %arg15[%c0_60, %c0_61, %c0_62] : memref<1x1x32xf32, #tpu.memory_space<vmem>>, vector<1x1x32xf32>
    %164 = vector.shape_cast %163 : vector<1x1x32xf32> to vector<1x32xf32>
    %c0_63 = arith.constant 0 : index
    %c0_64 = arith.constant 0 : index
    %c0_65 = arith.constant 0 : index
    %165 = vector.load %arg16[%c0_63, %c0_64, %c0_65] : memref<1x1x32xf32, #tpu.memory_space<vmem>>, vector<1x1x32xf32>
    %166 = vector.shape_cast %165 : vector<1x1x32xf32> to vector<1x32xf32>
    %cst_66 = arith.constant dense<0.000000e+00> : vector<128xf32>
    %167 = vector.multi_reduction <add>, %162, %cst_66 [1] : vector<128x32xf32> to vector<128xf32>
    %168 = vector.shape_cast %167 : vector<128xf32> to vector<128x1xf32>
    %cst_67 = arith.constant 3.200000e+01 : f32
    %169 = vector.broadcast %cst_67 : f32 to vector<128x1xf32>
    %170 = arith.divf %168, %169 : vector<128x1xf32>
    %171 = vector.broadcast %170 : vector<128x1xf32> to vector<128x32xf32>
    %172 = arith.subf %162, %171 : vector<128x32xf32>
    %173 = arith.mulf %172, %172 : vector<128x32xf32>
    %cst_68 = arith.constant dense<0.000000e+00> : vector<128xf32>
    %174 = vector.multi_reduction <add>, %173, %cst_68 [1] : vector<128x32xf32> to vector<128xf32>
    %175 = vector.shape_cast %174 : vector<128xf32> to vector<128x1xf32>
    %cst_69 = arith.constant 3.200000e+01 : f32
    %176 = vector.broadcast %cst_69 : f32 to vector<128x1xf32>
    %177 = arith.divf %175, %176 : vector<128x1xf32>
    %178 = vector.broadcast %170 : vector<128x1xf32> to vector<128x32xf32>
    %179 = arith.subf %162, %178 : vector<128x32xf32>
    %cst_70 = arith.constant 9.99999974E-6 : f32
    %180 = vector.broadcast %cst_70 : f32 to vector<128x1xf32>
    %181 = arith.addf %177, %180 : vector<128x1xf32>
    %182 = math.rsqrt %181 : vector<128x1xf32>
    %183 = vector.broadcast %182 : vector<128x1xf32> to vector<128x32xf32>
    %184 = arith.mulf %179, %183 : vector<128x32xf32>
    %185 = vector.broadcast %164 : vector<1x32xf32> to vector<128x32xf32>
    %186 = arith.mulf %184, %185 : vector<128x32xf32>
    %187 = vector.broadcast %166 : vector<1x32xf32> to vector<128x32xf32>
    %188 = arith.addf %186, %187 : vector<128x32xf32>
    %c0_71 = arith.constant 0 : index
    %c0_72 = arith.constant 0 : index
    %189 = vector.load %arg18[%c0_71, %c0_72] : memref<128x32xf32, #tpu.memory_space<vmem>>, vector<128x32xf32>
    tpu.vector_store %arg18[%c0_71, %c0_72], %188 {strides = array<i32>} : memref<128x32xf32, #tpu.memory_space<vmem>>, vector<128x32xf32>,
    %c1_i32 = arith.constant 1 : i32
    %190 = arith.cmpi eq, %arg1, %c1_i32 : i32
    %191 = arith.extui %190 : i1 to i32
    %c0_i32_73 = arith.constant 0 : i32
    %192 = arith.cmpi ne, %191, %c0_i32_73 : i32
    scf.if %192 {
      %c0_74 = arith.constant 0 : index
      %c0_75 = arith.constant 0 : index
      %193 = vector.load %arg19[%c0_74, %c0_75] : memref<128x32xf32, #tpu.memory_space<vmem>>, vector<128x32xf32>
      %194 = arith.addf %188, %193 : vector<128x32xf32>
      %c0_76 = arith.constant 0 : index
      %c0_77 = arith.constant 0 : index
      %195 = vector.load %arg5[%c0_76, %c0_77] : memref<32x32xbf16, #tpu.memory_space<vmem>>, vector<32x32xbf16>
      %196 = arith.truncf %194 : vector<128x32xf32> to vector<128x32xbf16>
      %cst_78 = arith.constant dense<0.000000e+00> : vector<32x128xf32>
      %197 = tpu.matmul %195, %196, %cst_78 {dimension_numbers = #tpu.dot_dimension_numbers<[0], [1], [1], [0], [0, 1, 1, 0], [], []>} : vector<32x32xbf16>, vector<128x32xbf16>, vector<32x128xf32> -> vector<32x128xf32>
      %c0_79 = arith.constant 0 : index
      %c0_80 = arith.constant 0 : index
      %c0_81 = arith.constant 0 : index
      %198 = vector.load %arg17[%c0_79, %c0_80, %c0_81] : memref<1x32x128xf32, #tpu.memory_space<vmem>>, vector<1x32x128xf32>
      %199 = vector.shape_cast %198 : vector<1x32x128xf32> to vector<32x128xf32>
      %200 = vector.shape_cast %197 : vector<32x128xf32> to vector<1x32x128xf32>
      tpu.vector_store %arg17[%c0_79, %c0_80, %c0_81], %200 {strides = array<i32>} : memref<1x32x128xf32, #tpu.memory_space<vmem>>, vector<1x32x128xf32>,
    } else {
    }
    return
  }
  func.func @transform_0(%arg0: i32, %arg1: i32) -> (i32, i32, i32) {
    %c0_i32 = arith.constant 0 : i32
    %c0_i32_0 = arith.constant 0 : i32
    %c0_i32_1 = arith.constant 0 : i32
    return %arg0, %c0_i32, %c0_i32_0 : i32, i32, i32
  }
  func.func @transform_1(%arg0: i32, %arg1: i32) -> (i32, i32, i32) {
    %c0_i32 = arith.constant 0 : i32
    %c0_i32_0 = arith.constant 0 : i32
    %c0_i32_1 = arith.constant 0 : i32
    return %arg0, %c0_i32, %c0_i32_0 : i32, i32, i32
  }
  func.func @transform_2(%arg0: i32, %arg1: i32) -> (i32, i32) {
    %c0_i32 = arith.constant 0 : i32
    %c0_i32_0 = arith.constant 0 : i32
    %c0_i32_1 = arith.constant 0 : i32
    return %c0_i32, %c0_i32_0 : i32, i32
  }
  func.func @transform_3(%arg0: i32, %arg1: i32) -> (i32, i32) {
    %c0_i32 = arith.constant 0 : i32
    %c0_i32_0 = arith.constant 0 : i32
    %c0_i32_1 = arith.constant 0 : i32
    return %c0_i32, %c0_i32_0 : i32, i32
  }
  func.func @transform_4(%arg0: i32, %arg1: i32) -> (i32, i32, i32) {
    %c0_i32 = arith.constant 0 : i32
    %c0_i32_0 = arith.constant 0 : i32
    %c0_i32_1 = arith.constant 0 : i32
    return %arg1, %c0_i32, %c0_i32_0 : i32, i32, i32
  }
  func.func @transform_5(%arg0: i32, %arg1: i32) -> (i32, i32, i32) {
    %c0_i32 = arith.constant 0 : i32
    %c0_i32_0 = arith.constant 0 : i32
    %c0_i32_1 = arith.constant 0 : i32
    return %arg1, %c0_i32, %c0_i32_0 : i32, i32, i32
  }
  func.func @transform_6(%arg0: i32, %arg1: i32) -> (i32, i32, i32) {
    %c0_i32 = arith.constant 0 : i32
    %c0_i32_0 = arith.constant 0 : i32
    %c0_i32_1 = arith.constant 0 : i32
    return %arg1, %c0_i32, %c0_i32_0 : i32, i32, i32
  }
  func.func @transform_7(%arg0: i32, %arg1: i32) -> (i32, i32, i32) {
    %c0_i32 = arith.constant 0 : i32
    %c0_i32_0 = arith.constant 0 : i32
    %c0_i32_1 = arith.constant 0 : i32
    return %arg1, %c0_i32, %c0_i32_0 : i32, i32, i32
  }
  func.func @transform_8(%arg0: i32, %arg1: i32) -> (i32, i32, i32) {
    %c0_i32 = arith.constant 0 : i32
    %c0_i32_0 = arith.constant 0 : i32
    %c0_i32_1 = arith.constant 0 : i32
    return %arg1, %c0_i32, %c0_i32_0 : i32, i32, i32
  }
  func.func @transform_9(%arg0: i32, %arg1: i32) -> (i32, i32, i32) {
    %c0_i32 = arith.constant 0 : i32
    %c0_i32_0 = arith.constant 0 : i32
    %c0_i32_1 = arith.constant 0 : i32
    return %arg1, %c0_i32, %c0_i32_0 : i32, i32, i32
  }
  func.func @transform_10(%arg0: i32, %arg1: i32) -> (i32, i32, i32) {
    %c0_i32 = arith.constant 0 : i32
    %c0_i32_0 = arith.constant 0 : i32
    %c0_i32_1 = arith.constant 0 : i32
    return %arg1, %c0_i32, %c0_i32_0 : i32, i32, i32
  }
  func.func @transform_11(%arg0: i32, %arg1: i32) -> (i32, i32, i32) {
    %c0_i32 = arith.constant 0 : i32
    %c0_i32_0 = arith.constant 0 : i32
    %c0_i32_1 = arith.constant 0 : i32
    return %arg1, %c0_i32, %c0_i32_0 : i32, i32, i32
  }
  func.func @transform_12(%arg0: i32, %arg1: i32) -> (i32, i32, i32) {
    %c0_i32 = arith.constant 0 : i32
    %c0_i32_0 = arith.constant 0 : i32
    %c0_i32_1 = arith.constant 0 : i32
    return %arg1, %c0_i32, %c0_i32_0 : i32, i32, i32
  }
  func.func @transform_13(%arg0: i32, %arg1: i32) -> (i32, i32, i32) {
    %c0_i32 = arith.constant 0 : i32
    %c0_i32_0 = arith.constant 0 : i32
    %c0_i32_1 = arith.constant 0 : i32
    return %arg1, %c0_i32, %c0_i32_0 : i32, i32, i32
  }
  func.func @transform_14(%arg0: i32, %arg1: i32) -> (i32, i32, i32) {
    %c0_i32 = arith.constant 0 : i32
    %c0_i32_0 = arith.constant 0 : i32
    %c0_i32_1 = arith.constant 0 : i32
    return %arg1, %c0_i32, %c0_i32_0 : i32, i32, i32
  }
  func.func @transform_15(%arg0: i32, %arg1: i32) -> (i32, i32, i32) {
    %c0_i32 = arith.constant 0 : i32
    %c0_i32_0 = arith.constant 0 : i32
    %c0_i32_1 = arith.constant 0 : i32
    return %arg0, %c0_i32, %c0_i32_0 : i32, i32, i32
  }
}

</mosaic_0001>

<llo_original>
// kernel: sparse_transformer_forward.1
$region0: #{sparse_transformer_forward.1}
  #allocation0 [shape = 'u32[]', space=smem, size = 0x4, offset = 0x4, fixed_abs, tag = 'smem constant byte address 0x4 - core index']
  #allocation1 [shape = 'u32[72,128]{1,0:T(1,128)}', space=vmem, size = 0x9000, scoped, tag = 'internal scratch']
  #allocation2 [shape = 'f32[128,32]{1,0:T(8,128)}', space=vmem, size = 0x10000, scoped, tag = 'scratch operand']
  #allocation3 [shape = 'f32[128,32]{1,0:T(8,128)}', space=vmem, size = 0x10000, scoped, tag = 'scratch operand']
  %s0 = inlined_call_operand.vmem [shape: bf16[2,128,32], index: 0, kind: input, shape index: {}]
  %s1 = inlined_call_operand.vmem [shape: bf16[2,1,128], index: 1, kind: input, shape index: {}]
  %s2 = inlined_call_operand.vmem [shape: bf16[32,32], index: 2, kind: input, shape index: {}]
  %s3 = inlined_call_operand.vmem [shape: bf16[32,32], index: 3, kind: input, shape index: {}]
  %s4 = inlined_call_operand.vmem [shape: bf16[2,32,192], index: 4, kind: input, shape index: {}]
  %s5 = inlined_call_operand.vmem [shape: f32[2,1,64], index: 5, kind: input, shape index: {}]
  %s6 = inlined_call_operand.vmem [shape: f32[2,1,32], index: 6, kind: input, shape index: {}]
  %s7 = inlined_call_operand.vmem [shape: f32[2,1,32], index: 7, kind: input, shape index: {}]
  %s8 = inlined_call_operand.vmem [shape: f32[2,1,32], index: 8, kind: input, shape index: {}]
  %s9 = inlined_call_operand.vmem [shape: bf16[2,32,32], index: 9, kind: input, shape index: {}]
  %s10 = inlined_call_operand.vmem [shape: f32[2,1,32], index: 10, kind: input, shape index: {}]
  %s11 = inlined_call_operand.vmem [shape: bf16[2,32,32], index: 11, kind: input, shape index: {}]
  %s12 = inlined_call_operand.vmem [shape: f32[2,1,32], index: 12, kind: input, shape index: {}]
  %s13 = inlined_call_operand.vmem [shape: f32[2,1,32], index: 13, kind: input, shape index: {}]
  %s14 = inlined_call_operand.vmem [shape: f32[2,1,32], index: 14, kind: input, shape index: {}]
  %s15 = inlined_call_operand.vmem [shape: f32[2,32,128], index: 15, kind: output, shape index: {}]
  %s16 = sld [smem:[#allocation0]]
  $region101: #{sparse_transformer_forward.1} parent=0
    _
  %s18 = ssub.s32 1, %s16
  %s19 = scalar_select 0, %s18, %s16
  loop: start=0, step=1, limit=6
  $region2: #{sparse_transformer_forward.1} parent=0 // loop_pre_header
    _
  $region3: #{sparse_transformer_forward.1} parent=0 // loop_header
    %s21 = sphi 0, %s25
    %p22 = scmp.ge.s32.totalorder %s21, 6
    %s28 = sphi 0, %s40
    %s29 = sphi 0, %s36
    %s30 = sphi 0, %s28
    %s31 = sphi 0, %s29
    %s32 = sphi 0, %s30
    %s33 = sphi 0, %s31
    %s43 = sphi 0, %s45
    %s46 = sphi 0, %s43
    %s47 = sphi 0, %s46
    %s63 = sphi 0, %s47
    %s69 = sphi 0, %s71
    %s72 = sphi 0, %s69
    %s73 = sphi 0, %s72
    %s89 = sphi 0, %s73
    %s93 = sphi 0, %s93
    %s95 = sphi 0, %s93
    %s96 = sphi 0, %s95
    %s110 = sphi 0, %s96
    %s114 = sphi 0, %s114
    %s116 = sphi 0, %s114
    %s117 = sphi 0, %s116
    %s131 = sphi 0, %s117
    %s137 = sphi 0, %s139
    %s140 = sphi 0, %s137
    %s141 = sphi 0, %s140
    %s157 = sphi 0, %s141
    %s163 = sphi 0, %s165
    %s166 = sphi 0, %s163
    %s167 = sphi 0, %s166
    %s183 = sphi 0, %s167
    %s189 = sphi 0, %s191
    %s192 = sphi 0, %s189
    %s193 = sphi 0, %s192
    %s209 = sphi 0, %s193
    %s215 = sphi 0, %s217
    %s218 = sphi 0, %s215
    %s219 = sphi 0, %s218
    %s235 = sphi 0, %s219
    %s241 = sphi 0, %s243
    %s244 = sphi 0, %s241
    %s245 = sphi 0, %s244
    %s261 = sphi 0, %s245
    %s267 = sphi 0, %s269
    %s270 = sphi 0, %s267
    %s271 = sphi 0, %s270
    %s287 = sphi 0, %s271
    %s293 = sphi 0, %s295
    %s296 = sphi 0, %s293
    %s297 = sphi 0, %s296
    %s313 = sphi 0, %s297
    %s319 = sphi 0, %s321
    %s322 = sphi 0, %s319
    %s323 = sphi 0, %s322
    %s339 = sphi 0, %s323
    %s345 = sphi 0, %s347
    %s348 = sphi 0, %s345
    %s349 = sphi 0, %s348
    %s365 = sphi 0, %s349
    %s371 = sphi 0, %s373
    %s374 = sphi 0, %s371
    %s375 = sphi 0, %s374
    %s391 = sphi 0, %s375
    %s397 = sphi 0, %s399
    %s400 = sphi 0, %s397
    %s401 = sphi 0, %s400
    %s417 = sphi 0, %s401
    %s423 = sphi 0, %s425
    %s426 = sphi 0, %s423
    %s427 = sphi 0, %s426
    %s443 = sphi 0, %s427
  $region4: #{sparse_transformer_forward.1} parent=0 // loop_header_branch
    %24 = sbr.rel (%p22) target = $region8
  $region5: #{sparse_transformer_forward.1} parent=0 // loop_body
    %s26 = ssub.s32 %s21, 1
    %s27 = ssub.s32 %s21, 2
    %s34 = sadd.s32 1, %s29
    %p35 = scmp.ge.s32.totalorder %s34, 2
    %s36 = scalar_select %p35, 0, %s34
    %s37 = sadd.s32 1, %s28
    %s38 = scalar_select %p35, %s37, %s28
    %p39 = scmp.ge.s32.totalorder %s38, 2
    %s40 = scalar_select %p39, 0, %s38
    %s41 = ssub.s32 %s28, %s40
    %p42 = scmp.eq.s32.totalorder %s41, 0
    %s44 = sadd.s32 %s43, 1
    %s45 = scalar_select %p42, %s43, %s44
    %p48 = pneg %p42
    %p49 = scmp.eq.s32.totalorder %s21, 3
    %p50 = por %p48, %p49
    %p51 = scmp.ne.s32.totalorder %s43, %s46
    %p52 = scmp.eq.s32.totalorder %s21, 0
    %p53 = por %p51, %p52
    %p54 = scmp.ne.s32.totalorder %s43, %s46
    %p55 = scmp.eq.s32.totalorder %s26, 3
    %p56 = por %p54, %p55
    %p57 = scmp.ne.s32.totalorder %s46, %s47
    %p58 = scmp.eq.s32.totalorder %s26, 0
    %p59 = por %p57, %p58
    %p60 = scmp.ne.s32.totalorder %s46, %s47
    %p61 = scmp.eq.s32.totalorder %s27, 3
    %p62 = por %p60, %p61
    %p64 = scmp.ne.s32.totalorder %s47, %s63
    %p65 = scmp.eq.s32.totalorder %s27, 0
    %p66 = por %p64, %p65
    %s67 = ssub.s32 %s28, %s40
    %p68 = scmp.eq.s32.totalorder %s67, 0
    %s70 = sadd.s32 %s69, 1
    %s71 = scalar_select %p68, %s69, %s70
    %p74 = pneg %p68
    %p75 = scmp.eq.s32.totalorder %s21, 3
    %p76 = por %p74, %p75
    %p77 = scmp.ne.s32.totalorder %s69, %s72
    %p78 = scmp.eq.s32.totalorder %s21, 0
    %p79 = por %p77, %p78
    %p80 = scmp.ne.s32.totalorder %s69, %s72
    %p81 = scmp.eq.s32.totalorder %s26, 3
    %p82 = por %p80, %p81
    %p83 = scmp.ne.s32.totalorder %s72, %s73
    %p84 = scmp.eq.s32.totalorder %s26, 0
    %p85 = por %p83, %p84
    %p86 = scmp.ne.s32.totalorder %s72, %s73
    %p87 = scmp.eq.s32.totalorder %s27, 3
    %p88 = por %p86, %p87
    %p90 = scmp.ne.s32.totalorder %s73, %s89
    %p91 = scmp.eq.s32.totalorder %s27, 0
    %p92 = por %p90, %p91
    %s94 = sadd.s32 %s93, 1
    %p97 = scmp.eq.s32.totalorder %s21, 3
    %p98 = scmp.ne.s32.totalorder %s93, %s95
    %p99 = scmp.eq.s32.totalorder %s21, 0
    %p100 = por %p98, %p99
    %p101 = scmp.ne.s32.totalorder %s93, %s95
    %p102 = scmp.eq.s32.totalorder %s26, 3
    %p103 = por %p101, %p102
    %p104 = scmp.ne.s32.totalorder %s95, %s96
    %p105 = scmp.eq.s32.totalorder %s26, 0
    %p106 = por %p104, %p105
    %p107 = scmp.ne.s32.totalorder %s95, %s96
    %p108 = scmp.eq.s32.totalorder %s27, 3
    %p109 = por %p107, %p108
    %p111 = scmp.ne.s32.totalorder %s96, %s110
    %p112 = scmp.eq.s32.totalorder %s27, 0
    %p113 = por %p111, %p112
    %s115 = sadd.s32 %s114, 1
    %p118 = scmp.eq.s32.totalorder %s21, 3
    %p119 = scmp.ne.s32.totalorder %s114, %s116
    %p120 = scmp.eq.s32.totalorder %s21, 0
    %p121 = por %p119, %p120
    %p122 = scmp.ne.s32.totalorder %s114, %s116
    %p123 = scmp.eq.s32.totalorder %s26, 3
    %p124 = por %p122, %p123
    %p125 = scmp.ne.s32.totalorder %s116, %s117
    %p126 = scmp.eq.s32.totalorder %s26, 0
    %p127 = por %p125, %p126
    %p128 = scmp.ne.s32.totalorder %s116, %s117
    %p129 = scmp.eq.s32.totalorder %s27, 3
    %p130 = por %p128, %p129
    %p132 = scmp.ne.s32.totalorder %s117, %s131
    %p133 = scmp.eq.s32.totalorder %s27, 0
    %p134 = por %p132, %p133
    %s135 = ssub.s32 %s29, %s36
    %p136 = scmp.eq.s32.totalorder %s135, 0
    %s138 = sadd.s32 %s137, 1
    %s139 = scalar_select %p136, %s137, %s138
    %p142 = pneg %p136
    %p143 = scmp.eq.s32.totalorder %s21, 3
    %p144 = por %p142, %p143
    %p145 = scmp.ne.s32.totalorder %s137, %s140
    %p146 = scmp.eq.s32.totalorder %s21, 0
    %p147 = por %p145, %p146
    %p148 = scmp.ne.s32.totalorder %s137, %s140
    %p149 = scmp.eq.s32.totalorder %s26, 3
    %p150 = por %p148, %p149
    %p151 = scmp.ne.s32.totalorder %s140, %s141
    %p152 = scmp.eq.s32.totalorder %s26, 0
    %p153 = por %p151, %p152
    %p154 = scmp.ne.s32.totalorder %s140, %s141
    %p155 = scmp.eq.s32.totalorder %s27, 3
    %p156 = por %p154, %p155
    %p158 = scmp.ne.s32.totalorder %s141, %s157
    %p159 = scmp.eq.s32.totalorder %s27, 0
    %p160 = por %p158, %p159
    %s161 = ssub.s32 %s29, %s36
    %p162 = scmp.eq.s32.totalorder %s161, 0
    %s164 = sadd.s32 %s163, 1
    %s165 = scalar_select %p162, %s163, %s164
    %p168 = pneg %p162
    %p169 = scmp.eq.s32.totalorder %s21, 3
    %p170 = por %p168, %p169
    %p171 = scmp.ne.s32.totalorder %s163, %s166
    %p172 = scmp.eq.s32.totalorder %s21, 0
    %p173 = por %p171, %p172
    %p174 = scmp.ne.s32.totalorder %s163, %s166
    %p175 = scmp.eq.s32.totalorder %s26, 3
    %p176 = por %p174, %p175
    %p177 = scmp.ne.s32.totalorder %s166, %s167
    %p178 = scmp.eq.s32.totalorder %s26, 0
    %p179 = por %p177, %p178
    %p180 = scmp.ne.s32.totalorder %s166, %s167
    %p181 = scmp.eq.s32.totalorder %s27, 3
    %p182 = por %p180, %p181
    %p184 = scmp.ne.s32.totalorder %s167, %s183
    %p185 = scmp.eq.s32.totalorder %s27, 0
    %p186 = por %p184, %p185
    %s187 = ssub.s32 %s29, %s36
    %p188 = scmp.eq.s32.totalorder %s187, 0
    %s190 = sadd.s32 %s189, 1
    %s191 = scalar_select %p188, %s189, %s190
    %p194 = pneg %p188
    %p195 = scmp.eq.s32.totalorder %s21, 3
    %p196 = por %p194, %p195
    %p197 = scmp.ne.s32.totalorder %s189, %s192
    %p198 = scmp.eq.s32.totalorder %s21, 0
    %p199 = por %p197, %p198
    %p200 = scmp.ne.s32.totalorder %s189, %s192
    %p201 = scmp.eq.s32.totalorder %s26, 3
    %p202 = por %p200, %p201
    %p203 = scmp.ne.s32.totalorder %s192, %s193
    %p204 = scmp.eq.s32.totalorder %s26, 0
    %p205 = por %p203, %p204
    %p206 = scmp.ne.s32.totalorder %s192, %s193
    %p207 = scmp.eq.s32.totalorder %s27, 3
    %p208 = por %p206, %p207
    %p210 = scmp.ne.s32.totalorder %s193, %s209
    %p211 = scmp.eq.s32.totalorder %s27, 0
    %p212 = por %p210, %p211
    %s213 = ssub.s32 %s29, %s36
    %p214 = scmp.eq.s32.totalorder %s213, 0
    %s216 = sadd.s32 %s215, 1
    %s217 = scalar_select %p214, %s215, %s216
    %p220 = pneg %p214
    %p221 = scmp.eq.s32.totalorder %s21, 3
    %p222 = por %p220, %p221
    %p223 = scmp.ne.s32.totalorder %s215, %s218
    %p224 = scmp.eq.s32.totalorder %s21, 0
    %p225 = por %p223, %p224
    %p226 = scmp.ne.s32.totalorder %s215, %s218
    %p227 = scmp.eq.s32.totalorder %s26, 3
    %p228 = por %p226, %p227
    %p229 = scmp.ne.s32.totalorder %s218, %s219
    %p230 = scmp.eq.s32.totalorder %s26, 0
    %p231 = por %p229, %p230
    %p232 = scmp.ne.s32.totalorder %s218, %s219
    %p233 = scmp.eq.s32.totalorder %s27, 3
    %p234 = por %p232, %p233
    %p236 = scmp.ne.s32.totalorder %s219, %s235
    %p237 = scmp.eq.s32.totalorder %s27, 0
    %p238 = por %p236, %p237
    %s239 = ssub.s32 %s29, %s36
    %p240 = scmp.eq.s32.totalorder %s239, 0
    %s242 = sadd.s32 %s241, 1
    %s243 = scalar_select %p240, %s241, %s242
    %p246 = pneg %p240
    %p247 = scmp.eq.s32.totalorder %s21, 3
    %p248 = por %p246, %p247
    %p249 = scmp.ne.s32.totalorder %s241, %s244
    %p250 = scmp.eq.s32.totalorder %s21, 0
    %p251 = por %p249, %p250
    %p252 = scmp.ne.s32.totalorder %s241, %s244
    %p253 = scmp.eq.s32.totalorder %s26, 3
    %p254 = por %p252, %p253
    %p255 = scmp.ne.s32.totalorder %s244, %s245
    %p256 = scmp.eq.s32.totalorder %s26, 0
    %p257 = por %p255, %p256
    %p258 = scmp.ne.s32.totalorder %s244, %s245
    %p259 = scmp.eq.s32.totalorder %s27, 3
    %p260 = por %p258, %p259
    %p262 = scmp.ne.s32.totalorder %s245, %s261
    %p263 = scmp.eq.s32.totalorder %s27, 0
    %p264 = por %p262, %p263
    %s265 = ssub.s32 %s29, %s36
    %p266 = scmp.eq.s32.totalorder %s265, 0
    %s268 = sadd.s32 %s267, 1
    %s269 = scalar_select %p266, %s267, %s268
    %p272 = pneg %p266
    %p273 = scmp.eq.s32.totalorder %s21, 3
    %p274 = por %p272, %p273
    %p275 = scmp.ne.s32.totalorder %s267, %s270
    %p276 = scmp.eq.s32.totalorder %s21, 0
    %p277 = por %p275, %p276
    %p278 = scmp.ne.s32.totalorder %s267, %s270
    %p279 = scmp.eq.s32.totalorder %s26, 3
    %p280 = por %p278, %p279
    %p281 = scmp.ne.s32.totalorder %s270, %s271
    %p282 = scmp.eq.s32.totalorder %s26, 0
    %p283 = por %p281, %p282
    %p284 = scmp.ne.s32.totalorder %s270, %s271
    %p285 = scmp.eq.s32.totalorder %s27, 3
    %p286 = por %p284, %p285
    %p288 = scmp.ne.s32.totalorder %s271, %s287
    %p289 = scmp.eq.s32.totalorder %s27, 0
    %p290 = por %p288, %p289
    %s291 = ssub.s32 %s29, %s36
    %p292 = scmp.eq.s32.totalorder %s291, 0
    %s294 = sadd.s32 %s293, 1
    %s295 = scalar_select %p292, %s293, %s294
    %p298 = pneg %p292
    %p299 = scmp.eq.s32.totalorder %s21, 3
    %p300 = por %p298, %p299
    %p301 = scmp.ne.s32.totalorder %s293, %s296
    %p302 = scmp.eq.s32.totalorder %s21, 0
    %p303 = por %p301, %p302
    %p304 = scmp.ne.s32.totalorder %s293, %s296
    %p305 = scmp.eq.s32.totalorder %s26, 3
    %p306 = por %p304, %p305
    %p307 = scmp.ne.s32.totalorder %s296, %s297
    %p308 = scmp.eq.s32.totalorder %s26, 0
    %p309 = por %p307, %p308
    %p310 = scmp.ne.s32.totalorder %s296, %s297
    %p311 = scmp.eq.s32.totalorder %s27, 3
    %p312 = por %p310, %p311
    %p314 = scmp.ne.s32.totalorder %s297, %s313
    %p315 = scmp.eq.s32.totalorder %s27, 0
    %p316 = por %p314, %p315
    %s317 = ssub.s32 %s29, %s36
    %p318 = scmp.eq.s32.totalorder %s317, 0
    %s320 = sadd.s32 %s319, 1
    %s321 = scalar_select %p318, %s319, %s320
    %p324 = pneg %p318
    %p325 = scmp.eq.s32.totalorder %s21, 3
    %p326 = por %p324, %p325
    %p327 = scmp.ne.s32.totalorder %s319, %s322
    %p328 = scmp.eq.s32.totalorder %s21, 0
    %p329 = por %p327, %p328
    %p330 = scmp.ne.s32.totalorder %s319, %s322
    %p331 = scmp.eq.s32.totalorder %s26, 3
    %p332 = por %p330, %p331
    %p333 = scmp.ne.s32.totalorder %s322, %s323
    %p334 = scmp.eq.s32.totalorder %s26, 0
    %p335 = por %p333, %p334
    %p336 = scmp.ne.s32.totalorder %s322, %s323
    %p337 = scmp.eq.s32.totalorder %s27, 3
    %p338 = por %p336, %p337
    %p340 = scmp.ne.s32.totalorder %s323, %s339
    %p341 = scmp.eq.s32.totalorder %s27, 0
    %p342 = por %p340, %p341
    %s343 = ssub.s32 %s29, %s36
    %p344 = scmp.eq.s32.totalorder %s343, 0
    %s346 = sadd.s32 %s345, 1
    %s347 = scalar_select %p344, %s345, %s346
    %p350 = pneg %p344
    %p351 = scmp.eq.s32.totalorder %s21, 3
    %p352 = por %p350, %p351
    %p353 = scmp.ne.s32.totalorder %s345, %s348
    %p354 = scmp.eq.s32.totalorder %s21, 0
    %p355 = por %p353, %p354
    %p356 = scmp.ne.s32.totalorder %s345, %s348
    %p357 = scmp.eq.s32.totalorder %s26, 3
    %p358 = por %p356, %p357
    %p359 = scmp.ne.s32.totalorder %s348, %s349
    %p360 = scmp.eq.s32.totalorder %s26, 0
    %p361 = por %p359, %p360
    %p362 = scmp.ne.s32.totalorder %s348, %s349
    %p363 = scmp.eq.s32.totalorder %s27, 3
    %p364 = por %p362, %p363
    %p366 = scmp.ne.s32.totalorder %s349, %s365
    %p367 = scmp.eq.s32.totalorder %s27, 0
    %p368 = por %p366, %p367
    %s369 = ssub.s32 %s29, %s36
    %p370 = scmp.eq.s32.totalorder %s369, 0
    %s372 = sadd.s32 %s371, 1
    %s373 = scalar_select %p370, %s371, %s372
    %p376 = pneg %p370
    %p377 = scmp.eq.s32.totalorder %s21, 3
    %p378 = por %p376, %p377
    %p379 = scmp.ne.s32.totalorder %s371, %s374
    %p380 = scmp.eq.s32.totalorder %s21, 0
    %p381 = por %p379, %p380
    %p382 = scmp.ne.s32.totalorder %s371, %s374
    %p383 = scmp.eq.s32.totalorder %s26, 3
    %p384 = por %p382, %p383
    %p385 = scmp.ne.s32.totalorder %s374, %s375
    %p386 = scmp.eq.s32.totalorder %s26, 0
    %p387 = por %p385, %p386
    %p388 = scmp.ne.s32.totalorder %s374, %s375
    %p389 = scmp.eq.s32.totalorder %s27, 3
    %p390 = por %p388, %p389
    %p392 = scmp.ne.s32.totalorder %s375, %s391
    %p393 = scmp.eq.s32.totalorder %s27, 0
    %p394 = por %p392, %p393
    %s395 = ssub.s32 %s29, %s36
    %p396 = scmp.eq.s32.totalorder %s395, 0
    %s398 = sadd.s32 %s397, 1
    %s399 = scalar_select %p396, %s397, %s398
    %p402 = pneg %p396
    %p403 = scmp.eq.s32.totalorder %s21, 3
    %p404 = por %p402, %p403
    %p405 = scmp.ne.s32.totalorder %s397, %s400
    %p406 = scmp.eq.s32.totalorder %s21, 0
    %p407 = por %p405, %p406
    %p408 = scmp.ne.s32.totalorder %s397, %s400
    %p409 = scmp.eq.s32.totalorder %s26, 3
    %p410 = por %p408, %p409
    %p411 = scmp.ne.s32.totalorder %s400, %s401
    %p412 = scmp.eq.s32.totalorder %s26, 0
    %p413 = por %p411, %p412
    %p414 = scmp.ne.s32.totalorder %s400, %s401
    %p415 = scmp.eq.s32.totalorder %s27, 3
    %p416 = por %p414, %p415
    %p418 = scmp.ne.s32.totalorder %s401, %s417
    %p419 = scmp.eq.s32.totalorder %s27, 0
    %p420 = por %p418, %p419
    %s421 = ssub.s32 %s28, %s40
    %p422 = scmp.eq.s32.totalorder %s421, 0
    %s424 = sadd.s32 %s423, 1
    %s425 = scalar_select %p422, %s423, %s424
    %p428 = pneg %p422
    %p429 = scmp.eq.s32.totalorder %s21, 3
    %p430 = por %p428, %p429
    %p431 = scmp.ne.s32.totalorder %s423, %s426
    %p432 = scmp.eq.s32.totalorder %s21, 0
    %p433 = por %p431, %p432
    %p434 = scmp.ne.s32.totalorder %s423, %s426
    %p435 = scmp.eq.s32.totalorder %s26, 3
    %p436 = por %p434, %p435
    %p437 = scmp.ne.s32.totalorder %s426, %s427
    %p438 = scmp.eq.s32.totalorder %s26, 0
    %p439 = por %p437, %p438
    %p440 = scmp.ne.s32.totalorder %s426, %s427
    %p441 = scmp.eq.s32.totalorder %s27, 3
    %p442 = por %p440, %p441
    %p444 = scmp.ne.s32.totalorder %s427, %s443
    %p445 = scmp.eq.s32.totalorder %s27, 0
    %p446 = por %p444, %p445
    %p447 = scmp.le.s32.totalorder 1, %s21
    %p448 = scmp.lt.s32.totalorder %s21, 5
    %p449 = pnand %p447, %p448
    %p450 = pneg %p449
    // Predicated region
    $region9: #{sparse_transformer_forward.1} parent=5 // pred_check
      _
    $region10: #{sparse_transformer_forward.1} parent=5 // pred_check_branch
      %452 = sbr.rel (%p449) target = $region12
    $region11: #{sparse_transformer_forward.1} parent=5 // pred_region
      %s453 = ssub.s32 %s21, 1
      // Predicated region
      $region13: #{sparse_transformer_forward.1} parent=11 // pred_check
        %p454 = pneg %p106
      $region14: #{sparse_transformer_forward.1} parent=11 // pred_check_branch
        %456 = sbr.rel (%p454) target = $region16
      $region15: #{sparse_transformer_forward.1} parent=11 // pred_region
        _
      $region16: #{sparse_transformer_forward.1} parent=11 // pred_fallthru
        _
      // Predicated region
      $region17: #{sparse_transformer_forward.1} parent=11 // pred_check
        %p457 = pneg %p127
      $region18: #{sparse_transformer_forward.1} parent=11 // pred_check_branch
        %459 = sbr.rel (%p457) target = $region20
      $region19: #{sparse_transformer_forward.1} parent=11 // pred_region
        _
      $region20: #{sparse_transformer_forward.1} parent=11 // pred_fallthru
        _
    $region12: #{sparse_transformer_forward.1} parent=5 // pred_fallthru
      _
    %p460 = scmp.lt.s32.totalorder %s21, 4
    // Predicated region
    $region21: #{sparse_transformer_forward.1} parent=5 // pred_check
      %p461 = pneg %p460
    $region22: #{sparse_transformer_forward.1} parent=5 // pred_check_branch
      %463 = sbr.rel (%p461) target = $region24
    $region23: #{sparse_transformer_forward.1} parent=5 // pred_region
      // Predicated region
      $region25: #{sparse_transformer_forward.1} parent=23 // pred_check
        %p464 = pneg %p53
      $region26: #{sparse_transformer_forward.1} parent=23 // pred_check_branch
        %466 = sbr.rel (%p464) target = $region28
      $region27: #{sparse_transformer_forward.1} parent=23 // pred_region
        %p467 = scmp.lt.s32.totalorder %s28, 1
        %s468 = scalar_select %p467, %s28, 1
        %s469 = smul.addr %s468, 16
        %s470 = smul.addr %s469, 4
        %s471 = scalar_lea.vmem %s0, %s470
      $region28: #{sparse_transformer_forward.1} parent=23 // pred_fallthru
        _
      // Predicated region
      $region29: #{sparse_transformer_forward.1} parent=23 // pred_check
        %p472 = pneg %p79
      $region30: #{sparse_transformer_forward.1} parent=23 // pred_check_branch
        %474 = sbr.rel (%p472) target = $region32
      $region31: #{sparse_transformer_forward.1} parent=23 // pred_region
        %p475 = scmp.lt.s32.totalorder %s28, 1
        %s476 = scalar_select %p475, %s28, 1
        %s477 = scalar_lea.vmem %s1, %s476
      $region32: #{sparse_transformer_forward.1} parent=23 // pred_fallthru
        _
      // Predicated region
      $region33: #{sparse_transformer_forward.1} parent=23 // pred_check
        %p478 = pneg %p147
      $region34: #{sparse_transformer_forward.1} parent=23 // pred_check_branch
        %480 = sbr.rel (%p478) target = $region36
      $region35: #{sparse_transformer_forward.1} parent=23 // pred_region
        %p481 = scmp.lt.s32.totalorder %s29, 1
        %s482 = scalar_select %p481, %s29, 1
        %s483 = smul.addr %s482, 8
        %s484 = smul.addr %s483, 4
        %s485 = scalar_lea.vmem %s4, %s484
      $region36: #{sparse_transformer_forward.1} parent=23 // pred_fallthru
        _
      // Predicated region
      $region37: #{sparse_transformer_forward.1} parent=23 // pred_check
        %p486 = pneg %p173
      $region38: #{sparse_transformer_forward.1} parent=23 // pred_check_branch
        %488 = sbr.rel (%p486) target = $region40
      $region39: #{sparse_transformer_forward.1} parent=23 // pred_region
        %p489 = scmp.lt.s32.totalorder %s29, 1
        %s490 = scalar_select %p489, %s29, 1
        %s491 = scalar_lea.vmem %s5, %s490
      $region40: #{sparse_transformer_forward.1} parent=23 // pred_fallthru
        _
      // Predicated region
      $region41: #{sparse_transformer_forward.1} parent=23 // pred_check
        %p492 = pneg %p199
      $region42: #{sparse_transformer_forward.1} parent=23 // pred_check_branch
        %494 = sbr.rel (%p492) target = $region44
      $region43: #{sparse_transformer_forward.1} parent=23 // pred_region
        %p495 = scmp.lt.s32.totalorder %s29, 1
        %s496 = scalar_select %p495, %s29, 1
        %s497 = scalar_lea.vmem %s6, %s496
      $region44: #{sparse_transformer_forward.1} parent=23 // pred_fallthru
        _
      // Predicated region
      $region45: #{sparse_transformer_forward.1} parent=23 // pred_check
        %p498 = pneg %p225
      $region46: #{sparse_transformer_forward.1} parent=23 // pred_check_branch
        %500 = sbr.rel (%p498) target = $region48
      $region47: #{sparse_transformer_forward.1} parent=23 // pred_region
        %p501 = scmp.lt.s32.totalorder %s29, 1
        %s502 = scalar_select %p501, %s29, 1
        %s503 = scalar_lea.vmem %s7, %s502
      $region48: #{sparse_transformer_forward.1} parent=23 // pred_fallthru
        _
      // Predicated region
      $region49: #{sparse_transformer_forward.1} parent=23 // pred_check
        %p504 = pneg %p251
      $region50: #{sparse_transformer_forward.1} parent=23 // pred_check_branch
        %506 = sbr.rel (%p504) target = $region52
      $region51: #{sparse_transformer_forward.1} parent=23 // pred_region
        %p507 = scmp.lt.s32.totalorder %s29, 1
        %s508 = scalar_select %p507, %s29, 1
        %s509 = scalar_lea.vmem %s8, %s508
      $region52: #{sparse_transformer_forward.1} parent=23 // pred_fallthru
        _
      // Predicated region
      $region53: #{sparse_transformer_forward.1} parent=23 // pred_check
        %p510 = pneg %p277
      $region54: #{sparse_transformer_forward.1} parent=23 // pred_check_branch
        %512 = sbr.rel (%p510) target = $region56
      $region55: #{sparse_transformer_forward.1} parent=23 // pred_region
        %p513 = scmp.lt.s32.totalorder %s29, 1
        %s514 = scalar_select %p513, %s29, 1
        %s515 = smul.addr %s514, 4
        %s516 = smul.addr %s515, 4
        %s517 = scalar_lea.vmem %s9, %s516
      $region56: #{sparse_transformer_forward.1} parent=23 // pred_fallthru
        _
      // Predicated region
      $region57: #{sparse_transformer_forward.1} parent=23 // pred_check
        %p518 = pneg %p303
      $region58: #{sparse_transformer_forward.1} parent=23 // pred_check_branch
        %520 = sbr.rel (%p518) target = $region60
      $region59: #{sparse_transformer_forward.1} parent=23 // pred_region
        %p521 = scmp.lt.s32.totalorder %s29, 1
        %s522 = scalar_select %p521, %s29, 1
        %s523 = scalar_lea.vmem %s10, %s522
      $region60: #{sparse_transformer_forward.1} parent=23 // pred_fallthru
        _
      // Predicated region
      $region61: #{sparse_transformer_forward.1} parent=23 // pred_check
        %p524 = pneg %p329
      $region62: #{sparse_transformer_forward.1} parent=23 // pred_check_branch
        %526 = sbr.rel (%p524) target = $region64
      $region63: #{sparse_transformer_forward.1} parent=23 // pred_region
        %p527 = scmp.lt.s32.totalorder %s29, 1
        %s528 = scalar_select %p527, %s29, 1
        %s529 = smul.addr %s528, 4
        %s530 = smul.addr %s529, 4
        %s531 = scalar_lea.vmem %s11, %s530
      $region64: #{sparse_transformer_forward.1} parent=23 // pred_fallthru
        _
      // Predicated region
      $region65: #{sparse_transformer_forward.1} parent=23 // pred_check
        %p532 = pneg %p355
      $region66: #{sparse_transformer_forward.1} parent=23 // pred_check_branch
        %534 = sbr.rel (%p532) target = $region68
      $region67: #{sparse_transformer_forward.1} parent=23 // pred_region
        %p535 = scmp.lt.s32.totalorder %s29, 1
        %s536 = scalar_select %p535, %s29, 1
        %s537 = scalar_lea.vmem %s12, %s536
      $region68: #{sparse_transformer_forward.1} parent=23 // pred_fallthru
        _
      // Predicated region
      $region69: #{sparse_transformer_forward.1} parent=23 // pred_check
        %p538 = pneg %p381
      $region70: #{sparse_transformer_forward.1} parent=23 // pred_check_branch
        %540 = sbr.rel (%p538) target = $region72
      $region71: #{sparse_transformer_forward.1} parent=23 // pred_region
        %p541 = scmp.lt.s32.totalorder %s29, 1
        %s542 = scalar_select %p541, %s29, 1
        %s543 = scalar_lea.vmem %s13, %s542
      $region72: #{sparse_transformer_forward.1} parent=23 // pred_fallthru
        _
      // Predicated region
      $region73: #{sparse_transformer_forward.1} parent=23 // pred_check
        %p544 = pneg %p407
      $region74: #{sparse_transformer_forward.1} parent=23 // pred_check_branch
        %546 = sbr.rel (%p544) target = $region76
      $region75: #{sparse_transformer_forward.1} parent=23 // pred_region
        %p547 = scmp.lt.s32.totalorder %s29, 1
        %s548 = scalar_select %p547, %s29, 1
        %s549 = scalar_lea.vmem %s14, %s548
      $region76: #{sparse_transformer_forward.1} parent=23 // pred_fallthru
        _
    $region24: #{sparse_transformer_forward.1} parent=5 // pred_fallthru
      _
    %p550 = scmp.le.s32.totalorder 1, %s21
    %p551 = scmp.lt.s32.totalorder %s21, 5
    %p552 = pnand %p550, %p551
    %p553 = pneg %p552
    // Predicated region
    $region77: #{sparse_transformer_forward.1} parent=5 // pred_check
      _
    $region78: #{sparse_transformer_forward.1} parent=5 // pred_check_branch
      %555 = sbr.rel (%p552) target = $region80
    $region79: #{sparse_transformer_forward.1} parent=5 // pred_region
      %s556 = ssub.s32 %s21, 1
      %p557 = scmp.lt.s32.totalorder %s30, 1
      %s558 = scalar_select %p557, %s30, 1
      %s559 = smul.addr %s558, 16
      %s560 = smul.addr %s559, 4
      %s561 = scalar_lea.vmem %s0, %s560
      %p562 = pneg %p59
      %p563 = pneg %p56
      %p564 = scmp.lt.s32.totalorder %s30, 1
      %s565 = scalar_select %p564, %s30, 1
      %s566 = scalar_lea.vmem %s1, %s565
      %p567 = pneg %p85
      %p568 = pneg %p82
      %p569 = pneg %p106
      %p570 = pneg %p103
      %p571 = pneg %p127
      %p572 = pneg %p124
      %p573 = scmp.lt.s32.totalorder %s31, 1
      %s574 = scalar_select %p573, %s31, 1
      %s575 = smul.addr %s574, 8
      %s576 = smul.addr %s575, 4
      %s577 = scalar_lea.vmem %s4, %s576
      %p578 = pneg %p153
      %p579 = pneg %p150
      %p580 = scmp.lt.s32.totalorder %s31, 1
      %s581 = scalar_select %p580, %s31, 1
      %s582 = scalar_lea.vmem %s5, %s581
      %p583 = pneg %p179
      %p584 = pneg %p176
      %p585 = scmp.lt.s32.totalorder %s31, 1
      %s586 = scalar_select %p585, %s31, 1
      %s587 = scalar_lea.vmem %s6, %s586
      %p588 = pneg %p205
      %p589 = pneg %p202
      %p590 = scmp.lt.s32.totalorder %s31, 1
      %s591 = scalar_select %p590, %s31, 1
      %s592 = scalar_lea.vmem %s7, %s591
      %p593 = pneg %p231
      %p594 = pneg %p228
      %p595 = scmp.lt.s32.totalorder %s31, 1
      %s596 = scalar_select %p595, %s31, 1
      %s597 = scalar_lea.vmem %s8, %s596
      %p598 = pneg %p257
      %p599 = pneg %p254
      %p600 = scmp.lt.s32.totalorder %s31, 1
      %s601 = scalar_select %p600, %s31, 1
      %s602 = smul.addr %s601, 4
      %s603 = smul.addr %s602, 4
      %s604 = scalar_lea.vmem %s9, %s603
      %p605 = pneg %p283
      %p606 = pneg %p280
      %p607 = scmp.lt.s32.totalorder %s31, 1
      %s608 = scalar_select %p607, %s31, 1
      %s609 = scalar_lea.vmem %s10, %s608
      %p610 = pneg %p309
      %p611 = pneg %p306
      %p612 = scmp.lt.s32.totalorder %s31, 1
      %s613 = scalar_select %p612, %s31, 1
      %s614 = smul.addr %s613, 4
      %s615 = smul.addr %s614, 4
      %s616 = scalar_lea.vmem %s11, %s615
      %p617 = pneg %p335
      %p618 = pneg %p332
      %p619 = scmp.lt.s32.totalorder %s31, 1
      %s620 = scalar_select %p619, %s31, 1
      %s621 = scalar_lea.vmem %s12, %s620
      %p622 = pneg %p361
      %p623 = pneg %p358
      %p624 = scmp.lt.s32.totalorder %s31, 1
      %s625 = scalar_select %p624, %s31, 1
      %s626 = scalar_lea.vmem %s13, %s625
      %p627 = pneg %p387
      %p628 = pneg %p384
      %p629 = scmp.lt.s32.totalorder %s31, 1
      %s630 = scalar_select %p629, %s31, 1
      %s631 = scalar_lea.vmem %s14, %s630
      %p632 = pneg %p413
      %p633 = pneg %p410
      %p634 = pneg %p439
      %p635 = pneg %p436
      %p636 = scmp.lt.s32.totalorder %s30, 1
      %s637 = scalar_select %p636, %s30, 1
      %s638 = smul.addr %s637, 4
      %s639 = smul.addr %s638, 8
      %s640 = scalar_lea.vmem %s15, %s639
      %p641 = scmp.lt.s32.totalorder %s30, 1
      %s642 = scalar_select %p641, %s30, 1
      %s643 = smul.addr %s642, 16
      %s644 = smul.addr %s643, 4
      %s645 = scalar_lea.vmem %s0, %s644
      %p646 = scmp.lt.s32.totalorder %s30, 1
      %s647 = scalar_select %p646, %s30, 1
      %s648 = scalar_lea.vmem %s1, %s647
      %p649 = scmp.lt.s32.totalorder %s31, 1
      %s650 = scalar_select %p649, %s31, 1
      %s651 = smul.addr %s650, 8
      %s652 = smul.addr %s651, 4
      %s653 = scalar_lea.vmem %s4, %s652
      %p654 = scmp.lt.s32.totalorder %s31, 1
      %s655 = scalar_select %p654, %s31, 1
      %s656 = scalar_lea.vmem %s5, %s655
      %p657 = scmp.lt.s32.totalorder %s31, 1
      %s658 = scalar_select %p657, %s31, 1
      %s659 = scalar_lea.vmem %s6, %s658
      %p660 = scmp.lt.s32.totalorder %s31, 1
      %s661 = scalar_select %p660, %s31, 1
      %s662 = scalar_lea.vmem %s7, %s661
      %p663 = scmp.lt.s32.totalorder %s31, 1
      %s664 = scalar_select %p663, %s31, 1
      %s665 = scalar_lea.vmem %s8, %s664
      %p666 = scmp.lt.s32.totalorder %s31, 1
      %s667 = scalar_select %p666, %s31, 1
      %s668 = smul.addr %s667, 4
      %s669 = smul.addr %s668, 4
      %s670 = scalar_lea.vmem %s9, %s669
      %p671 = scmp.lt.s32.totalorder %s31, 1
      %s672 = scalar_select %p671, %s31, 1
      %s673 = scalar_lea.vmem %s10, %s672
      %p674 = scmp.lt.s32.totalorder %s31, 1
      %s675 = scalar_select %p674, %s31, 1
      %s676 = smul.addr %s675, 4
      %s677 = smul.addr %s676, 4
      %s678 = scalar_lea.vmem %s11, %s677
      %p679 = scmp.lt.s32.totalorder %s31, 1
      %s680 = scalar_select %p679, %s31, 1
      %s681 = scalar_lea.vmem %s12, %s680
      %p682 = scmp.lt.s32.totalorder %s31, 1
      %s683 = scalar_select %p682, %s31, 1
      %s684 = scalar_lea.vmem %s13, %s683
      %p685 = scmp.lt.s32.totalorder %s31, 1
      %s686 = scalar_select %p685, %s31, 1
      %s687 = scalar_lea.vmem %s14, %s686
      %p688 = scmp.lt.s32.totalorder %s30, 1
      %s689 = scalar_select %p688, %s30, 1
      %s690 = smul.addr %s689, 4
      %s691 = smul.addr %s690, 8
      %s692 = scalar_lea.vmem %s15, %s691
      %p694 = scmp.eq.s32.totalorder %s31, 0
      // Predicated region
      $region81: #{sparse_transformer_forward.1} parent=79 // pred_check
        %p695 = pneg %p694
      $region82: #{sparse_transformer_forward.1} parent=79 // pred_check_branch
        %697 = sbr.rel (%p695) target = $region84
      $region83: #{sparse_transformer_forward.1} parent=79 // pred_region
        %v698 = vld [vmem:[%s645] sm:$0xf]
        %v699 = vld [vmem:[%s645 + $0x4] sm:$0xf]
        %v700 = vld [vmem:[%s645 + $0x8] sm:$0xf]
        %v701 = vld [vmem:[%s645 + $0xc] sm:$0xf]
        %v702 = vld [vmem:[%s645 + $0x10] sm:$0xf]
        %v703 = vld [vmem:[%s645 + $0x14] sm:$0xf]
        %v704 = vld [vmem:[%s645 + $0x18] sm:$0xf]
        %v705 = vld [vmem:[%s645 + $0x1c] sm:$0xf]
        %v706 = vld [vmem:[%s645 + $0x20] sm:$0xf]
        %v707 = vld [vmem:[%s645 + $0x24] sm:$0xf]
        %v708 = vld [vmem:[%s645 + $0x28] sm:$0xf]
        %v709 = vld [vmem:[%s645 + $0x2c] sm:$0xf]
        %v710 = vld [vmem:[%s645 + $0x30] sm:$0xf]
        %v711 = vld [vmem:[%s645 + $0x34] sm:$0xf]
        %v712 = vld [vmem:[%s645 + $0x38] sm:$0xf]
        %v713 = vld [vmem:[%s645 + $0x3c] sm:$0xf]
        %v714 = vld [vmem:[%s2] sm:$0xf]
        %v715 = vld [vmem:[%s2 + $0x4] sm:$0xf]
        %v716 = vld [vmem:[%s2 + $0x8] sm:$0xf]
        %v717 = vld [vmem:[%s2 + $0xc] sm:$0xf]
        %v734 = vunpack.c.l.b16 %v698
        %v735 = vunpack.c.l.b16 %v699
        %v736 = vunpack.c.l.b16 %v700
        %v737 = vunpack.c.l.b16 %v701
        %v738 = vunpack.c.l.b16 %v702
        %v739 = vunpack.c.l.b16 %v703
        %v740 = vunpack.c.l.b16 %v704
        %v741 = vunpack.c.l.b16 %v705
        %v742 = vunpack.c.l.b16 %v706
        %v743 = vunpack.c.l.b16 %v707
        %v744 = vunpack.c.l.b16 %v708
        %v745 = vunpack.c.l.b16 %v709
        %v746 = vunpack.c.l.b16 %v710
        %v747 = vunpack.c.l.b16 %v711
        %v748 = vunpack.c.l.b16 %v712
        %v749 = vunpack.c.l.b16 %v713
        %v750 = vpack.c.b16 %v735, %v734
        %v751 = vpack.c.b16 %v737, %v736
        %v752 = vpack.c.b16 %v739, %v738
        %v753 = vpack.c.b16 %v741, %v740
        %v754 = vpack.c.b16 %v743, %v742
        %v755 = vpack.c.b16 %v745, %v744
        %v756 = vpack.c.b16 %v747, %v746
        %v757 = vpack.c.b16 %v749, %v748
        %v762 = vunpack.c.l.b16 %v714
        %v763 = vunpack.c.l.b16 %v715
        %v764 = vunpack.c.l.b16 %v716
        %v765 = vunpack.c.l.b16 %v717
        %v766 = vpack.c.b16 %v763, %v762
        %v767 = vpack.c.b16 %v765, %v764
        %vm770 = vcmask 261120
        %v772 = vsel %vm770, %v750, 0
        %v775 = vsel %vm770, %v751, 0
        %v778 = vsel %vm770, %v752, 0
        %v781 = vsel %vm770, %v753, 0
        %v784 = vsel %vm770, %v754, 0
        %v787 = vsel %vm770, %v755, 0
        %v790 = vsel %vm770, %v756, 0
        %v793 = vsel %vm770, %v757, 0
        %795 = vmatpush.bf16.msra.mxu0 0
        %796 = vmatpush.bf16.msra.mxu0 0
        %797 = vmatpush.bf16.msra.mxu0 0
        %798 = vmatpush.bf16.msra.mxu0 0
        %799 = vmatpush.bf16.msra.mxu0 0
        %800 = vmatpush.bf16.msra.mxu0 0
        %801 = vmatpush.bf16.msra.mxu0 %v767
        %802 = vmatpush.bf16.msra.mxu0 %v766
        %803 = vmatmul.bf16.gmra.mxu0 %v772
        %v804 = vpop.f32.mrf.mxu0
        %v805 = vadd.f32 0.0, %v804
        %v806 = vpop.f32.mrf.mxu0
        %v807 = vadd.f32 0.0, %v806
        %808 = vmatmul.bf16.gmra.mxu0 %v775
        %v809 = vpop.f32.mrf.mxu0
        %v810 = vadd.f32 0.0, %v809
        %v811 = vpop.f32.mrf.mxu0
        %v812 = vadd.f32 0.0, %v811
        %813 = vmatmul.bf16.gmra.mxu0 %v778
        %v814 = vpop.f32.mrf.mxu0
        %v815 = vadd.f32 0.0, %v814
        %v816 = vpop.f32.mrf.mxu0
        %v817 = vadd.f32 0.0, %v816
        %818 = vmatmul.bf16.gmra.mxu0 %v781
        %v819 = vpop.f32.mrf.mxu0
        %v820 = vadd.f32 0.0, %v819
        %v821 = vpop.f32.mrf.mxu0
        %v822 = vadd.f32 0.0, %v821
        %823 = vmatmul.bf16.gmra.mxu0 %v784
        %v824 = vpop.f32.mrf.mxu0
        %v825 = vadd.f32 0.0, %v824
        %v826 = vpop.f32.mrf.mxu0
        %v827 = vadd.f32 0.0, %v826
        %828 = vmatmul.bf16.gmra.mxu0 %v787
        %v829 = vpop.f32.mrf.mxu0
        %v830 = vadd.f32 0.0, %v829
        %v831 = vpop.f32.mrf.mxu0
        %v832 = vadd.f32 0.0, %v831
        %833 = vmatmul.bf16.gmra.mxu0 %v790
        %v834 = vpop.f32.mrf.mxu0
        %v835 = vadd.f32 0.0, %v834
        %v836 = vpop.f32.mrf.mxu0
        %v837 = vadd.f32 0.0, %v836
        %838 = vmatmul.bf16.gmra.mxu0 %v793
        %v839 = vpop.f32.mrf.mxu0
        %v840 = vadd.f32 0.0, %v839
        %v841 = vpop.f32.mrf.mxu0
        %v842 = vadd.f32 0.0, %v841
        %843 = vdwg.mxu0
        %844 = vst.msk [vmem:[#allocation2] sm:$0xff] %vm770, %v805
        %845 = vst.msk [vmem:[#allocation2 + $0x8] sm:$0xff] %vm770, %v807
        %846 = vst.msk [vmem:[#allocation2 + $0x10] sm:$0xff] %vm770, %v810
        %847 = vst.msk [vmem:[#allocation2 + $0x18] sm:$0xff] %vm770, %v812
        %848 = vst.msk [vmem:[#allocation2 + $0x20] sm:$0xff] %vm770, %v815
        %849 = vst.msk [vmem:[#allocation2 + $0x28] sm:$0xff] %vm770, %v817
        %850 = vst.msk [vmem:[#allocation2 + $0x30] sm:$0xff] %vm770, %v820
        %851 = vst.msk [vmem:[#allocation2 + $0x38] sm:$0xff] %vm770, %v822
        %852 = vst.msk [vmem:[#allocation2 + $0x40] sm:$0xff] %vm770, %v825
        %853 = vst.msk [vmem:[#allocation2 + $0x48] sm:$0xff] %vm770, %v827
        %854 = vst.msk [vmem:[#allocation2 + $0x50] sm:$0xff] %vm770, %v830
        %855 = vst.msk [vmem:[#allocation2 + $0x58] sm:$0xff] %vm770, %v832
        %856 = vst.msk [vmem:[#allocation2 + $0x60] sm:$0xff] %vm770, %v835
        %857 = vst.msk [vmem:[#allocation2 + $0x68] sm:$0xff] %vm770, %v837
        %858 = vst.msk [vmem:[#allocation2 + $0x70] sm:$0xff] %vm770, %v840
        %859 = vst.msk [vmem:[#allocation2 + $0x78] sm:$0xff] %vm770, %v842
        %860 = vst.msk [vmem:[#allocation3] sm:$0xff] %vm770, %v805
        %861 = vst.msk [vmem:[#allocation3 + $0x8] sm:$0xff] %vm770, %v807
        %862 = vst.msk [vmem:[#allocation3 + $0x10] sm:$0xff] %vm770, %v810
        %863 = vst.msk [vmem:[#allocation3 + $0x18] sm:$0xff] %vm770, %v812
        %864 = vst.msk [vmem:[#allocation3 + $0x20] sm:$0xff] %vm770, %v815
        %865 = vst.msk [vmem:[#allocation3 + $0x28] sm:$0xff] %vm770, %v817
        %866 = vst.msk [vmem:[#allocation3 + $0x30] sm:$0xff] %vm770, %v820
        %867 = vst.msk [vmem:[#allocation3 + $0x38] sm:$0xff] %vm770, %v822
        %868 = vst.msk [vmem:[#allocation3 + $0x40] sm:$0xff] %vm770, %v825
        %869 = vst.msk [vmem:[#allocation3 + $0x48] sm:$0xff] %vm770, %v827
        %870 = vst.msk [vmem:[#allocation3 + $0x50] sm:$0xff] %vm770, %v830
        %871 = vst.msk [vmem:[#allocation3 + $0x58] sm:$0xff] %vm770, %v832
        %872 = vst.msk [vmem:[#allocation3 + $0x60] sm:$0xff] %vm770, %v835
        %873 = vst.msk [vmem:[#allocation3 + $0x68] sm:$0xff] %vm770, %v837
        %874 = vst.msk [vmem:[#allocation3 + $0x70] sm:$0xff] %vm770, %v840
        %875 = vst.msk [vmem:[#allocation3 + $0x78] sm:$0xff] %vm770, %v842
      $region84: #{sparse_transformer_forward.1} parent=79 // pred_fallthru
        _
      %v876 = vld [vmem:[#allocation2] sm:$0xff]
      %v877 = vld [vmem:[#allocation2 + $0x8] sm:$0xff]
      %v878 = vld [vmem:[#allocation2 + $0x10] sm:$0xff]
      %v879 = vld [vmem:[#allocation2 + $0x18] sm:$0xff]
      %v880 = vld [vmem:[#allocation2 + $0x20] sm:$0xff]
      %v881 = vld [vmem:[#allocation2 + $0x28] sm:$0xff]
      %v882 = vld [vmem:[#allocation2 + $0x30] sm:$0xff]
      %v883 = vld [vmem:[#allocation2 + $0x38] sm:$0xff]
      %v884 = vld [vmem:[#allocation2 + $0x40] sm:$0xff]
      %v885 = vld [vmem:[#allocation2 + $0x48] sm:$0xff]
      %v886 = vld [vmem:[#allocation2 + $0x50] sm:$0xff]
      %v887 = vld [vmem:[#allocation2 + $0x58] sm:$0xff]
      %v888 = vld [vmem:[#allocation2 + $0x60] sm:$0xff]
      %v889 = vld [vmem:[#allocation2 + $0x68] sm:$0xff]
      %v890 = vld [vmem:[#allocation2 + $0x70] sm:$0xff]
      %v891 = vld [vmem:[#allocation2 + $0x78] sm:$0xff]
      %v892 = vld [vmem:[%s648] sm:$0x1]
      %v893 = vunpack.c.l.bf16 %v892
      %vm894 = vcmp.gt.f32.partialorder %v893, 0.5
      %v895 = vsel %vm894, 0.0, -1e+30
      %v896 = vpack.c.bf16 %v877, %v876
      %v897 = vpack.c.bf16 %v879, %v878
      %v898 = vpack.c.bf16 %v881, %v880
      %v899 = vpack.c.bf16 %v883, %v882
      %v900 = vpack.c.bf16 %v885, %v884
      %v901 = vpack.c.bf16 %v887, %v886
      %v902 = vpack.c.bf16 %v889, %v888
      %v903 = vpack.c.bf16 %v891, %v890
      %v904 = vld [vmem:[%s653] sm:$0xff]
      %v905 = vld [vmem:[%s653 + $0x8] sm:$0xff]
      %v906 = vld [vmem:[%s653 + $0x10] sm:$0xff]
      %v907 = vld [vmem:[%s653 + $0x18] sm:$0xff]
      %v912 = vunpack.c.l.b16 %v904
      %v913 = vunpack.c.h.b16 %v904
      %v914 = vunpack.c.l.b16 %v905
      %v915 = vunpack.c.h.b16 %v905
      %v916 = vunpack.c.l.b16 %v906
      %v917 = vunpack.c.h.b16 %v906
      %v918 = vunpack.c.l.b16 %v907
      %v919 = vunpack.c.h.b16 %v907
      %v920 = vpack.c.b16 %v914, %v912
      %v921 = vpack.c.b16 %v915, %v913
      %v922 = vpack.c.b16 %v918, %v916
      %v923 = vpack.c.b16 %v919, %v917
      %vm928 = vcmask 261120
      %v930 = vsel %vm928, %v896, 0
      %v933 = vsel %vm928, %v897, 0
      %v936 = vsel %vm928, %v898, 0
      %v939 = vsel %vm928, %v899, 0
      %v942 = vsel %vm928, %v900, 0
      %v945 = vsel %vm928, %v901, 0
      %v948 = vsel %vm928, %v902, 0
      %v951 = vsel %vm928, %v903, 0
      %953 = vmatpush.bf16.msra.mxu0 0
      %954 = vmatpush.bf16.msra.mxu0 0
      %955 = vmatpush.bf16.msra.mxu0 0
      %956 = vmatpush.bf16.msra.mxu0 0
      %957 = vmatpush.bf16.msra.mxu0 0
      %958 = vmatpush.bf16.msra.mxu0 0
      %959 = vmatpush.bf16.msra.mxu0 %v922
      %960 = vmatpush.bf16.msra.mxu0 %v920
      %961 = vmatmul.bf16.gmra.mxu0 %v930
      %v962 = vpop.f32.mrf.mxu0
      %v963 = vadd.f32 0.0, %v962
      %v964 = vpop.f32.mrf.mxu0
      %v965 = vadd.f32 0.0, %v964
      %966 = vmatmul.bf16.gmra.mxu0 %v933
      %v967 = vpop.f32.mrf.mxu0
      %v968 = vadd.f32 0.0, %v967
      %v969 = vpop.f32.mrf.mxu0
      %v970 = vadd.f32 0.0, %v969
      %971 = vmatmul.bf16.gmra.mxu0 %v936
      %v972 = vpop.f32.mrf.mxu0
      %v973 = vadd.f32 0.0, %v972
      %v974 = vpop.f32.mrf.mxu0
      %v975 = vadd.f32 0.0, %v974
      %976 = vmatmul.bf16.gmra.mxu0 %v939
      %v977 = vpop.f32.mrf.mxu0
      %v978 = vadd.f32 0.0, %v977
      %v979 = vpop.f32.mrf.mxu0
      %v980 = vadd.f32 0.0, %v979
      %981 = vmatmul.bf16.gmra.mxu0 %v942
      %v982 = vpop.f32.mrf.mxu0
      %v983 = vadd.f32 0.0, %v982
      %v984 = vpop.f32.mrf.mxu0
      %v985 = vadd.f32 0.0, %v984
      %986 = vmatmul.bf16.gmra.mxu0 %v945
      %v987 = vpop.f32.mrf.mxu0
      %v988 = vadd.f32 0.0, %v987
      %v989 = vpop.f32.mrf.mxu0
      %v990 = vadd.f32 0.0, %v989
      %991 = vmatmul.bf16.gmra.mxu0 %v948
      %v992 = vpop.f32.mrf.mxu0
      %v993 = vadd.f32 0.0, %v992
      %v994 = vpop.f32.mrf.mxu0
      %v995 = vadd.f32 0.0, %v994
      %996 = vmatmul.bf16.gmra.mxu0 %v951
      %v997 = vpop.f32.mrf.mxu0
      %v998 = vadd.f32 0.0, %v997
      %v999 = vpop.f32.mrf.mxu0
      %v1000 = vadd.f32 0.0, %v999
      %1001 = vdwg.mxu0
      %1002 = vmatpush.bf16.msra.mxu0 0
      %1003 = vmatpush.bf16.msra.mxu0 0
      %1004 = vmatpush.bf16.msra.mxu0 0
      %1005 = vmatpush.bf16.msra.mxu0 0
      %1006 = vmatpush.bf16.msra.mxu0 0
      %1007 = vmatpush.bf16.msra.mxu0 0
      %1008 = vmatpush.bf16.msra.mxu0 %v923
      %1009 = vmatpush.bf16.msra.mxu0 %v921
      %1010 = vmatmul.bf16.gmra.mxu0 %v930
      %v1011 = vpop.f32.mrf.mxu0
      %v1012 = vadd.f32 0.0, %v1011
      %v1013 = vpop.f32.mrf.mxu0
      %v1014 = vadd.f32 0.0, %v1013
      %1015 = vmatmul.bf16.gmra.mxu0 %v933
      %v1016 = vpop.f32.mrf.mxu0
      %v1017 = vadd.f32 0.0, %v1016
      %v1018 = vpop.f32.mrf.mxu0
      %v1019 = vadd.f32 0.0, %v1018
      %1020 = vmatmul.bf16.gmra.mxu0 %v936
      %v1021 = vpop.f32.mrf.mxu0
      %v1022 = vadd.f32 0.0, %v1021
      %v1023 = vpop.f32.mrf.mxu0
      %v1024 = vadd.f32 0.0, %v1023
      %1025 = vmatmul.bf16.gmra.mxu0 %v939
      %v1026 = vpop.f32.mrf.mxu0
      %v1027 = vadd.f32 0.0, %v1026
      %v1028 = vpop.f32.mrf.mxu0
      %v1029 = vadd.f32 0.0, %v1028
      %1030 = vmatmul.bf16.gmra.mxu0 %v942
      %v1031 = vpop.f32.mrf.mxu0
      %v1032 = vadd.f32 0.0, %v1031
      %v1033 = vpop.f32.mrf.mxu0
      %v1034 = vadd.f32 0.0, %v1033
      %1035 = vmatmul.bf16.gmra.mxu0 %v945
      %v1036 = vpop.f32.mrf.mxu0
      %v1037 = vadd.f32 0.0, %v1036
      %v1038 = vpop.f32.mrf.mxu0
      %v1039 = vadd.f32 0.0, %v1038
      %1040 = vmatmul.bf16.gmra.mxu0 %v948
      %v1041 = vpop.f32.mrf.mxu0
      %v1042 = vadd.f32 0.0, %v1041
      %v1043 = vpop.f32.mrf.mxu0
      %v1044 = vadd.f32 0.0, %v1043
      %1045 = vmatmul.bf16.gmra.mxu0 %v951
      %v1046 = vpop.f32.mrf.mxu0
      %v1047 = vadd.f32 0.0, %v1046
      %v1048 = vpop.f32.mrf.mxu0
      %v1049 = vadd.f32 0.0, %v1048
      %1050 = vdwg.mxu0
      %v1051 = vld [vmem:[%s656] sm:$0x1]
      %v1053 = vperm.slane %v1051, 0
      %v1055 = vadd.f32 %v963, %v1053
      %v1056 = vadd.f32 %v965, %v1053
      %v1057 = vadd.f32 %v968, %v1053
      %v1058 = vadd.f32 %v970, %v1053
      %v1059 = vadd.f32 %v973, %v1053
      %v1060 = vadd.f32 %v975, %v1053
      %v1061 = vadd.f32 %v978, %v1053
      %v1062 = vadd.f32 %v980, %v1053
      %v1063 = vadd.f32 %v983, %v1053
      %v1064 = vadd.f32 %v985, %v1053
      %v1065 = vadd.f32 %v988, %v1053
      %v1066 = vadd.f32 %v990, %v1053
      %v1067 = vadd.f32 %v993, %v1053
      %v1068 = vadd.f32 %v995, %v1053
      %v1069 = vadd.f32 %v998, %v1053
      %v1070 = vadd.f32 %v1000, %v1053
      %v1071 = vpack.c.bf16 %v1056, %v1055
      %v1072 = vpack.c.bf16 %v1058, %v1057
      %v1073 = vpack.c.bf16 %v1060, %v1059
      %v1074 = vpack.c.bf16 %v1062, %v1061
      %v1075 = vpack.c.bf16 %v1064, %v1063
      %v1076 = vpack.c.bf16 %v1066, %v1065
      %v1077 = vpack.c.bf16 %v1068, %v1067
      %v1078 = vpack.c.bf16 %v1070, %v1069
      %v1079 = vperm.slane %v895, 0
      %1088 = vrot.lane.b32.xlu0 %v1071, 96
      %v1089 = vpop.permute.xlu0 %1088
      %1090 = vrot.lane.b32.xlu0 %v1072, 96
      %v1091 = vpop.permute.xlu0 %1090
      %1092 = vrot.lane.b32.xlu0 %v1073, 96
      %v1093 = vpop.permute.xlu0 %1092
      %1094 = vrot.lane.b32.xlu0 %v1074, 96
      %v1095 = vpop.permute.xlu0 %1094
      %1096 = vrot.lane.b32.xlu0 %v1075, 96
      %v1097 = vpop.permute.xlu0 %1096
      %1098 = vrot.lane.b32.xlu0 %v1076, 96
      %v1099 = vpop.permute.xlu0 %1098
      %1100 = vrot.lane.b32.xlu0 %v1077, 96
      %v1101 = vpop.permute.xlu0 %1100
      %1102 = vrot.lane.b32.xlu0 %v1078, 96
      %v1103 = vpop.permute.xlu0 %1102
      %vm1104 = vcmask 64512
      %v1106 = vsel %vm1104, %v1071, 0
      %v1109 = vsel %vm1104, %v1072, 0
      %v1112 = vsel %vm1104, %v1073, 0
      %v1115 = vsel %vm1104, %v1074, 0
      %v1118 = vsel %vm1104, %v1075, 0
      %v1121 = vsel %vm1104, %v1076, 0
      %v1124 = vsel %vm1104, %v1077, 0
      %v1127 = vsel %vm1104, %v1078, 0
      %v1130 = vsel %vm1104, %v1089, 0
      %v1133 = vsel %vm1104, %v1091, 0
      %v1136 = vsel %vm1104, %v1093, 0
      %v1139 = vsel %vm1104, %v1095, 0
      %v1142 = vsel %vm1104, %v1097, 0
      %v1145 = vsel %vm1104, %v1099, 0
      %v1148 = vsel %vm1104, %v1101, 0
      %v1151 = vsel %vm1104, %v1103, 0
      %1153 = vmatpush.bf16.xpose.msra.mxu0 %v1151
      %1154 = vmatpush.bf16.xpose.msra.mxu0 %v1148
      %1155 = vmatpush.bf16.xpose.msra.mxu0 %v1145
      %1156 = vmatpush.bf16.xpose.msra.mxu0 %v1142
      %1157 = vmatpush.bf16.xpose.msra.mxu0 %v1139
      %1158 = vmatpush.bf16.xpose.msra.mxu0 %v1136
      %1159 = vmatpush.bf16.xpose.msra.mxu0 %v1133
      %1160 = vmatpush.bf16.xpose.msra.mxu0 %v1130
      %1161 = vmatmul.bf16.gmra.mxu0 %v1106
      %v1162 = vpop.f32.mrf.mxu0
      %v1163 = vadd.f32 %v1079, %v1162
      %v1164 = vpop.f32.mrf.mxu0
      %v1165 = vadd.f32 %v1079, %v1164
      %1166 = vmatmul.bf16.gmra.mxu0 %v1109
      %v1167 = vpop.f32.mrf.mxu0
      %v1168 = vadd.f32 %v1079, %v1167
      %v1169 = vpop.f32.mrf.mxu0
      %v1170 = vadd.f32 %v1079, %v1169
      %1171 = vmatmul.bf16.gmra.mxu0 %v1112
      %v1172 = vpop.f32.mrf.mxu0
      %v1173 = vadd.f32 %v1079, %v1172
      %v1174 = vpop.f32.mrf.mxu0
      %v1175 = vadd.f32 %v1079, %v1174
      %1176 = vmatmul.bf16.gmra.mxu0 %v1115
      %v1177 = vpop.f32.mrf.mxu0
      %v1178 = vadd.f32 %v1079, %v1177
      %v1179 = vpop.f32.mrf.mxu0
      %v1180 = vadd.f32 %v1079, %v1179
      %1181 = vmatmul.bf16.gmra.mxu0 %v1118
      %v1182 = vpop.f32.mrf.mxu0
      %v1183 = vadd.f32 %v1079, %v1182
      %v1184 = vpop.f32.mrf.mxu0
      %v1185 = vadd.f32 %v1079, %v1184
      %1186 = vmatmul.bf16.gmra.mxu0 %v1121
      %v1187 = vpop.f32.mrf.mxu0
      %v1188 = vadd.f32 %v1079, %v1187
      %v1189 = vpop.f32.mrf.mxu0
      %v1190 = vadd.f32 %v1079, %v1189
      %1191 = vmatmul.bf16.gmra.mxu0 %v1124
      %v1192 = vpop.f32.mrf.mxu0
      %v1193 = vadd.f32 %v1079, %v1192
      %v1194 = vpop.f32.mrf.mxu0
      %v1195 = vadd.f32 %v1079, %v1194
      %1196 = vmatmul.bf16.gmra.mxu0 %v1127
      %v1197 = vpop.f32.mrf.mxu0
      %v1198 = vadd.f32 %v1079, %v1197
      %v1199 = vpop.f32.mrf.mxu0
      %v1200 = vadd.f32 %v1079, %v1199
      %1201 = vdwg.mxu0
      %1202 = vmax.xlane.f32.xlu0 %v1163
      %v1203 = vpop.xlane.xlu0 %1202
      %1204 = vmax.xlane.f32.xlu0 %v1165
      %v1205 = vpop.xlane.xlu0 %1204
      %1206 = vmax.xlane.f32.xlu0 %v1168
      %v1207 = vpop.xlane.xlu0 %1206
      %1208 = vmax.xlane.f32.xlu0 %v1170
      %v1209 = vpop.xlane.xlu0 %1208
      %1210 = vmax.xlane.f32.xlu0 %v1173
      %v1211 = vpop.xlane.xlu0 %1210
      %1212 = vmax.xlane.f32.xlu0 %v1175
      %v1213 = vpop.xlane.xlu0 %1212
      %1214 = vmax.xlane.f32.xlu0 %v1178
      %v1215 = vpop.xlane.xlu0 %1214
      %1216 = vmax.xlane.f32.xlu0 %v1180
      %v1217 = vpop.xlane.xlu0 %1216
      %1218 = vmax.xlane.f32.xlu0 %v1183
      %v1219 = vpop.xlane.xlu0 %1218
      %1220 = vmax.xlane.f32.xlu0 %v1185
      %v1221 = vpop.xlane.xlu0 %1220
      %1222 = vmax.xlane.f32.xlu0 %v1188
      %v1223 = vpop.xlane.xlu0 %1222
      %1224 = vmax.xlane.f32.xlu0 %v1190
      %v1225 = vpop.xlane.xlu0 %1224
      %1226 = vmax.xlane.f32.xlu0 %v1193
      %v1227 = vpop.xlane.xlu0 %1226
      %1228 = vmax.xlane.f32.xlu0 %v1195
      %v1229 = vpop.xlane.xlu0 %1228
      %1230 = vmax.xlane.f32.xlu0 %v1198
      %v1231 = vpop.xlane.xlu0 %1230
      %1232 = vmax.xlane.f32.xlu0 %v1200
      %v1233 = vpop.xlane.xlu0 %1232
      %v1234 = vsub.f32 %v1163, %v1203
      %v1235 = vsub.f32 %v1165, %v1205
      %v1236 = vsub.f32 %v1168, %v1207
      %v1237 = vsub.f32 %v1170, %v1209
      %v1238 = vsub.f32 %v1173, %v1211
      %v1239 = vsub.f32 %v1175, %v1213
      %v1240 = vsub.f32 %v1178, %v1215
      %v1241 = vsub.f32 %v1180, %v1217
      %v1242 = vsub.f32 %v1183, %v1219
      %v1243 = vsub.f32 %v1185, %v1221
      %v1244 = vsub.f32 %v1188, %v1223
      %v1245 = vsub.f32 %v1190, %v1225
      %v1246 = vsub.f32 %v1193, %v1227
      %v1247 = vsub.f32 %v1195, %v1229
      %v1248 = vsub.f32 %v1198, %v1231
      %v1249 = vsub.f32 %v1200, %v1233
      %v1250 = vmul.f32 %v1234, 1.442695
      %v1251 = vpow.pop %v1250
      %v1252 = vmul.f32 %v1235, 1.442695
      %v1253 = vpow.pop %v1252
      %v1254 = vmul.f32 %v1236, 1.442695
      %v1255 = vpow.pop %v1254
      %v1256 = vmul.f32 %v1237, 1.442695
      %v1257 = vpow.pop %v1256
      %v1258 = vmul.f32 %v1238, 1.442695
      %v1259 = vpow.pop %v1258
      %v1260 = vmul.f32 %v1239, 1.442695
      %v1261 = vpow.pop %v1260
      %v1262 = vmul.f32 %v1240, 1.442695
      %v1263 = vpow.pop %v1262
      %v1264 = vmul.f32 %v1241, 1.442695
      %v1265 = vpow.pop %v1264
      %v1266 = vmul.f32 %v1242, 1.442695
      %v1267 = vpow.pop %v1266
      %v1268 = vmul.f32 %v1243, 1.442695
      %v1269 = vpow.pop %v1268
      %v1270 = vmul.f32 %v1244, 1.442695
      %v1271 = vpow.pop %v1270
      %v1272 = vmul.f32 %v1245, 1.442695
      %v1273 = vpow.pop %v1272
      %v1274 = vmul.f32 %v1246, 1.442695
      %v1275 = vpow.pop %v1274
      %v1276 = vmul.f32 %v1247, 1.442695
      %v1277 = vpow.pop %v1276
      %v1278 = vmul.f32 %v1248, 1.442695
      %v1279 = vpow.pop %v1278
      %v1280 = vmul.f32 %v1249, 1.442695
      %v1281 = vpow.pop %v1280
      %1282 = vadd.xlane.f32.xlu0 %v1251
      %v1283 = vpop.xlane.xlu0 %1282
      %1284 = vadd.xlane.f32.xlu0 %v1253
      %v1285 = vpop.xlane.xlu0 %1284
      %1286 = vadd.xlane.f32.xlu0 %v1255
      %v1287 = vpop.xlane.xlu0 %1286
      %1288 = vadd.xlane.f32.xlu0 %v1257
      %v1289 = vpop.xlane.xlu0 %1288
      %1290 = vadd.xlane.f32.xlu0 %v1259
      %v1291 = vpop.xlane.xlu0 %1290
      %1292 = vadd.xlane.f32.xlu0 %v1261
      %v1293 = vpop.xlane.xlu0 %1292
      %1294 = vadd.xlane.f32.xlu0 %v1263
      %v1295 = vpop.xlane.xlu0 %1294
      %1296 = vadd.xlane.f32.xlu0 %v1265
      %v1297 = vpop.xlane.xlu0 %1296
      %1298 = vadd.xlane.f32.xlu0 %v1267
      %v1299 = vpop.xlane.xlu0 %1298
      %1300 = vadd.xlane.f32.xlu0 %v1269
      %v1301 = vpop.xlane.xlu0 %1300
      %1302 = vadd.xlane.f32.xlu0 %v1271
      %v1303 = vpop.xlane.xlu0 %1302
      %1304 = vadd.xlane.f32.xlu0 %v1273
      %v1305 = vpop.xlane.xlu0 %1304
      %1306 = vadd.xlane.f32.xlu0 %v1275
      %v1307 = vpop.xlane.xlu0 %1306
      %1308 = vadd.xlane.f32.xlu0 %v1277
      %v1309 = vpop.xlane.xlu0 %1308
      %1310 = vadd.xlane.f32.xlu0 %v1279
      %v1311 = vpop.xlane.xlu0 %1310
      %1312 = vadd.xlane.f32.xlu0 %v1281
      %v1313 = vpop.xlane.xlu0 %1312
      %v1314 = vpack.c.bf16 %v965, %v963
      %v1315 = vpack.c.bf16 %v970, %v968
      %v1316 = vpack.c.bf16 %v975, %v973
      %v1317 = vpack.c.bf16 %v980, %v978
      %v1318 = vpack.c.bf16 %v985, %v983
      %v1319 = vpack.c.bf16 %v990, %v988
      %v1320 = vpack.c.bf16 %v995, %v993
      %v1321 = vpack.c.bf16 %v1000, %v998
      %v1322 = vpack.c.bf16 %v1253, %v1251
      %v1323 = vpack.c.bf16 %v1257, %v1255
      %v1324 = vpack.c.bf16 %v1261, %v1259
      %v1325 = vpack.c.bf16 %v1265, %v1263
      %v1326 = vpack.c.bf16 %v1269, %v1267
      %v1327 = vpack.c.bf16 %v1273, %v1271
      %v1328 = vpack.c.bf16 %v1277, %v1275
      %v1329 = vpack.c.bf16 %v1281, %v1279
      %1338 = vrot.lane.b32.xlu0 %v1314, 64
      %v1339 = vpop.permute.xlu0 %1338
      %1340 = vrot.lane.b32.xlu0 %v1315, 64
      %v1341 = vpop.permute.xlu0 %1340
      %1342 = vrot.lane.b32.xlu0 %v1316, 64
      %v1343 = vpop.permute.xlu0 %1342
      %1344 = vrot.lane.b32.xlu0 %v1317, 64
      %v1345 = vpop.permute.xlu0 %1344
      %1346 = vrot.lane.b32.xlu0 %v1318, 64
      %v1347 = vpop.permute.xlu0 %1346
      %1348 = vrot.lane.b32.xlu0 %v1319, 64
      %v1349 = vpop.permute.xlu0 %1348
      %1350 = vrot.lane.b32.xlu0 %v1320, 64
      %v1351 = vpop.permute.xlu0 %1350
      %1352 = vrot.lane.b32.xlu0 %v1321, 64
      %v1353 = vpop.permute.xlu0 %1352
      %1362 = vmatpush.bf16.msra.mxu0 %v1353
      %1363 = vmatpush.bf16.msra.mxu0 %v1351
      %1364 = vmatpush.bf16.msra.mxu0 %v1349
      %1365 = vmatpush.bf16.msra.mxu0 %v1347
      %1366 = vmatpush.bf16.msra.mxu0 %v1345
      %1367 = vmatpush.bf16.msra.mxu0 %v1343
      %1368 = vmatpush.bf16.msra.mxu0 %v1341
      %1369 = vmatpush.bf16.msra.mxu0 %v1339
      %1370 = vmatmul.bf16.gmra.mxu0 %v1322
      %v1371 = vpop.f32.mrf.mxu0
      %v1372 = vadd.f32 0.0, %v1371
      %v1373 = vpop.f32.mrf.mxu0
      %v1374 = vadd.f32 0.0, %v1373
      %1375 = vmatmul.bf16.gmra.mxu0 %v1323
      %v1376 = vpop.f32.mrf.mxu0
      %v1377 = vadd.f32 0.0, %v1376
      %v1378 = vpop.f32.mrf.mxu0
      %v1379 = vadd.f32 0.0, %v1378
      %1380 = vmatmul.bf16.gmra.mxu0 %v1324
      %v1381 = vpop.f32.mrf.mxu0
      %v1382 = vadd.f32 0.0, %v1381
      %v1383 = vpop.f32.mrf.mxu0
      %v1384 = vadd.f32 0.0, %v1383
      %1385 = vmatmul.bf16.gmra.mxu0 %v1325
      %v1386 = vpop.f32.mrf.mxu0
      %v1387 = vadd.f32 0.0, %v1386
      %v1388 = vpop.f32.mrf.mxu0
      %v1389 = vadd.f32 0.0, %v1388
      %1390 = vmatmul.bf16.gmra.mxu0 %v1326
      %v1391 = vpop.f32.mrf.mxu0
      %v1392 = vadd.f32 0.0, %v1391
      %v1393 = vpop.f32.mrf.mxu0
      %v1394 = vadd.f32 0.0, %v1393
      %1395 = vmatmul.bf16.gmra.mxu0 %v1327
      %v1396 = vpop.f32.mrf.mxu0
      %v1397 = vadd.f32 0.0, %v1396
      %v1398 = vpop.f32.mrf.mxu0
      %v1399 = vadd.f32 0.0, %v1398
      %1400 = vmatmul.bf16.gmra.mxu0 %v1328
      %v1401 = vpop.f32.mrf.mxu0
      %v1402 = vadd.f32 0.0, %v1401
      %v1403 = vpop.f32.mrf.mxu0
      %v1404 = vadd.f32 0.0, %v1403
      %1405 = vmatmul.bf16.gmra.mxu0 %v1329
      %v1406 = vpop.f32.mrf.mxu0
      %v1407 = vadd.f32 0.0, %v1406
      %v1408 = vpop.f32.mrf.mxu0
      %v1409 = vadd.f32 0.0, %v1408
      %1410 = vdwg.mxu0
      %v1411 = vrcp.pop %v1283
      %v1412 = vrcp.pop %v1285
      %v1413 = vrcp.pop %v1287
      %v1414 = vrcp.pop %v1289
      %v1415 = vrcp.pop %v1291
      %v1416 = vrcp.pop %v1293
      %v1417 = vrcp.pop %v1295
      %v1418 = vrcp.pop %v1297
      %v1419 = vrcp.pop %v1299
      %v1420 = vrcp.pop %v1301
      %v1421 = vrcp.pop %v1303
      %v1422 = vrcp.pop %v1305
      %v1423 = vrcp.pop %v1307
      %v1424 = vrcp.pop %v1309
      %v1425 = vrcp.pop %v1311
      %v1426 = vrcp.pop %v1313
      %v1427 = vmul.f32 %v1372, %v1411
      %v1428 = vmul.f32 %v1374, %v1412
      %v1429 = vmul.f32 %v1377, %v1413
      %v1430 = vmul.f32 %v1379, %v1414
      %v1431 = vmul.f32 %v1382, %v1415
      %v1432 = vmul.f32 %v1384, %v1416
      %v1433 = vmul.f32 %v1387, %v1417
      %v1434 = vmul.f32 %v1389, %v1418
      %v1435 = vmul.f32 %v1392, %v1419
      %v1436 = vmul.f32 %v1394, %v1420
      %v1437 = vmul.f32 %v1397, %v1421
      %v1438 = vmul.f32 %v1399, %v1422
      %v1439 = vmul.f32 %v1402, %v1423
      %v1440 = vmul.f32 %v1404, %v1424
      %v1441 = vmul.f32 %v1407, %v1425
      %v1442 = vmul.f32 %v1409, %v1426
      %v1443 = vadd.f32 %v1427, 0.0
      %v1444 = vadd.f32 %v1428, 0.0
      %v1445 = vadd.f32 %v1429, 0.0
      %v1446 = vadd.f32 %v1430, 0.0
      %v1447 = vadd.f32 %v1431, 0.0
      %v1448 = vadd.f32 %v1432, 0.0
      %v1449 = vadd.f32 %v1433, 0.0
      %v1450 = vadd.f32 %v1434, 0.0
      %v1451 = vadd.f32 %v1435, 0.0
      %v1452 = vadd.f32 %v1436, 0.0
      %v1453 = vadd.f32 %v1437, 0.0
      %v1454 = vadd.f32 %v1438, 0.0
      %v1455 = vadd.f32 %v1439, 0.0
      %v1456 = vadd.f32 %v1440, 0.0
      %v1457 = vadd.f32 %v1441, 0.0
      %v1458 = vadd.f32 %v1442, 0.0
      %1459 = vrot.lane.b32.xlu0 %v1071, 120
      %v1460 = vpop.permute.xlu0 %1459
      %1461 = vrot.lane.b32.xlu0 %v1072, 120
      %v1462 = vpop.permute.xlu0 %1461
      %1463 = vrot.lane.b32.xlu0 %v1073, 120
      %v1464 = vpop.permute.xlu0 %1463
      %1465 = vrot.lane.b32.xlu0 %v1074, 120
      %v1466 = vpop.permute.xlu0 %1465
      %1467 = vrot.lane.b32.xlu0 %v1075, 120
      %v1468 = vpop.permute.xlu0 %1467
      %1469 = vrot.lane.b32.xlu0 %v1076, 120
      %v1470 = vpop.permute.xlu0 %1469
      %1471 = vrot.lane.b32.xlu0 %v1077, 120
      %v1472 = vpop.permute.xlu0 %1471
      %1473 = vrot.lane.b32.xlu0 %v1078, 120
      %v1474 = vpop.permute.xlu0 %1473
      %1475 = vrot.lane.b32.xlu0 %v1071, 88
      %v1476 = vpop.permute.xlu0 %1475
      %1477 = vrot.lane.b32.xlu0 %v1072, 88
      %v1478 = vpop.permute.xlu0 %1477
      %1479 = vrot.lane.b32.xlu0 %v1073, 88
      %v1480 = vpop.permute.xlu0 %1479
      %1481 = vrot.lane.b32.xlu0 %v1074, 88
      %v1482 = vpop.permute.xlu0 %1481
      %1483 = vrot.lane.b32.xlu0 %v1075, 88
      %v1484 = vpop.permute.xlu0 %1483
      %1485 = vrot.lane.b32.xlu0 %v1076, 88
      %v1486 = vpop.permute.xlu0 %1485
      %1487 = vrot.lane.b32.xlu0 %v1077, 88
      %v1488 = vpop.permute.xlu0 %1487
      %1489 = vrot.lane.b32.xlu0 %v1078, 88
      %v1490 = vpop.permute.xlu0 %1489
      %v1492 = vsel %vm1104, %v1460, 0
      %v1495 = vsel %vm1104, %v1462, 0
      %v1498 = vsel %vm1104, %v1464, 0
      %v1501 = vsel %vm1104, %v1466, 0
      %v1504 = vsel %vm1104, %v1468, 0
      %v1507 = vsel %vm1104, %v1470, 0
      %v1510 = vsel %vm1104, %v1472, 0
      %v1513 = vsel %vm1104, %v1474, 0
      %v1516 = vsel %vm1104, %v1476, 0
      %v1519 = vsel %vm1104, %v1478, 0
      %v1522 = vsel %vm1104, %v1480, 0
      %v1525 = vsel %vm1104, %v1482, 0
      %v1528 = vsel %vm1104, %v1484, 0
      %v1531 = vsel %vm1104, %v1486, 0
      %v1534 = vsel %vm1104, %v1488, 0
      %v1537 = vsel %vm1104, %v1490, 0
      %1539 = vmatpush.bf16.xpose.msra.mxu0 %v1537
      %1540 = vmatpush.bf16.xpose.msra.mxu0 %v1534
      %1541 = vmatpush.bf16.xpose.msra.mxu0 %v1531
      %1542 = vmatpush.bf16.xpose.msra.mxu0 %v1528
      %1543 = vmatpush.bf16.xpose.msra.mxu0 %v1525
      %1544 = vmatpush.bf16.xpose.msra.mxu0 %v1522
      %1545 = vmatpush.bf16.xpose.msra.mxu0 %v1519
      %1546 = vmatpush.bf16.xpose.msra.mxu0 %v1516
      %1547 = vmatmul.bf16.gmra.mxu0 %v1492
      %v1548 = vpop.f32.mrf.mxu0
      %v1549 = vadd.f32 %v1079, %v1548
      %v1550 = vpop.f32.mrf.mxu0
      %v1551 = vadd.f32 %v1079, %v1550
      %1552 = vmatmul.bf16.gmra.mxu0 %v1495
      %v1553 = vpop.f32.mrf.mxu0
      %v1554 = vadd.f32 %v1079, %v1553
      %v1555 = vpop.f32.mrf.mxu0
      %v1556 = vadd.f32 %v1079, %v1555
      %1557 = vmatmul.bf16.gmra.mxu0 %v1498
      %v1558 = vpop.f32.mrf.mxu0
      %v1559 = vadd.f32 %v1079, %v1558
      %v1560 = vpop.f32.mrf.mxu0
      %v1561 = vadd.f32 %v1079, %v1560
      %1562 = vmatmul.bf16.gmra.mxu0 %v1501
      %v1563 = vpop.f32.mrf.mxu0
      %v1564 = vadd.f32 %v1079, %v1563
      %v1565 = vpop.f32.mrf.mxu0
      %v1566 = vadd.f32 %v1079, %v1565
      %1567 = vmatmul.bf16.gmra.mxu0 %v1504
      %v1568 = vpop.f32.mrf.mxu0
      %v1569 = vadd.f32 %v1079, %v1568
      %v1570 = vpop.f32.mrf.mxu0
      %v1571 = vadd.f32 %v1079, %v1570
      %1572 = vmatmul.bf16.gmra.mxu0 %v1507
      %v1573 = vpop.f32.mrf.mxu0
      %v1574 = vadd.f32 %v1079, %v1573
      %v1575 = vpop.f32.mrf.mxu0
      %v1576 = vadd.f32 %v1079, %v1575
      %1577 = vmatmul.bf16.gmra.mxu0 %v1510
      %v1578 = vpop.f32.mrf.mxu0
      %v1579 = vadd.f32 %v1079, %v1578
      %v1580 = vpop.f32.mrf.mxu0
      %v1581 = vadd.f32 %v1079, %v1580
      %1582 = vmatmul.bf16.gmra.mxu0 %v1513
      %v1583 = vpop.f32.mrf.mxu0
      %v1584 = vadd.f32 %v1079, %v1583
      %v1585 = vpop.f32.mrf.mxu0
      %v1586 = vadd.f32 %v1079, %v1585
      %1587 = vdwg.mxu0
      %1588 = vmax.xlane.f32.xlu0 %v1549
      %v1589 = vpop.xlane.xlu0 %1588
      %1590 = vmax.xlane.f32.xlu0 %v1551
      %v1591 = vpop.xlane.xlu0 %1590
      %1592 = vmax.xlane.f32.xlu0 %v1554
      %v1593 = vpop.xlane.xlu0 %1592
      %1594 = vmax.xlane.f32.xlu0 %v1556
      %v1595 = vpop.xlane.xlu0 %1594
      %1596 = vmax.xlane.f32.xlu0 %v1559
      %v1597 = vpop.xlane.xlu0 %1596
      %1598 = vmax.xlane.f32.xlu0 %v1561
      %v1599 = vpop.xlane.xlu0 %1598
      %1600 = vmax.xlane.f32.xlu0 %v1564
      %v1601 = vpop.xlane.xlu0 %1600
      %1602 = vmax.xlane.f32.xlu0 %v1566
      %v1603 = vpop.xlane.xlu0 %1602
      %1604 = vmax.xlane.f32.xlu0 %v1569
      %v1605 = vpop.xlane.xlu0 %1604
      %1606 = vmax.xlane.f32.xlu0 %v1571
      %v1607 = vpop.xlane.xlu0 %1606
      %1608 = vmax.xlane.f32.xlu0 %v1574
      %v1609 = vpop.xlane.xlu0 %1608
      %1610 = vmax.xlane.f32.xlu0 %v1576
      %v1611 = vpop.xlane.xlu0 %1610
      %1612 = vmax.xlane.f32.xlu0 %v1579
      %v1613 = vpop.xlane.xlu0 %1612
      %1614 = vmax.xlane.f32.xlu0 %v1581
      %v1615 = vpop.xlane.xlu0 %1614
      %1616 = vmax.xlane.f32.xlu0 %v1584
      %v1617 = vpop.xlane.xlu0 %1616
      %1618 = vmax.xlane.f32.xlu0 %v1586
      %v1619 = vpop.xlane.xlu0 %1618
      %v1620 = vsub.f32 %v1549, %v1589
      %v1621 = vsub.f32 %v1551, %v1591
      %v1622 = vsub.f32 %v1554, %v1593
      %v1623 = vsub.f32 %v1556, %v1595
      %v1624 = vsub.f32 %v1559, %v1597
      %v1625 = vsub.f32 %v1561, %v1599
      %v1626 = vsub.f32 %v1564, %v1601
      %v1627 = vsub.f32 %v1566, %v1603
      %v1628 = vsub.f32 %v1569, %v1605
      %v1629 = vsub.f32 %v1571, %v1607
      %v1630 = vsub.f32 %v1574, %v1609
      %v1631 = vsub.f32 %v1576, %v1611
      %v1632 = vsub.f32 %v1579, %v1613
      %v1633 = vsub.f32 %v1581, %v1615
      %v1634 = vsub.f32 %v1584, %v1617
      %v1635 = vsub.f32 %v1586, %v1619
      %v1636 = vmul.f32 %v1620, 1.442695
      %v1637 = vpow.pop %v1636
      %v1638 = vmul.f32 %v1621, 1.442695
      %v1639 = vpow.pop %v1638
      %v1640 = vmul.f32 %v1622, 1.442695
      %v1641 = vpow.pop %v1640
      %v1642 = vmul.f32 %v1623, 1.442695
      %v1643 = vpow.pop %v1642
      %v1644 = vmul.f32 %v1624, 1.442695
      %v1645 = vpow.pop %v1644
      %v1646 = vmul.f32 %v1625, 1.442695
      %v1647 = vpow.pop %v1646
      %v1648 = vmul.f32 %v1626, 1.442695
      %v1649 = vpow.pop %v1648
      %v1650 = vmul.f32 %v1627, 1.442695
      %v1651 = vpow.pop %v1650
      %v1652 = vmul.f32 %v1628, 1.442695
      %v1653 = vpow.pop %v1652
      %v1654 = vmul.f32 %v1629, 1.442695
      %v1655 = vpow.pop %v1654
      %v1656 = vmul.f32 %v1630, 1.442695
      %v1657 = vpow.pop %v1656
      %v1658 = vmul.f32 %v1631, 1.442695
      %v1659 = vpow.pop %v1658
      %v1660 = vmul.f32 %v1632, 1.442695
      %v1661 = vpow.pop %v1660
      %v1662 = vmul.f32 %v1633, 1.442695
      %v1663 = vpow.pop %v1662
      %v1664 = vmul.f32 %v1634, 1.442695
      %v1665 = vpow.pop %v1664
      %v1666 = vmul.f32 %v1635, 1.442695
      %v1667 = vpow.pop %v1666
      %1668 = vadd.xlane.f32.xlu0 %v1637
      %v1669 = vpop.xlane.xlu0 %1668
      %1670 = vadd.xlane.f32.xlu0 %v1639
      %v1671 = vpop.xlane.xlu0 %1670
      %1672 = vadd.xlane.f32.xlu0 %v1641
      %v1673 = vpop.xlane.xlu0 %1672
      %1674 = vadd.xlane.f32.xlu0 %v1643
      %v1675 = vpop.xlane.xlu0 %1674
      %1676 = vadd.xlane.f32.xlu0 %v1645
      %v1677 = vpop.xlane.xlu0 %1676
      %1678 = vadd.xlane.f32.xlu0 %v1647
      %v1679 = vpop.xlane.xlu0 %1678
      %1680 = vadd.xlane.f32.xlu0 %v1649
      %v1681 = vpop.xlane.xlu0 %1680
      %1682 = vadd.xlane.f32.xlu0 %v1651
      %v1683 = vpop.xlane.xlu0 %1682
      %1684 = vadd.xlane.f32.xlu0 %v1653
      %v1685 = vpop.xlane.xlu0 %1684
      %1686 = vadd.xlane.f32.xlu0 %v1655
      %v1687 = vpop.xlane.xlu0 %1686
      %1688 = vadd.xlane.f32.xlu0 %v1657
      %v1689 = vpop.xlane.xlu0 %1688
      %1690 = vadd.xlane.f32.xlu0 %v1659
      %v1691 = vpop.xlane.xlu0 %1690
      %1692 = vadd.xlane.f32.xlu0 %v1661
      %v1693 = vpop.xlane.xlu0 %1692
      %1694 = vadd.xlane.f32.xlu0 %v1663
      %v1695 = vpop.xlane.xlu0 %1694
      %1696 = vadd.xlane.f32.xlu0 %v1665
      %v1697 = vpop.xlane.xlu0 %1696
      %1698 = vadd.xlane.f32.xlu0 %v1667
      %v1699 = vpop.xlane.xlu0 %1698
      %v1700 = vpack.c.bf16 %v1639, %v1637
      %v1701 = vpack.c.bf16 %v1643, %v1641
      %v1702 = vpack.c.bf16 %v1647, %v1645
      %v1703 = vpack.c.bf16 %v1651, %v1649
      %v1704 = vpack.c.bf16 %v1655, %v1653
      %v1705 = vpack.c.bf16 %v1659, %v1657
      %v1706 = vpack.c.bf16 %v1663, %v1661
      %v1707 = vpack.c.bf16 %v1667, %v1665
      %1708 = vrot.lane.b32.xlu0 %v1314, 32
      %v1709 = vpop.permute.xlu0 %1708
      %1710 = vrot.lane.b32.xlu0 %v1315, 32
      %v1711 = vpop.permute.xlu0 %1710
      %1712 = vrot.lane.b32.xlu0 %v1316, 32
      %v1713 = vpop.permute.xlu0 %1712
      %1714 = vrot.lane.b32.xlu0 %v1317, 32
      %v1715 = vpop.permute.xlu0 %1714
      %1716 = vrot.lane.b32.xlu0 %v1318, 32
      %v1717 = vpop.permute.xlu0 %1716
      %1718 = vrot.lane.b32.xlu0 %v1319, 32
      %v1719 = vpop.permute.xlu0 %1718
      %1720 = vrot.lane.b32.xlu0 %v1320, 32
      %v1721 = vpop.permute.xlu0 %1720
      %1722 = vrot.lane.b32.xlu0 %v1321, 32
      %v1723 = vpop.permute.xlu0 %1722
      %1732 = vmatpush.bf16.msra.mxu0 %v1723
      %1733 = vmatpush.bf16.msra.mxu0 %v1721
      %1734 = vmatpush.bf16.msra.mxu0 %v1719
      %1735 = vmatpush.bf16.msra.mxu0 %v1717
      %1736 = vmatpush.bf16.msra.mxu0 %v1715
      %1737 = vmatpush.bf16.msra.mxu0 %v1713
      %1738 = vmatpush.bf16.msra.mxu0 %v1711
      %1739 = vmatpush.bf16.msra.mxu0 %v1709
      %1740 = vmatmul.bf16.gmra.mxu0 %v1700
      %v1741 = vpop.f32.mrf.mxu0
      %v1742 = vadd.f32 0.0, %v1741
      %v1743 = vpop.f32.mrf.mxu0
      %v1744 = vadd.f32 0.0, %v1743
      %1745 = vmatmul.bf16.gmra.mxu0 %v1701
      %v1746 = vpop.f32.mrf.mxu0
      %v1747 = vadd.f32 0.0, %v1746
      %v1748 = vpop.f32.mrf.mxu0
      %v1749 = vadd.f32 0.0, %v1748
      %1750 = vmatmul.bf16.gmra.mxu0 %v1702
      %v1751 = vpop.f32.mrf.mxu0
      %v1752 = vadd.f32 0.0, %v1751
      %v1753 = vpop.f32.mrf.mxu0
      %v1754 = vadd.f32 0.0, %v1753
      %1755 = vmatmul.bf16.gmra.mxu0 %v1703
      %v1756 = vpop.f32.mrf.mxu0
      %v1757 = vadd.f32 0.0, %v1756
      %v1758 = vpop.f32.mrf.mxu0
      %v1759 = vadd.f32 0.0, %v1758
      %1760 = vmatmul.bf16.gmra.mxu0 %v1704
      %v1761 = vpop.f32.mrf.mxu0
      %v1762 = vadd.f32 0.0, %v1761
      %v1763 = vpop.f32.mrf.mxu0
      %v1764 = vadd.f32 0.0, %v1763
      %1765 = vmatmul.bf16.gmra.mxu0 %v1705
      %v1766 = vpop.f32.mrf.mxu0
      %v1767 = vadd.f32 0.0, %v1766
      %v1768 = vpop.f32.mrf.mxu0
      %v1769 = vadd.f32 0.0, %v1768
      %1770 = vmatmul.bf16.gmra.mxu0 %v1706
      %v1771 = vpop.f32.mrf.mxu0
      %v1772 = vadd.f32 0.0, %v1771
      %v1773 = vpop.f32.mrf.mxu0
      %v1774 = vadd.f32 0.0, %v1773
      %1775 = vmatmul.bf16.gmra.mxu0 %v1707
      %v1776 = vpop.f32.mrf.mxu0
      %v1777 = vadd.f32 0.0, %v1776
      %v1778 = vpop.f32.mrf.mxu0
      %v1779 = vadd.f32 0.0, %v1778
      %1780 = vdwg.mxu0
      %v1781 = vrcp.pop %v1669
      %v1782 = vrcp.pop %v1671
      %v1783 = vrcp.pop %v1673
      %v1784 = vrcp.pop %v1675
      %v1785 = vrcp.pop %v1677
      %v1786 = vrcp.pop %v1679
      %v1787 = vrcp.pop %v1681
      %v1788 = vrcp.pop %v1683
      %v1789 = vrcp.pop %v1685
      %v1790 = vrcp.pop %v1687
      %v1791 = vrcp.pop %v1689
      %v1792 = vrcp.pop %v1691
      %v1793 = vrcp.pop %v1693
      %v1794 = vrcp.pop %v1695
      %v1795 = vrcp.pop %v1697
      %v1796 = vrcp.pop %v1699
      %v1797 = vmul.f32 %v1742, %v1781
      %v1798 = vmul.f32 %v1744, %v1782
      %v1799 = vmul.f32 %v1747, %v1783
      %v1800 = vmul.f32 %v1749, %v1784
      %v1801 = vmul.f32 %v1752, %v1785
      %v1802 = vmul.f32 %v1754, %v1786
      %v1803 = vmul.f32 %v1757, %v1787
      %v1804 = vmul.f32 %v1759, %v1788
      %v1805 = vmul.f32 %v1762, %v1789
      %v1806 = vmul.f32 %v1764, %v1790
      %v1807 = vmul.f32 %v1767, %v1791
      %v1808 = vmul.f32 %v1769, %v1792
      %v1809 = vmul.f32 %v1772, %v1793
      %v1810 = vmul.f32 %v1774, %v1794
      %v1811 = vmul.f32 %v1777, %v1795
      %v1812 = vmul.f32 %v1779, %v1796
      %v1813 = vadd.f32 %v1443, %v1797
      %v1814 = vadd.f32 %v1444, %v1798
      %v1815 = vadd.f32 %v1445, %v1799
      %v1816 = vadd.f32 %v1446, %v1800
      %v1817 = vadd.f32 %v1447, %v1801
      %v1818 = vadd.f32 %v1448, %v1802
      %v1819 = vadd.f32 %v1449, %v1803
      %v1820 = vadd.f32 %v1450, %v1804
      %v1821 = vadd.f32 %v1451, %v1805
      %v1822 = vadd.f32 %v1452, %v1806
      %v1823 = vadd.f32 %v1453, %v1807
      %v1824 = vadd.f32 %v1454, %v1808
      %v1825 = vadd.f32 %v1455, %v1809
      %v1826 = vadd.f32 %v1456, %v1810
      %v1827 = vadd.f32 %v1457, %v1811
      %v1828 = vadd.f32 %v1458, %v1812
      %1829 = vrot.lane.b32.xlu0 %v1071, 112
      %v1830 = vpop.permute.xlu0 %1829
      %1831 = vrot.lane.b32.xlu0 %v1072, 112
      %v1832 = vpop.permute.xlu0 %1831
      %1833 = vrot.lane.b32.xlu0 %v1073, 112
      %v1834 = vpop.permute.xlu0 %1833
      %1835 = vrot.lane.b32.xlu0 %v1074, 112
      %v1836 = vpop.permute.xlu0 %1835
      %1837 = vrot.lane.b32.xlu0 %v1075, 112
      %v1838 = vpop.permute.xlu0 %1837
      %1839 = vrot.lane.b32.xlu0 %v1076, 112
      %v1840 = vpop.permute.xlu0 %1839
      %1841 = vrot.lane.b32.xlu0 %v1077, 112
      %v1842 = vpop.permute.xlu0 %1841
      %1843 = vrot.lane.b32.xlu0 %v1078, 112
      %v1844 = vpop.permute.xlu0 %1843
      %1845 = vrot.lane.b32.xlu0 %v1071, 80
      %v1846 = vpop.permute.xlu0 %1845
      %1847 = vrot.lane.b32.xlu0 %v1072, 80
      %v1848 = vpop.permute.xlu0 %1847
      %1849 = vrot.lane.b32.xlu0 %v1073, 80
      %v1850 = vpop.permute.xlu0 %1849
      %1851 = vrot.lane.b32.xlu0 %v1074, 80
      %v1852 = vpop.permute.xlu0 %1851
      %1853 = vrot.lane.b32.xlu0 %v1075, 80
      %v1854 = vpop.permute.xlu0 %1853
      %1855 = vrot.lane.b32.xlu0 %v1076, 80
      %v1856 = vpop.permute.xlu0 %1855
      %1857 = vrot.lane.b32.xlu0 %v1077, 80
      %v1858 = vpop.permute.xlu0 %1857
      %1859 = vrot.lane.b32.xlu0 %v1078, 80
      %v1860 = vpop.permute.xlu0 %1859
      %v1862 = vsel %vm1104, %v1830, 0
      %v1865 = vsel %vm1104, %v1832, 0
      %v1868 = vsel %vm1104, %v1834, 0
      %v1871 = vsel %vm1104, %v1836, 0
      %v1874 = vsel %vm1104, %v1838, 0
      %v1877 = vsel %vm1104, %v1840, 0
      %v1880 = vsel %vm1104, %v1842, 0
      %v1883 = vsel %vm1104, %v1844, 0
      %v1886 = vsel %vm1104, %v1846, 0
      %v1889 = vsel %vm1104, %v1848, 0
      %v1892 = vsel %vm1104, %v1850, 0
      %v1895 = vsel %vm1104, %v1852, 0
      %v1898 = vsel %vm1104, %v1854, 0
      %v1901 = vsel %vm1104, %v1856, 0
      %v1904 = vsel %vm1104, %v1858, 0
      %v1907 = vsel %vm1104, %v1860, 0
      %1909 = vmatpush.bf16.xpose.msra.mxu0 %v1907
      %1910 = vmatpush.bf16.xpose.msra.mxu0 %v1904
      %1911 = vmatpush.bf16.xpose.msra.mxu0 %v1901
      %1912 = vmatpush.bf16.xpose.msra.mxu0 %v1898
      %1913 = vmatpush.bf16.xpose.msra.mxu0 %v1895
      %1914 = vmatpush.bf16.xpose.msra.mxu0 %v1892
      %1915 = vmatpush.bf16.xpose.msra.mxu0 %v1889
      %1916 = vmatpush.bf16.xpose.msra.mxu0 %v1886
      %1917 = vmatmul.bf16.gmra.mxu0 %v1862
      %v1918 = vpop.f32.mrf.mxu0
      %v1919 = vadd.f32 %v1079, %v1918
      %v1920 = vpop.f32.mrf.mxu0
      %v1921 = vadd.f32 %v1079, %v1920
      %1922 = vmatmul.bf16.gmra.mxu0 %v1865
      %v1923 = vpop.f32.mrf.mxu0
      %v1924 = vadd.f32 %v1079, %v1923
      %v1925 = vpop.f32.mrf.mxu0
      %v1926 = vadd.f32 %v1079, %v1925
      %1927 = vmatmul.bf16.gmra.mxu0 %v1868
      %v1928 = vpop.f32.mrf.mxu0
      %v1929 = vadd.f32 %v1079, %v1928
      %v1930 = vpop.f32.mrf.mxu0
      %v1931 = vadd.f32 %v1079, %v1930
      %1932 = vmatmul.bf16.gmra.mxu0 %v1871
      %v1933 = vpop.f32.mrf.mxu0
      %v1934 = vadd.f32 %v1079, %v1933
      %v1935 = vpop.f32.mrf.mxu0
      %v1936 = vadd.f32 %v1079, %v1935
      %1937 = vmatmul.bf16.gmra.mxu0 %v1874
      %v1938 = vpop.f32.mrf.mxu0
      %v1939 = vadd.f32 %v1079, %v1938
      %v1940 = vpop.f32.mrf.mxu0
      %v1941 = vadd.f32 %v1079, %v1940
      %1942 = vmatmul.bf16.gmra.mxu0 %v1877
      %v1943 = vpop.f32.mrf.mxu0
      %v1944 = vadd.f32 %v1079, %v1943
      %v1945 = vpop.f32.mrf.mxu0
      %v1946 = vadd.f32 %v1079, %v1945
      %1947 = vmatmul.bf16.gmra.mxu0 %v1880
      %v1948 = vpop.f32.mrf.mxu0
      %v1949 = vadd.f32 %v1079, %v1948
      %v1950 = vpop.f32.mrf.mxu0
      %v1951 = vadd.f32 %v1079, %v1950
      %1952 = vmatmul.bf16.gmra.mxu0 %v1883
      %v1953 = vpop.f32.mrf.mxu0
      %v1954 = vadd.f32 %v1079, %v1953
      %v1955 = vpop.f32.mrf.mxu0
      %v1956 = vadd.f32 %v1079, %v1955
      %1957 = vdwg.mxu0
      %1958 = vmax.xlane.f32.xlu0 %v1919
      %v1959 = vpop.xlane.xlu0 %1958
      %1960 = vmax.xlane.f32.xlu0 %v1921
      %v1961 = vpop.xlane.xlu0 %1960
      %1962 = vmax.xlane.f32.xlu0 %v1924
      %v1963 = vpop.xlane.xlu0 %1962
      %1964 = vmax.xlane.f32.xlu0 %v1926
      %v1965 = vpop.xlane.xlu0 %1964
      %1966 = vmax.xlane.f32.xlu0 %v1929
      %v1967 = vpop.xlane.xlu0 %1966
      %1968 = vmax.xlane.f32.xlu0 %v1931
      %v1969 = vpop.xlane.xlu0 %1968
      %1970 = vmax.xlane.f32.xlu0 %v1934
      %v1971 = vpop.xlane.xlu0 %1970
      %1972 = vmax.xlane.f32.xlu0 %v1936
      %v1973 = vpop.xlane.xlu0 %1972
      %1974 = vmax.xlane.f32.xlu0 %v1939
      %v1975 = vpop.xlane.xlu0 %1974
      %1976 = vmax.xlane.f32.xlu0 %v1941
      %v1977 = vpop.xlane.xlu0 %1976
      %1978 = vmax.xlane.f32.xlu0 %v1944
      %v1979 = vpop.xlane.xlu0 %1978
      %1980 = vmax.xlane.f32.xlu0 %v1946
      %v1981 = vpop.xlane.xlu0 %1980
      %1982 = vmax.xlane.f32.xlu0 %v1949
      %v1983 = vpop.xlane.xlu0 %1982
      %1984 = vmax.xlane.f32.xlu0 %v1951
      %v1985 = vpop.xlane.xlu0 %1984
      %1986 = vmax.xlane.f32.xlu0 %v1954
      %v1987 = vpop.xlane.xlu0 %1986
      %1988 = vmax.xlane.f32.xlu0 %v1956
      %v1989 = vpop.xlane.xlu0 %1988
      %v1990 = vsub.f32 %v1919, %v1959
      %v1991 = vsub.f32 %v1921, %v1961
      %v1992 = vsub.f32 %v1924, %v1963
      %v1993 = vsub.f32 %v1926, %v1965
      %v1994 = vsub.f32 %v1929, %v1967
      %v1995 = vsub.f32 %v1931, %v1969
      %v1996 = vsub.f32 %v1934, %v1971
      %v1997 = vsub.f32 %v1936, %v1973
      %v1998 = vsub.f32 %v1939, %v1975
      %v1999 = vsub.f32 %v1941, %v1977
      %v2000 = vsub.f32 %v1944, %v1979
      %v2001 = vsub.f32 %v1946, %v1981
      %v2002 = vsub.f32 %v1949, %v1983
      %v2003 = vsub.f32 %v1951, %v1985
      %v2004 = vsub.f32 %v1954, %v1987
      %v2005 = vsub.f32 %v1956, %v1989
      %v2006 = vmul.f32 %v1990, 1.442695
      %v2007 = vpow.pop %v2006
      %v2008 = vmul.f32 %v1991, 1.442695
      %v2009 = vpow.pop %v2008
      %v2010 = vmul.f32 %v1992, 1.442695
      %v2011 = vpow.pop %v2010
      %v2012 = vmul.f32 %v1993, 1.442695
      %v2013 = vpow.pop %v2012
      %v2014 = vmul.f32 %v1994, 1.442695
      %v2015 = vpow.pop %v2014
      %v2016 = vmul.f32 %v1995, 1.442695
      %v2017 = vpow.pop %v2016
      %v2018 = vmul.f32 %v1996, 1.442695
      %v2019 = vpow.pop %v2018
      %v2020 = vmul.f32 %v1997, 1.442695
      %v2021 = vpow.pop %v2020
      %v2022 = vmul.f32 %v1998, 1.442695
      %v2023 = vpow.pop %v2022
      %v2024 = vmul.f32 %v1999, 1.442695
      %v2025 = vpow.pop %v2024
      %v2026 = vmul.f32 %v2000, 1.442695
      %v2027 = vpow.pop %v2026
      %v2028 = vmul.f32 %v2001, 1.442695
      %v2029 = vpow.pop %v2028
      %v2030 = vmul.f32 %v2002, 1.442695
      %v2031 = vpow.pop %v2030
      %v2032 = vmul.f32 %v2003, 1.442695
      %v2033 = vpow.pop %v2032
      %v2034 = vmul.f32 %v2004, 1.442695
      %v2035 = vpow.pop %v2034
      %v2036 = vmul.f32 %v2005, 1.442695
      %v2037 = vpow.pop %v2036
      %2038 = vadd.xlane.f32.xlu0 %v2007
      %v2039 = vpop.xlane.xlu0 %2038
      %2040 = vadd.xlane.f32.xlu0 %v2009
      %v2041 = vpop.xlane.xlu0 %2040
      %2042 = vadd.xlane.f32.xlu0 %v2011
      %v2043 = vpop.xlane.xlu0 %2042
      %2044 = vadd.xlane.f32.xlu0 %v2013
      %v2045 = vpop.xlane.xlu0 %2044
      %2046 = vadd.xlane.f32.xlu0 %v2015
      %v2047 = vpop.xlane.xlu0 %2046
      %2048 = vadd.xlane.f32.xlu0 %v2017
      %v2049 = vpop.xlane.xlu0 %2048
      %2050 = vadd.xlane.f32.xlu0 %v2019
      %v2051 = vpop.xlane.xlu0 %2050
      %2052 = vadd.xlane.f32.xlu0 %v2021
      %v2053 = vpop.xlane.xlu0 %2052
      %2054 = vadd.xlane.f32.xlu0 %v2023
      %v2055 = vpop.xlane.xlu0 %2054
      %2056 = vadd.xlane.f32.xlu0 %v2025
      %v2057 = vpop.xlane.xlu0 %2056
      %2058 = vadd.xlane.f32.xlu0 %v2027
      %v2059 = vpop.xlane.xlu0 %2058
      %2060 = vadd.xlane.f32.xlu0 %v2029
      %v2061 = vpop.xlane.xlu0 %2060
      %2062 = vadd.xlane.f32.xlu0 %v2031
      %v2063 = vpop.xlane.xlu0 %2062
      %2064 = vadd.xlane.f32.xlu0 %v2033
      %v2065 = vpop.xlane.xlu0 %2064
      %2066 = vadd.xlane.f32.xlu0 %v2035
      %v2067 = vpop.xlane.xlu0 %2066
      %2068 = vadd.xlane.f32.xlu0 %v2037
      %v2069 = vpop.xlane.xlu0 %2068
      %v2070 = vpack.c.bf16 %v1014, %v1012
      %v2071 = vpack.c.bf16 %v1019, %v1017
      %v2072 = vpack.c.bf16 %v1024, %v1022
      %v2073 = vpack.c.bf16 %v1029, %v1027
      %v2074 = vpack.c.bf16 %v1034, %v1032
      %v2075 = vpack.c.bf16 %v1039, %v1037
      %v2076 = vpack.c.bf16 %v1044, %v1042
      %v2077 = vpack.c.bf16 %v1049, %v1047
      %v2078 = vpack.c.bf16 %v2009, %v2007
      %v2079 = vpack.c.bf16 %v2013, %v2011
      %v2080 = vpack.c.bf16 %v2017, %v2015
      %v2081 = vpack.c.bf16 %v2021, %v2019
      %v2082 = vpack.c.bf16 %v2025, %v2023
      %v2083 = vpack.c.bf16 %v2029, %v2027
      %v2084 = vpack.c.bf16 %v2033, %v2031
      %v2085 = vpack.c.bf16 %v2037, %v2035
      %2086 = vmatpush.bf16.msra.mxu0 %v2077
      %2087 = vmatpush.bf16.msra.mxu0 %v2076
      %2088 = vmatpush.bf16.msra.mxu0 %v2075
      %2089 = vmatpush.bf16.msra.mxu0 %v2074
      %2090 = vmatpush.bf16.msra.mxu0 %v2073
      %2091 = vmatpush.bf16.msra.mxu0 %v2072
      %2092 = vmatpush.bf16.msra.mxu0 %v2071
      %2093 = vmatpush.bf16.msra.mxu0 %v2070
      %2094 = vmatmul.bf16.gmra.mxu0 %v2078
      %v2095 = vpop.f32.mrf.mxu0
      %v2096 = vadd.f32 0.0, %v2095
      %v2097 = vpop.f32.mrf.mxu0
      %v2098 = vadd.f32 0.0, %v2097
      %2099 = vmatmul.bf16.gmra.mxu0 %v2079
      %v2100 = vpop.f32.mrf.mxu0
      %v2101 = vadd.f32 0.0, %v2100
      %v2102 = vpop.f32.mrf.mxu0
      %v2103 = vadd.f32 0.0, %v2102
      %2104 = vmatmul.bf16.gmra.mxu0 %v2080
      %v2105 = vpop.f32.mrf.mxu0
      %v2106 = vadd.f32 0.0, %v2105
      %v2107 = vpop.f32.mrf.mxu0
      %v2108 = vadd.f32 0.0, %v2107
      %2109 = vmatmul.bf16.gmra.mxu0 %v2081
      %v2110 = vpop.f32.mrf.mxu0
      %v2111 = vadd.f32 0.0, %v2110
      %v2112 = vpop.f32.mrf.mxu0
      %v2113 = vadd.f32 0.0, %v2112
      %2114 = vmatmul.bf16.gmra.mxu0 %v2082
      %v2115 = vpop.f32.mrf.mxu0
      %v2116 = vadd.f32 0.0, %v2115
      %v2117 = vpop.f32.mrf.mxu0
      %v2118 = vadd.f32 0.0, %v2117
      %2119 = vmatmul.bf16.gmra.mxu0 %v2083
      %v2120 = vpop.f32.mrf.mxu0
      %v2121 = vadd.f32 0.0, %v2120
      %v2122 = vpop.f32.mrf.mxu0
      %v2123 = vadd.f32 0.0, %v2122
      %2124 = vmatmul.bf16.gmra.mxu0 %v2084
      %v2125 = vpop.f32.mrf.mxu0
      %v2126 = vadd.f32 0.0, %v2125
      %v2127 = vpop.f32.mrf.mxu0
      %v2128 = vadd.f32 0.0, %v2127
      %2129 = vmatmul.bf16.gmra.mxu0 %v2085
      %v2130 = vpop.f32.mrf.mxu0
      %v2131 = vadd.f32 0.0, %v2130
      %v2132 = vpop.f32.mrf.mxu0
      %v2133 = vadd.f32 0.0, %v2132
      %2134 = vdwg.mxu0
      %v2135 = vrcp.pop %v2039
      %v2136 = vrcp.pop %v2041
      %v2137 = vrcp.pop %v2043
      %v2138 = vrcp.pop %v2045
      %v2139 = vrcp.pop %v2047
      %v2140 = vrcp.pop %v2049
      %v2141 = vrcp.pop %v2051
      %v2142 = vrcp.pop %v2053
      %v2143 = vrcp.pop %v2055
      %v2144 = vrcp.pop %v2057
      %v2145 = vrcp.pop %v2059
      %v2146 = vrcp.pop %v2061
      %v2147 = vrcp.pop %v2063
      %v2148 = vrcp.pop %v2065
      %v2149 = vrcp.pop %v2067
      %v2150 = vrcp.pop %v2069
      %v2151 = vmul.f32 %v2096, %v2135
      %v2152 = vmul.f32 %v2098, %v2136
      %v2153 = vmul.f32 %v2101, %v2137
      %v2154 = vmul.f32 %v2103, %v2138
      %v2155 = vmul.f32 %v2106, %v2139
      %v2156 = vmul.f32 %v2108, %v2140
      %v2157 = vmul.f32 %v2111, %v2141
      %v2158 = vmul.f32 %v2113, %v2142
      %v2159 = vmul.f32 %v2116, %v2143
      %v2160 = vmul.f32 %v2118, %v2144
      %v2161 = vmul.f32 %v2121, %v2145
      %v2162 = vmul.f32 %v2123, %v2146
      %v2163 = vmul.f32 %v2126, %v2147
      %v2164 = vmul.f32 %v2128, %v2148
      %v2165 = vmul.f32 %v2131, %v2149
      %v2166 = vmul.f32 %v2133, %v2150
      %v2167 = vadd.f32 %v1813, %v2151
      %v2168 = vadd.f32 %v1814, %v2152
      %v2169 = vadd.f32 %v1815, %v2153
      %v2170 = vadd.f32 %v1816, %v2154
      %v2171 = vadd.f32 %v1817, %v2155
      %v2172 = vadd.f32 %v1818, %v2156
      %v2173 = vadd.f32 %v1819, %v2157
      %v2174 = vadd.f32 %v1820, %v2158
      %v2175 = vadd.f32 %v1821, %v2159
      %v2176 = vadd.f32 %v1822, %v2160
      %v2177 = vadd.f32 %v1823, %v2161
      %v2178 = vadd.f32 %v1824, %v2162
      %v2179 = vadd.f32 %v1825, %v2163
      %v2180 = vadd.f32 %v1826, %v2164
      %v2181 = vadd.f32 %v1827, %v2165
      %v2182 = vadd.f32 %v1828, %v2166
      %2183 = vrot.lane.b32.xlu0 %v1071, 104
      %v2184 = vpop.permute.xlu0 %2183
      %2185 = vrot.lane.b32.xlu0 %v1072, 104
      %v2186 = vpop.permute.xlu0 %2185
      %2187 = vrot.lane.b32.xlu0 %v1073, 104
      %v2188 = vpop.permute.xlu0 %2187
      %2189 = vrot.lane.b32.xlu0 %v1074, 104
      %v2190 = vpop.permute.xlu0 %2189
      %2191 = vrot.lane.b32.xlu0 %v1075, 104
      %v2192 = vpop.permute.xlu0 %2191
      %2193 = vrot.lane.b32.xlu0 %v1076, 104
      %v2194 = vpop.permute.xlu0 %2193
      %2195 = vrot.lane.b32.xlu0 %v1077, 104
      %v2196 = vpop.permute.xlu0 %2195
      %2197 = vrot.lane.b32.xlu0 %v1078, 104
      %v2198 = vpop.permute.xlu0 %2197
      %2199 = vrot.lane.b32.xlu0 %v1071, 72
      %v2200 = vpop.permute.xlu0 %2199
      %2201 = vrot.lane.b32.xlu0 %v1072, 72
      %v2202 = vpop.permute.xlu0 %2201
      %2203 = vrot.lane.b32.xlu0 %v1073, 72
      %v2204 = vpop.permute.xlu0 %2203
      %2205 = vrot.lane.b32.xlu0 %v1074, 72
      %v2206 = vpop.permute.xlu0 %2205
      %2207 = vrot.lane.b32.xlu0 %v1075, 72
      %v2208 = vpop.permute.xlu0 %2207
      %2209 = vrot.lane.b32.xlu0 %v1076, 72
      %v2210 = vpop.permute.xlu0 %2209
      %2211 = vrot.lane.b32.xlu0 %v1077, 72
      %v2212 = vpop.permute.xlu0 %2211
      %2213 = vrot.lane.b32.xlu0 %v1078, 72
      %v2214 = vpop.permute.xlu0 %2213
      %v2216 = vsel %vm1104, %v2184, 0
      %v2219 = vsel %vm1104, %v2186, 0
      %v2222 = vsel %vm1104, %v2188, 0
      %v2225 = vsel %vm1104, %v2190, 0
      %v2228 = vsel %vm1104, %v2192, 0
      %v2231 = vsel %vm1104, %v2194, 0
      %v2234 = vsel %vm1104, %v2196, 0
      %v2237 = vsel %vm1104, %v2198, 0
      %v2240 = vsel %vm1104, %v2200, 0
      %v2243 = vsel %vm1104, %v2202, 0
      %v2246 = vsel %vm1104, %v2204, 0
      %v2249 = vsel %vm1104, %v2206, 0
      %v2252 = vsel %vm1104, %v2208, 0
      %v2255 = vsel %vm1104, %v2210, 0
      %v2258 = vsel %vm1104, %v2212, 0
      %v2261 = vsel %vm1104, %v2214, 0
      %2263 = vmatpush.bf16.xpose.msra.mxu0 %v2261
      %2264 = vmatpush.bf16.xpose.msra.mxu0 %v2258
      %2265 = vmatpush.bf16.xpose.msra.mxu0 %v2255
      %2266 = vmatpush.bf16.xpose.msra.mxu0 %v2252
      %2267 = vmatpush.bf16.xpose.msra.mxu0 %v2249
      %2268 = vmatpush.bf16.xpose.msra.mxu0 %v2246
      %2269 = vmatpush.bf16.xpose.msra.mxu0 %v2243
      %2270 = vmatpush.bf16.xpose.msra.mxu0 %v2240
      %2271 = vmatmul.bf16.gmra.mxu0 %v2216
      %v2272 = vpop.f32.mrf.mxu0
      %v2273 = vadd.f32 %v1079, %v2272
      %v2274 = vpop.f32.mrf.mxu0
      %v2275 = vadd.f32 %v1079, %v2274
      %2276 = vmatmul.bf16.gmra.mxu0 %v2219
      %v2277 = vpop.f32.mrf.mxu0
      %v2278 = vadd.f32 %v1079, %v2277
      %v2279 = vpop.f32.mrf.mxu0
      %v2280 = vadd.f32 %v1079, %v2279
      %2281 = vmatmul.bf16.gmra.mxu0 %v2222
      %v2282 = vpop.f32.mrf.mxu0
      %v2283 = vadd.f32 %v1079, %v2282
      %v2284 = vpop.f32.mrf.mxu0
      %v2285 = vadd.f32 %v1079, %v2284
      %2286 = vmatmul.bf16.gmra.mxu0 %v2225
      %v2287 = vpop.f32.mrf.mxu0
      %v2288 = vadd.f32 %v1079, %v2287
      %v2289 = vpop.f32.mrf.mxu0
      %v2290 = vadd.f32 %v1079, %v2289
      %2291 = vmatmul.bf16.gmra.mxu0 %v2228
      %v2292 = vpop.f32.mrf.mxu0
      %v2293 = vadd.f32 %v1079, %v2292
      %v2294 = vpop.f32.mrf.mxu0
      %v2295 = vadd.f32 %v1079, %v2294
      %2296 = vmatmul.bf16.gmra.mxu0 %v2231
      %v2297 = vpop.f32.mrf.mxu0
      %v2298 = vadd.f32 %v1079, %v2297
      %v2299 = vpop.f32.mrf.mxu0
      %v2300 = vadd.f32 %v1079, %v2299
      %2301 = vmatmul.bf16.gmra.mxu0 %v2234
      %v2302 = vpop.f32.mrf.mxu0
      %v2303 = vadd.f32 %v1079, %v2302
      %v2304 = vpop.f32.mrf.mxu0
      %v2305 = vadd.f32 %v1079, %v2304
      %2306 = vmatmul.bf16.gmra.mxu0 %v2237
      %v2307 = vpop.f32.mrf.mxu0
      %v2308 = vadd.f32 %v1079, %v2307
      %v2309 = vpop.f32.mrf.mxu0
      %v2310 = vadd.f32 %v1079, %v2309
      %2311 = vdwg.mxu0
      %2312 = vmax.xlane.f32.xlu0 %v2273
      %v2313 = vpop.xlane.xlu0 %2312
      %2314 = vmax.xlane.f32.xlu0 %v2275
      %v2315 = vpop.xlane.xlu0 %2314
      %2316 = vmax.xlane.f32.xlu0 %v2278
      %v2317 = vpop.xlane.xlu0 %2316
      %2318 = vmax.xlane.f32.xlu0 %v2280
      %v2319 = vpop.xlane.xlu0 %2318
      %2320 = vmax.xlane.f32.xlu0 %v2283
      %v2321 = vpop.xlane.xlu0 %2320
      %2322 = vmax.xlane.f32.xlu0 %v2285
      %v2323 = vpop.xlane.xlu0 %2322
      %2324 = vmax.xlane.f32.xlu0 %v2288
      %v2325 = vpop.xlane.xlu0 %2324
      %2326 = vmax.xlane.f32.xlu0 %v2290
      %v2327 = vpop.xlane.xlu0 %2326
      %2328 = vmax.xlane.f32.xlu0 %v2293
      %v2329 = vpop.xlane.xlu0 %2328
      %2330 = vmax.xlane.f32.xlu0 %v2295
      %v2331 = vpop.xlane.xlu0 %2330
      %2332 = vmax.xlane.f32.xlu0 %v2298
      %v2333 = vpop.xlane.xlu0 %2332
      %2334 = vmax.xlane.f32.xlu0 %v2300
      %v2335 = vpop.xlane.xlu0 %2334
      %2336 = vmax.xlane.f32.xlu0 %v2303
      %v2337 = vpop.xlane.xlu0 %2336
      %2338 = vmax.xlane.f32.xlu0 %v2305
      %v2339 = vpop.xlane.xlu0 %2338
      %2340 = vmax.xlane.f32.xlu0 %v2308
      %v2341 = vpop.xlane.xlu0 %2340
      %2342 = vmax.xlane.f32.xlu0 %v2310
      %v2343 = vpop.xlane.xlu0 %2342
      %v2344 = vsub.f32 %v2273, %v2313
      %v2345 = vsub.f32 %v2275, %v2315
      %v2346 = vsub.f32 %v2278, %v2317
      %v2347 = vsub.f32 %v2280, %v2319
      %v2348 = vsub.f32 %v2283, %v2321
      %v2349 = vsub.f32 %v2285, %v2323
      %v2350 = vsub.f32 %v2288, %v2325
      %v2351 = vsub.f32 %v2290, %v2327
      %v2352 = vsub.f32 %v2293, %v2329
      %v2353 = vsub.f32 %v2295, %v2331
      %v2354 = vsub.f32 %v2298, %v2333
      %v2355 = vsub.f32 %v2300, %v2335
      %v2356 = vsub.f32 %v2303, %v2337
      %v2357 = vsub.f32 %v2305, %v2339
      %v2358 = vsub.f32 %v2308, %v2341
      %v2359 = vsub.f32 %v2310, %v2343
      %v2360 = vmul.f32 %v2344, 1.442695
      %v2361 = vpow.pop %v2360
      %v2362 = vmul.f32 %v2345, 1.442695
      %v2363 = vpow.pop %v2362
      %v2364 = vmul.f32 %v2346, 1.442695
      %v2365 = vpow.pop %v2364
      %v2366 = vmul.f32 %v2347, 1.442695
      %v2367 = vpow.pop %v2366
      %v2368 = vmul.f32 %v2348, 1.442695
      %v2369 = vpow.pop %v2368
      %v2370 = vmul.f32 %v2349, 1.442695
      %v2371 = vpow.pop %v2370
      %v2372 = vmul.f32 %v2350, 1.442695
      %v2373 = vpow.pop %v2372
      %v2374 = vmul.f32 %v2351, 1.442695
      %v2375 = vpow.pop %v2374
      %v2376 = vmul.f32 %v2352, 1.442695
      %v2377 = vpow.pop %v2376
      %v2378 = vmul.f32 %v2353, 1.442695
      %v2379 = vpow.pop %v2378
      %v2380 = vmul.f32 %v2354, 1.442695
      %v2381 = vpow.pop %v2380
      %v2382 = vmul.f32 %v2355, 1.442695
      %v2383 = vpow.pop %v2382
      %v2384 = vmul.f32 %v2356, 1.442695
      %v2385 = vpow.pop %v2384
      %v2386 = vmul.f32 %v2357, 1.442695
      %v2387 = vpow.pop %v2386
      %v2388 = vmul.f32 %v2358, 1.442695
      %v2389 = vpow.pop %v2388
      %v2390 = vmul.f32 %v2359, 1.442695
      %v2391 = vpow.pop %v2390
      %2392 = vadd.xlane.f32.xlu0 %v2361
      %v2393 = vpop.xlane.xlu0 %2392
      %2394 = vadd.xlane.f32.xlu0 %v2363
      %v2395 = vpop.xlane.xlu0 %2394
      %2396 = vadd.xlane.f32.xlu0 %v2365
      %v2397 = vpop.xlane.xlu0 %2396
      %2398 = vadd.xlane.f32.xlu0 %v2367
      %v2399 = vpop.xlane.xlu0 %2398
      %2400 = vadd.xlane.f32.xlu0 %v2369
      %v2401 = vpop.xlane.xlu0 %2400
      %2402 = vadd.xlane.f32.xlu0 %v2371
      %v2403 = vpop.xlane.xlu0 %2402
      %2404 = vadd.xlane.f32.xlu0 %v2373
      %v2405 = vpop.xlane.xlu0 %2404
      %2406 = vadd.xlane.f32.xlu0 %v2375
      %v2407 = vpop.xlane.xlu0 %2406
      %2408 = vadd.xlane.f32.xlu0 %v2377
      %v2409 = vpop.xlane.xlu0 %2408
      %2410 = vadd.xlane.f32.xlu0 %v2379
      %v2411 = vpop.xlane.xlu0 %2410
      %2412 = vadd.xlane.f32.xlu0 %v2381
      %v2413 = vpop.xlane.xlu0 %2412
      %2414 = vadd.xlane.f32.xlu0 %v2383
      %v2415 = vpop.xlane.xlu0 %2414
      %2416 = vadd.xlane.f32.xlu0 %v2385
      %v2417 = vpop.xlane.xlu0 %2416
      %2418 = vadd.xlane.f32.xlu0 %v2387
      %v2419 = vpop.xlane.xlu0 %2418
      %2420 = vadd.xlane.f32.xlu0 %v2389
      %v2421 = vpop.xlane.xlu0 %2420
      %2422 = vadd.xlane.f32.xlu0 %v2391
      %v2423 = vpop.xlane.xlu0 %2422
      %v2424 = vpack.c.bf16 %v2363, %v2361
      %v2425 = vpack.c.bf16 %v2367, %v2365
      %v2426 = vpack.c.bf16 %v2371, %v2369
      %v2427 = vpack.c.bf16 %v2375, %v2373
      %v2428 = vpack.c.bf16 %v2379, %v2377
      %v2429 = vpack.c.bf16 %v2383, %v2381
      %v2430 = vpack.c.bf16 %v2387, %v2385
      %v2431 = vpack.c.bf16 %v2391, %v2389
      %2440 = vrot.lane.b32.xlu0 %v2070, 96
      %v2441 = vpop.permute.xlu0 %2440
      %2442 = vrot.lane.b32.xlu0 %v2071, 96
      %v2443 = vpop.permute.xlu0 %2442
      %2444 = vrot.lane.b32.xlu0 %v2072, 96
      %v2445 = vpop.permute.xlu0 %2444
      %2446 = vrot.lane.b32.xlu0 %v2073, 96
      %v2447 = vpop.permute.xlu0 %2446
      %2448 = vrot.lane.b32.xlu0 %v2074, 96
      %v2449 = vpop.permute.xlu0 %2448
      %2450 = vrot.lane.b32.xlu0 %v2075, 96
      %v2451 = vpop.permute.xlu0 %2450
      %2452 = vrot.lane.b32.xlu0 %v2076, 96
      %v2453 = vpop.permute.xlu0 %2452
      %2454 = vrot.lane.b32.xlu0 %v2077, 96
      %v2455 = vpop.permute.xlu0 %2454
      %2464 = vmatpush.bf16.msra.mxu0 %v2455
      %2465 = vmatpush.bf16.msra.mxu0 %v2453
      %2466 = vmatpush.bf16.msra.mxu0 %v2451
      %2467 = vmatpush.bf16.msra.mxu0 %v2449
      %2468 = vmatpush.bf16.msra.mxu0 %v2447
      %2469 = vmatpush.bf16.msra.mxu0 %v2445
      %2470 = vmatpush.bf16.msra.mxu0 %v2443
      %2471 = vmatpush.bf16.msra.mxu0 %v2441
      %2472 = vmatmul.bf16.gmra.mxu0 %v2424
      %v2473 = vpop.f32.mrf.mxu0
      %v2474 = vadd.f32 0.0, %v2473
      %v2475 = vpop.f32.mrf.mxu0
      %v2476 = vadd.f32 0.0, %v2475
      %2477 = vmatmul.bf16.gmra.mxu0 %v2425
      %v2478 = vpop.f32.mrf.mxu0
      %v2479 = vadd.f32 0.0, %v2478
      %v2480 = vpop.f32.mrf.mxu0
      %v2481 = vadd.f32 0.0, %v2480
      %2482 = vmatmul.bf16.gmra.mxu0 %v2426
      %v2483 = vpop.f32.mrf.mxu0
      %v2484 = vadd.f32 0.0, %v2483
      %v2485 = vpop.f32.mrf.mxu0
      %v2486 = vadd.f32 0.0, %v2485
      %2487 = vmatmul.bf16.gmra.mxu0 %v2427
      %v2488 = vpop.f32.mrf.mxu0
      %v2489 = vadd.f32 0.0, %v2488
      %v2490 = vpop.f32.mrf.mxu0
      %v2491 = vadd.f32 0.0, %v2490
      %2492 = vmatmul.bf16.gmra.mxu0 %v2428
      %v2493 = vpop.f32.mrf.mxu0
      %v2494 = vadd.f32 0.0, %v2493
      %v2495 = vpop.f32.mrf.mxu0
      %v2496 = vadd.f32 0.0, %v2495
      %2497 = vmatmul.bf16.gmra.mxu0 %v2429
      %v2498 = vpop.f32.mrf.mxu0
      %v2499 = vadd.f32 0.0, %v2498
      %v2500 = vpop.f32.mrf.mxu0
      %v2501 = vadd.f32 0.0, %v2500
      %2502 = vmatmul.bf16.gmra.mxu0 %v2430
      %v2503 = vpop.f32.mrf.mxu0
      %v2504 = vadd.f32 0.0, %v2503
      %v2505 = vpop.f32.mrf.mxu0
      %v2506 = vadd.f32 0.0, %v2505
      %2507 = vmatmul.bf16.gmra.mxu0 %v2431
      %v2508 = vpop.f32.mrf.mxu0
      %v2509 = vadd.f32 0.0, %v2508
      %v2510 = vpop.f32.mrf.mxu0
      %v2511 = vadd.f32 0.0, %v2510
      %2512 = vdwg.mxu0
      %v2513 = vrcp.pop %v2393
      %v2514 = vrcp.pop %v2395
      %v2515 = vrcp.pop %v2397
      %v2516 = vrcp.pop %v2399
      %v2517 = vrcp.pop %v2401
      %v2518 = vrcp.pop %v2403
      %v2519 = vrcp.pop %v2405
      %v2520 = vrcp.pop %v2407
      %v2521 = vrcp.pop %v2409
      %v2522 = vrcp.pop %v2411
      %v2523 = vrcp.pop %v2413
      %v2524 = vrcp.pop %v2415
      %v2525 = vrcp.pop %v2417
      %v2526 = vrcp.pop %v2419
      %v2527 = vrcp.pop %v2421
      %v2528 = vrcp.pop %v2423
      %v2529 = vmul.f32 %v2474, %v2513
      %v2530 = vmul.f32 %v2476, %v2514
      %v2531 = vmul.f32 %v2479, %v2515
      %v2532 = vmul.f32 %v2481, %v2516
      %v2533 = vmul.f32 %v2484, %v2517
      %v2534 = vmul.f32 %v2486, %v2518
      %v2535 = vmul.f32 %v2489, %v2519
      %v2536 = vmul.f32 %v2491, %v2520
      %v2537 = vmul.f32 %v2494, %v2521
      %v2538 = vmul.f32 %v2496, %v2522
      %v2539 = vmul.f32 %v2499, %v2523
      %v2540 = vmul.f32 %v2501, %v2524
      %v2541 = vmul.f32 %v2504, %v2525
      %v2542 = vmul.f32 %v2506, %v2526
      %v2543 = vmul.f32 %v2509, %v2527
      %v2544 = vmul.f32 %v2511, %v2528
      %v2545 = vadd.f32 %v2167, %v2529
      %v2546 = vadd.f32 %v2168, %v2530
      %v2547 = vadd.f32 %v2169, %v2531
      %v2548 = vadd.f32 %v2170, %v2532
      %v2549 = vadd.f32 %v2171, %v2533
      %v2550 = vadd.f32 %v2172, %v2534
      %v2551 = vadd.f32 %v2173, %v2535
      %v2552 = vadd.f32 %v2174, %v2536
      %v2553 = vadd.f32 %v2175, %v2537
      %v2554 = vadd.f32 %v2176, %v2538
      %v2555 = vadd.f32 %v2177, %v2539
      %v2556 = vadd.f32 %v2178, %v2540
      %v2557 = vadd.f32 %v2179, %v2541
      %v2558 = vadd.f32 %v2180, %v2542
      %v2559 = vadd.f32 %v2181, %v2543
      %v2560 = vadd.f32 %v2182, %v2544
      %v2561 = vld [vmem:[%s659] sm:$0x1]
      %v2563 = vperm.slane %v2561, 0
      %v2565 = vadd.f32 %v2545, %v2563
      %v2566 = vadd.f32 %v2546, %v2563
      %v2567 = vadd.f32 %v2547, %v2563
      %v2568 = vadd.f32 %v2548, %v2563
      %v2569 = vadd.f32 %v2549, %v2563
      %v2570 = vadd.f32 %v2550, %v2563
      %v2571 = vadd.f32 %v2551, %v2563
      %v2572 = vadd.f32 %v2552, %v2563
      %v2573 = vadd.f32 %v2553, %v2563
      %v2574 = vadd.f32 %v2554, %v2563
      %v2575 = vadd.f32 %v2555, %v2563
      %v2576 = vadd.f32 %v2556, %v2563
      %v2577 = vadd.f32 %v2557, %v2563
      %v2578 = vadd.f32 %v2558, %v2563
      %v2579 = vadd.f32 %v2559, %v2563
      %v2580 = vadd.f32 %v2560, %v2563
      %v2581 = vadd.f32 %v876, %v2565
      %v2582 = vadd.f32 %v877, %v2566
      %v2583 = vadd.f32 %v878, %v2567
      %v2584 = vadd.f32 %v879, %v2568
      %v2585 = vadd.f32 %v880, %v2569
      %v2586 = vadd.f32 %v881, %v2570
      %v2587 = vadd.f32 %v882, %v2571
      %v2588 = vadd.f32 %v883, %v2572
      %v2589 = vadd.f32 %v884, %v2573
      %v2590 = vadd.f32 %v885, %v2574
      %v2591 = vadd.f32 %v886, %v2575
      %v2592 = vadd.f32 %v887, %v2576
      %v2593 = vadd.f32 %v888, %v2577
      %v2594 = vadd.f32 %v889, %v2578
      %v2595 = vadd.f32 %v890, %v2579
      %v2596 = vadd.f32 %v891, %v2580
      %v2597 = vld [vmem:[%s662] sm:$0x1]
      %v2598 = vld [vmem:[%s665] sm:$0x1]
      %v2599 = vsel %vm928, %v2581, 0.0
      %2600 = vadd.xlane.f32.xlu0 %v2599
      %v2601 = vpop.xlane.xlu0 %2600
      %v2602 = vsel %vm928, %v2582, 0.0
      %2603 = vadd.xlane.f32.xlu0 %v2602
      %v2604 = vpop.xlane.xlu0 %2603
      %v2605 = vsel %vm928, %v2583, 0.0
      %2606 = vadd.xlane.f32.xlu0 %v2605
      %v2607 = vpop.xlane.xlu0 %2606
      %v2608 = vsel %vm928, %v2584, 0.0
      %2609 = vadd.xlane.f32.xlu0 %v2608
      %v2610 = vpop.xlane.xlu0 %2609
      %v2611 = vsel %vm928, %v2585, 0.0
      %2612 = vadd.xlane.f32.xlu0 %v2611
      %v2613 = vpop.xlane.xlu0 %2612
      %v2614 = vsel %vm928, %v2586, 0.0
      %2615 = vadd.xlane.f32.xlu0 %v2614
      %v2616 = vpop.xlane.xlu0 %2615
      %v2617 = vsel %vm928, %v2587, 0.0
      %2618 = vadd.xlane.f32.xlu0 %v2617
      %v2619 = vpop.xlane.xlu0 %2618
      %v2620 = vsel %vm928, %v2588, 0.0
      %2621 = vadd.xlane.f32.xlu0 %v2620
      %v2622 = vpop.xlane.xlu0 %2621
      %v2623 = vsel %vm928, %v2589, 0.0
      %2624 = vadd.xlane.f32.xlu0 %v2623
      %v2625 = vpop.xlane.xlu0 %2624
      %v2626 = vsel %vm928, %v2590, 0.0
      %2627 = vadd.xlane.f32.xlu0 %v2626
      %v2628 = vpop.xlane.xlu0 %2627
      %v2629 = vsel %vm928, %v2591, 0.0
      %2630 = vadd.xlane.f32.xlu0 %v2629
      %v2631 = vpop.xlane.xlu0 %2630
      %v2632 = vsel %vm928, %v2592, 0.0
      %2633 = vadd.xlane.f32.xlu0 %v2632
      %v2634 = vpop.xlane.xlu0 %2633
      %v2635 = vsel %vm928, %v2593, 0.0
      %2636 = vadd.xlane.f32.xlu0 %v2635
      %v2637 = vpop.xlane.xlu0 %2636
      %v2638 = vsel %vm928, %v2594, 0.0
      %2639 = vadd.xlane.f32.xlu0 %v2638
      %v2640 = vpop.xlane.xlu0 %2639
      %v2641 = vsel %vm928, %v2595, 0.0
      %2642 = vadd.xlane.f32.xlu0 %v2641
      %v2643 = vpop.xlane.xlu0 %2642
      %v2644 = vsel %vm928, %v2596, 0.0
      %2645 = vadd.xlane.f32.xlu0 %v2644
      %v2646 = vpop.xlane.xlu0 %2645
      %v2647 = vrcp.pop 32.0
      %v2648 = vmul.f32 32.0, %v2647
      %v2649 = vsub.f32 1.0, %v2648
      %v2650 = vmul.f32 %v2647, %v2649
      %v2651 = vadd.f32 %v2647, %v2650
      %vm2652 = vweird.f32 %v2647
      %v2653 = vsel %vm2652, %v2647, %v2651
      %v2654 = vmul.f32 %v2601, %v2653
      %v2655 = vmul.f32 %v2604, %v2653
      %v2656 = vmul.f32 %v2607, %v2653
      %v2657 = vmul.f32 %v2610, %v2653
      %v2658 = vmul.f32 %v2613, %v2653
      %v2659 = vmul.f32 %v2616, %v2653
      %v2660 = vmul.f32 %v2619, %v2653
      %v2661 = vmul.f32 %v2622, %v2653
      %v2662 = vmul.f32 %v2625, %v2653
      %v2663 = vmul.f32 %v2628, %v2653
      %v2664 = vmul.f32 %v2631, %v2653
      %v2665 = vmul.f32 %v2634, %v2653
      %v2666 = vmul.f32 %v2637, %v2653
      %v2667 = vmul.f32 %v2640, %v2653
      %v2668 = vmul.f32 %v2643, %v2653
      %v2669 = vmul.f32 %v2646, %v2653
      %v2670 = vsub.f32 %v2581, %v2654
      %v2671 = vsub.f32 %v2582, %v2655
      %v2672 = vsub.f32 %v2583, %v2656
      %v2673 = vsub.f32 %v2584, %v2657
      %v2674 = vsub.f32 %v2585, %v2658
      %v2675 = vsub.f32 %v2586, %v2659
      %v2676 = vsub.f32 %v2587, %v2660
      %v2677 = vsub.f32 %v2588, %v2661
      %v2678 = vsub.f32 %v2589, %v2662
      %v2679 = vsub.f32 %v2590, %v2663
      %v2680 = vsub.f32 %v2591, %v2664
      %v2681 = vsub.f32 %v2592, %v2665
      %v2682 = vsub.f32 %v2593, %v2666
      %v2683 = vsub.f32 %v2594, %v2667
      %v2684 = vsub.f32 %v2595, %v2668
      %v2685 = vsub.f32 %v2596, %v2669
      %v2686 = vmul.f32 %v2670, %v2670
      %v2687 = vmul.f32 %v2671, %v2671
      %v2688 = vmul.f32 %v2672, %v2672
      %v2689 = vmul.f32 %v2673, %v2673
      %v2690 = vmul.f32 %v2674, %v2674
      %v2691 = vmul.f32 %v2675, %v2675
      %v2692 = vmul.f32 %v2676, %v2676
      %v2693 = vmul.f32 %v2677, %v2677
      %v2694 = vmul.f32 %v2678, %v2678
      %v2695 = vmul.f32 %v2679, %v2679
      %v2696 = vmul.f32 %v2680, %v2680
      %v2697 = vmul.f32 %v2681, %v2681
      %v2698 = vmul.f32 %v2682, %v2682
      %v2699 = vmul.f32 %v2683, %v2683
      %v2700 = vmul.f32 %v2684, %v2684
      %v2701 = vmul.f32 %v2685, %v2685
      %v2702 = vsel %vm928, %v2686, 0.0
      %2703 = vadd.xlane.f32.xlu0 %v2702
      %v2704 = vpop.xlane.xlu0 %2703
      %v2705 = vsel %vm928, %v2687, 0.0
      %2706 = vadd.xlane.f32.xlu0 %v2705
      %v2707 = vpop.xlane.xlu0 %2706
      %v2708 = vsel %vm928, %v2688, 0.0
      %2709 = vadd.xlane.f32.xlu0 %v2708
      %v2710 = vpop.xlane.xlu0 %2709
      %v2711 = vsel %vm928, %v2689, 0.0
      %2712 = vadd.xlane.f32.xlu0 %v2711
      %v2713 = vpop.xlane.xlu0 %2712
      %v2714 = vsel %vm928, %v2690, 0.0
      %2715 = vadd.xlane.f32.xlu0 %v2714
      %v2716 = vpop.xlane.xlu0 %2715
      %v2717 = vsel %vm928, %v2691, 0.0
      %2718 = vadd.xlane.f32.xlu0 %v2717
      %v2719 = vpop.xlane.xlu0 %2718
      %v2720 = vsel %vm928, %v2692, 0.0
      %2721 = vadd.xlane.f32.xlu0 %v2720
      %v2722 = vpop.xlane.xlu0 %2721
      %v2723 = vsel %vm928, %v2693, 0.0
      %2724 = vadd.xlane.f32.xlu0 %v2723
      %v2725 = vpop.xlane.xlu0 %2724
      %v2726 = vsel %vm928, %v2694, 0.0
      %2727 = vadd.xlane.f32.xlu0 %v2726
      %v2728 = vpop.xlane.xlu0 %2727
      %v2729 = vsel %vm928, %v2695, 0.0
      %2730 = vadd.xlane.f32.xlu0 %v2729
      %v2731 = vpop.xlane.xlu0 %2730
      %v2732 = vsel %vm928, %v2696, 0.0
      %2733 = vadd.xlane.f32.xlu0 %v2732
      %v2734 = vpop.xlane.xlu0 %2733
      %v2735 = vsel %vm928, %v2697, 0.0
      %2736 = vadd.xlane.f32.xlu0 %v2735
      %v2737 = vpop.xlane.xlu0 %2736
      %v2738 = vsel %vm928, %v2698, 0.0
      %2739 = vadd.xlane.f32.xlu0 %v2738
      %v2740 = vpop.xlane.xlu0 %2739
      %v2741 = vsel %vm928, %v2699, 0.0
      %2742 = vadd.xlane.f32.xlu0 %v2741
      %v2743 = vpop.xlane.xlu0 %2742
      %v2744 = vsel %vm928, %v2700, 0.0
      %2745 = vadd.xlane.f32.xlu0 %v2744
      %v2746 = vpop.xlane.xlu0 %2745
      %v2747 = vsel %vm928, %v2701, 0.0
      %2748 = vadd.xlane.f32.xlu0 %v2747
      %v2749 = vpop.xlane.xlu0 %2748
      %v2750 = vmul.f32 %v2704, %v2653
      %v2751 = vmul.f32 %v2707, %v2653
      %v2752 = vmul.f32 %v2710, %v2653
      %v2753 = vmul.f32 %v2713, %v2653
      %v2754 = vmul.f32 %v2716, %v2653
      %v2755 = vmul.f32 %v2719, %v2653
      %v2756 = vmul.f32 %v2722, %v2653
      %v2757 = vmul.f32 %v2725, %v2653
      %v2758 = vmul.f32 %v2728, %v2653
      %v2759 = vmul.f32 %v2731, %v2653
      %v2760 = vmul.f32 %v2734, %v2653
      %v2761 = vmul.f32 %v2737, %v2653
      %v2762 = vmul.f32 %v2740, %v2653
      %v2763 = vmul.f32 %v2743, %v2653
      %v2764 = vmul.f32 %v2746, %v2653
      %v2765 = vmul.f32 %v2749, %v2653
      %v2766 = vadd.f32 %v2750, 1e-05
      %v2767 = vadd.f32 %v2751, 1e-05
      %v2768 = vadd.f32 %v2752, 1e-05
      %v2769 = vadd.f32 %v2753, 1e-05
      %v2770 = vadd.f32 %v2754, 1e-05
      %v2771 = vadd.f32 %v2755, 1e-05
      %v2772 = vadd.f32 %v2756, 1e-05
      %v2773 = vadd.f32 %v2757, 1e-05
      %v2774 = vadd.f32 %v2758, 1e-05
      %v2775 = vadd.f32 %v2759, 1e-05
      %v2776 = vadd.f32 %v2760, 1e-05
      %v2777 = vadd.f32 %v2761, 1e-05
      %v2778 = vadd.f32 %v2762, 1e-05
      %v2779 = vadd.f32 %v2763, 1e-05
      %v2780 = vadd.f32 %v2764, 1e-05
      %v2781 = vadd.f32 %v2765, 1e-05
      %v2782 = vrsqrt.pop %v2766
      %v2783 = vmul.f32 %v2782, %v2766
      %v2784 = vmul.f32 %v2783, %v2782
      %v2785 = vmul.f32 0.5, %v2784
      %v2786 = vsub.f32 1.5, %v2785
      %v2787 = vmul.f32 %v2782, %v2786
      %vm2788 = vweird.f32 %v2766
      %vm2789 = vweird.f32 %v2782
      %vm2790 = vmor %vm2788, %vm2789
      %v2791 = vsel %vm2790, %v2782, %v2787
      %v2792 = vrsqrt.pop %v2767
      %v2793 = vmul.f32 %v2792, %v2767
      %v2794 = vmul.f32 %v2793, %v2792
      %v2795 = vmul.f32 0.5, %v2794
      %v2796 = vsub.f32 1.5, %v2795
      %v2797 = vmul.f32 %v2792, %v2796
      %vm2798 = vweird.f32 %v2767
      %vm2799 = vweird.f32 %v2792
      %vm2800 = vmor %vm2798, %vm2799
      %v2801 = vsel %vm2800, %v2792, %v2797
      %v2802 = vrsqrt.pop %v2768
      %v2803 = vmul.f32 %v2802, %v2768
      %v2804 = vmul.f32 %v2803, %v2802
      %v2805 = vmul.f32 0.5, %v2804
      %v2806 = vsub.f32 1.5, %v2805
      %v2807 = vmul.f32 %v2802, %v2806
      %vm2808 = vweird.f32 %v2768
      %vm2809 = vweird.f32 %v2802
      %vm2810 = vmor %vm2808, %vm2809
      %v2811 = vsel %vm2810, %v2802, %v2807
      %v2812 = vrsqrt.pop %v2769
      %v2813 = vmul.f32 %v2812, %v2769
      %v2814 = vmul.f32 %v2813, %v2812
      %v2815 = vmul.f32 0.5, %v2814
      %v2816 = vsub.f32 1.5, %v2815
      %v2817 = vmul.f32 %v2812, %v2816
      %vm2818 = vweird.f32 %v2769
      %vm2819 = vweird.f32 %v2812
      %vm2820 = vmor %vm2818, %vm2819
      %v2821 = vsel %vm2820, %v2812, %v2817
      %v2822 = vrsqrt.pop %v2770
      %v2823 = vmul.f32 %v2822, %v2770
      %v2824 = vmul.f32 %v2823, %v2822
      %v2825 = vmul.f32 0.5, %v2824
      %v2826 = vsub.f32 1.5, %v2825
      %v2827 = vmul.f32 %v2822, %v2826
      %vm2828 = vweird.f32 %v2770
      %vm2829 = vweird.f32 %v2822
      %vm2830 = vmor %vm2828, %vm2829
      %v2831 = vsel %vm2830, %v2822, %v2827
      %v2832 = vrsqrt.pop %v2771
      %v2833 = vmul.f32 %v2832, %v2771
      %v2834 = vmul.f32 %v2833, %v2832
      %v2835 = vmul.f32 0.5, %v2834
      %v2836 = vsub.f32 1.5, %v2835
      %v2837 = vmul.f32 %v2832, %v2836
      %vm2838 = vweird.f32 %v2771
      %vm2839 = vweird.f32 %v2832
      %vm2840 = vmor %vm2838, %vm2839
      %v2841 = vsel %vm2840, %v2832, %v2837
      %v2842 = vrsqrt.pop %v2772
      %v2843 = vmul.f32 %v2842, %v2772
      %v2844 = vmul.f32 %v2843, %v2842
      %v2845 = vmul.f32 0.5, %v2844
      %v2846 = vsub.f32 1.5, %v2845
      %v2847 = vmul.f32 %v2842, %v2846
      %vm2848 = vweird.f32 %v2772
      %vm2849 = vweird.f32 %v2842
      %vm2850 = vmor %vm2848, %vm2849
      %v2851 = vsel %vm2850, %v2842, %v2847
      %v2852 = vrsqrt.pop %v2773
      %v2853 = vmul.f32 %v2852, %v2773
      %v2854 = vmul.f32 %v2853, %v2852
      %v2855 = vmul.f32 0.5, %v2854
      %v2856 = vsub.f32 1.5, %v2855
      %v2857 = vmul.f32 %v2852, %v2856
      %vm2858 = vweird.f32 %v2773
      %vm2859 = vweird.f32 %v2852
      %vm2860 = vmor %vm2858, %vm2859
      %v2861 = vsel %vm2860, %v2852, %v2857
      %v2862 = vrsqrt.pop %v2774
      %v2863 = vmul.f32 %v2862, %v2774
      %v2864 = vmul.f32 %v2863, %v2862
      %v2865 = vmul.f32 0.5, %v2864
      %v2866 = vsub.f32 1.5, %v2865
      %v2867 = vmul.f32 %v2862, %v2866
      %vm2868 = vweird.f32 %v2774
      %vm2869 = vweird.f32 %v2862
      %vm2870 = vmor %vm2868, %vm2869
      %v2871 = vsel %vm2870, %v2862, %v2867
      %v2872 = vrsqrt.pop %v2775
      %v2873 = vmul.f32 %v2872, %v2775
      %v2874 = vmul.f32 %v2873, %v2872
      %v2875 = vmul.f32 0.5, %v2874
      %v2876 = vsub.f32 1.5, %v2875
      %v2877 = vmul.f32 %v2872, %v2876
      %vm2878 = vweird.f32 %v2775
      %vm2879 = vweird.f32 %v2872
      %vm2880 = vmor %vm2878, %vm2879
      %v2881 = vsel %vm2880, %v2872, %v2877
      %v2882 = vrsqrt.pop %v2776
      %v2883 = vmul.f32 %v2882, %v2776
      %v2884 = vmul.f32 %v2883, %v2882
      %v2885 = vmul.f32 0.5, %v2884
      %v2886 = vsub.f32 1.5, %v2885
      %v2887 = vmul.f32 %v2882, %v2886
      %vm2888 = vweird.f32 %v2776
      %vm2889 = vweird.f32 %v2882
      %vm2890 = vmor %vm2888, %vm2889
      %v2891 = vsel %vm2890, %v2882, %v2887
      %v2892 = vrsqrt.pop %v2777
      %v2893 = vmul.f32 %v2892, %v2777
      %v2894 = vmul.f32 %v2893, %v2892
      %v2895 = vmul.f32 0.5, %v2894
      %v2896 = vsub.f32 1.5, %v2895
      %v2897 = vmul.f32 %v2892, %v2896
      %vm2898 = vweird.f32 %v2777
      %vm2899 = vweird.f32 %v2892
      %vm2900 = vmor %vm2898, %vm2899
      %v2901 = vsel %vm2900, %v2892, %v2897
      %v2902 = vrsqrt.pop %v2778
      %v2903 = vmul.f32 %v2902, %v2778
      %v2904 = vmul.f32 %v2903, %v2902
      %v2905 = vmul.f32 0.5, %v2904
      %v2906 = vsub.f32 1.5, %v2905
      %v2907 = vmul.f32 %v2902, %v2906
      %vm2908 = vweird.f32 %v2778
      %vm2909 = vweird.f32 %v2902
      %vm2910 = vmor %vm2908, %vm2909
      %v2911 = vsel %vm2910, %v2902, %v2907
      %v2912 = vrsqrt.pop %v2779
      %v2913 = vmul.f32 %v2912, %v2779
      %v2914 = vmul.f32 %v2913, %v2912
      %v2915 = vmul.f32 0.5, %v2914
      %v2916 = vsub.f32 1.5, %v2915
      %v2917 = vmul.f32 %v2912, %v2916
      %vm2918 = vweird.f32 %v2779
      %vm2919 = vweird.f32 %v2912
      %vm2920 = vmor %vm2918, %vm2919
      %v2921 = vsel %vm2920, %v2912, %v2917
      %v2922 = vrsqrt.pop %v2780
      %v2923 = vmul.f32 %v2922, %v2780
      %v2924 = vmul.f32 %v2923, %v2922
      %v2925 = vmul.f32 0.5, %v2924
      %v2926 = vsub.f32 1.5, %v2925
      %v2927 = vmul.f32 %v2922, %v2926
      %vm2928 = vweird.f32 %v2780
      %vm2929 = vweird.f32 %v2922
      %vm2930 = vmor %vm2928, %vm2929
      %v2931 = vsel %vm2930, %v2922, %v2927
      %v2932 = vrsqrt.pop %v2781
      %v2933 = vmul.f32 %v2932, %v2781
      %v2934 = vmul.f32 %v2933, %v2932
      %v2935 = vmul.f32 0.5, %v2934
      %v2936 = vsub.f32 1.5, %v2935
      %v2937 = vmul.f32 %v2932, %v2936
      %vm2938 = vweird.f32 %v2781
      %vm2939 = vweird.f32 %v2932
      %vm2940 = vmor %vm2938, %vm2939
      %v2941 = vsel %vm2940, %v2932, %v2937
      %v2942 = vmul.f32 %v2670, %v2791
      %v2943 = vmul.f32 %v2671, %v2801
      %v2944 = vmul.f32 %v2672, %v2811
      %v2945 = vmul.f32 %v2673, %v2821
      %v2946 = vmul.f32 %v2674, %v2831
      %v2947 = vmul.f32 %v2675, %v2841
      %v2948 = vmul.f32 %v2676, %v2851
      %v2949 = vmul.f32 %v2677, %v2861
      %v2950 = vmul.f32 %v2678, %v2871
      %v2951 = vmul.f32 %v2679, %v2881
      %v2952 = vmul.f32 %v2680, %v2891
      %v2953 = vmul.f32 %v2681, %v2901
      %v2954 = vmul.f32 %v2682, %v2911
      %v2955 = vmul.f32 %v2683, %v2921
      %v2956 = vmul.f32 %v2684, %v2931
      %v2957 = vmul.f32 %v2685, %v2941
      %v2959 = vperm.slane %v2597, 0
      %v2961 = vmul.f32 %v2942, %v2959
      %v2962 = vmul.f32 %v2943, %v2959
      %v2963 = vmul.f32 %v2944, %v2959
      %v2964 = vmul.f32 %v2945, %v2959
      %v2965 = vmul.f32 %v2946, %v2959
      %v2966 = vmul.f32 %v2947, %v2959
      %v2967 = vmul.f32 %v2948, %v2959
      %v2968 = vmul.f32 %v2949, %v2959
      %v2969 = vmul.f32 %v2950, %v2959
      %v2970 = vmul.f32 %v2951, %v2959
      %v2971 = vmul.f32 %v2952, %v2959
      %v2972 = vmul.f32 %v2953, %v2959
      %v2973 = vmul.f32 %v2954, %v2959
      %v2974 = vmul.f32 %v2955, %v2959
      %v2975 = vmul.f32 %v2956, %v2959
      %v2976 = vmul.f32 %v2957, %v2959
      %v2978 = vperm.slane %v2598, 0
      %v2980 = vadd.f32 %v2961, %v2978
      %v2981 = vadd.f32 %v2962, %v2978
      %v2982 = vadd.f32 %v2963, %v2978
      %v2983 = vadd.f32 %v2964, %v2978
      %v2984 = vadd.f32 %v2965, %v2978
      %v2985 = vadd.f32 %v2966, %v2978
      %v2986 = vadd.f32 %v2967, %v2978
      %v2987 = vadd.f32 %v2968, %v2978
      %v2988 = vadd.f32 %v2969, %v2978
      %v2989 = vadd.f32 %v2970, %v2978
      %v2990 = vadd.f32 %v2971, %v2978
      %v2991 = vadd.f32 %v2972, %v2978
      %v2992 = vadd.f32 %v2973, %v2978
      %v2993 = vadd.f32 %v2974, %v2978
      %v2994 = vadd.f32 %v2975, %v2978
      %v2995 = vadd.f32 %v2976, %v2978
      %v2996 = vpack.c.bf16 %v2981, %v2980
      %v2997 = vpack.c.bf16 %v2983, %v2982
      %v2998 = vpack.c.bf16 %v2985, %v2984
      %v2999 = vpack.c.bf16 %v2987, %v2986
      %v3000 = vpack.c.bf16 %v2989, %v2988
      %v3001 = vpack.c.bf16 %v2991, %v2990
      %v3002 = vpack.c.bf16 %v2993, %v2992
      %v3003 = vpack.c.bf16 %v2995, %v2994
      %v3004 = vld [vmem:[%s670] sm:$0xf]
      %v3005 = vld [vmem:[%s670 + $0x4] sm:$0xf]
      %v3006 = vld [vmem:[%s670 + $0x8] sm:$0xf]
      %v3007 = vld [vmem:[%s670 + $0xc] sm:$0xf]
      %v3008 = vld [vmem:[%s673] sm:$0x1]
      %v3010 = vperm.slane %v3008, 0
      %v3016 = vunpack.c.l.b16 %v3004
      %v3017 = vunpack.c.l.b16 %v3005
      %v3018 = vunpack.c.l.b16 %v3006
      %v3019 = vunpack.c.l.b16 %v3007
      %v3020 = vpack.c.b16 %v3017, %v3016
      %v3021 = vpack.c.b16 %v3019, %v3018
      %v3025 = vsel %vm928, %v2996, 0
      %v3028 = vsel %vm928, %v2997, 0
      %v3031 = vsel %vm928, %v2998, 0
      %v3034 = vsel %vm928, %v2999, 0
      %v3037 = vsel %vm928, %v3000, 0
      %v3040 = vsel %vm928, %v3001, 0
      %v3043 = vsel %vm928, %v3002, 0
      %v3046 = vsel %vm928, %v3003, 0
      %3048 = vmatpush.bf16.msra.mxu0 0
      %3049 = vmatpush.bf16.msra.mxu0 0
      %3050 = vmatpush.bf16.msra.mxu0 0
      %3051 = vmatpush.bf16.msra.mxu0 0
      %3052 = vmatpush.bf16.msra.mxu0 0
      %3053 = vmatpush.bf16.msra.mxu0 0
      %3054 = vmatpush.bf16.msra.mxu0 %v3021
      %3055 = vmatpush.bf16.msra.mxu0 %v3020
      %3056 = vmatmul.bf16.gmra.mxu0 %v3025
      %v3057 = vpop.f32.mrf.mxu0
      %v3058 = vadd.f32 %v3010, %v3057
      %v3059 = vpop.f32.mrf.mxu0
      %v3060 = vadd.f32 %v3010, %v3059
      %3061 = vmatmul.bf16.gmra.mxu0 %v3028
      %v3062 = vpop.f32.mrf.mxu0
      %v3063 = vadd.f32 %v3010, %v3062
      %v3064 = vpop.f32.mrf.mxu0
      %v3065 = vadd.f32 %v3010, %v3064
      %3066 = vmatmul.bf16.gmra.mxu0 %v3031
      %v3067 = vpop.f32.mrf.mxu0
      %v3068 = vadd.f32 %v3010, %v3067
      %v3069 = vpop.f32.mrf.mxu0
      %v3070 = vadd.f32 %v3010, %v3069
      %3071 = vmatmul.bf16.gmra.mxu0 %v3034
      %v3072 = vpop.f32.mrf.mxu0
      %v3073 = vadd.f32 %v3010, %v3072
      %v3074 = vpop.f32.mrf.mxu0
      %v3075 = vadd.f32 %v3010, %v3074
      %3076 = vmatmul.bf16.gmra.mxu0 %v3037
      %v3077 = vpop.f32.mrf.mxu0
      %v3078 = vadd.f32 %v3010, %v3077
      %v3079 = vpop.f32.mrf.mxu0
      %v3080 = vadd.f32 %v3010, %v3079
      %3081 = vmatmul.bf16.gmra.mxu0 %v3040
      %v3082 = vpop.f32.mrf.mxu0
      %v3083 = vadd.f32 %v3010, %v3082
      %v3084 = vpop.f32.mrf.mxu0
      %v3085 = vadd.f32 %v3010, %v3084
      %3086 = vmatmul.bf16.gmra.mxu0 %v3043
      %v3087 = vpop.f32.mrf.mxu0
      %v3088 = vadd.f32 %v3010, %v3087
      %v3089 = vpop.f32.mrf.mxu0
      %v3090 = vadd.f32 %v3010, %v3089
      %3091 = vmatmul.bf16.gmra.mxu0 %v3046
      %v3092 = vpop.f32.mrf.mxu0
      %v3093 = vadd.f32 %v3010, %v3092
      %v3094 = vpop.f32.mrf.mxu0
      %v3095 = vadd.f32 %v3010, %v3094
      %3096 = vdwg.mxu0
      %v3097 = vxor.u32 %v3058, 2147483648
      %v3098 = vxor.u32 %v3060, 2147483648
      %v3099 = vxor.u32 %v3063, 2147483648
      %v3100 = vxor.u32 %v3065, 2147483648
      %v3101 = vxor.u32 %v3068, 2147483648
      %v3102 = vxor.u32 %v3070, 2147483648
      %v3103 = vxor.u32 %v3073, 2147483648
      %v3104 = vxor.u32 %v3075, 2147483648
      %v3105 = vxor.u32 %v3078, 2147483648
      %v3106 = vxor.u32 %v3080, 2147483648
      %v3107 = vxor.u32 %v3083, 2147483648
      %v3108 = vxor.u32 %v3085, 2147483648
      %v3109 = vxor.u32 %v3088, 2147483648
      %v3110 = vxor.u32 %v3090, 2147483648
      %v3111 = vxor.u32 %v3093, 2147483648
      %v3112 = vxor.u32 %v3095, 2147483648
      %v3113 = vmul.f32 %v3097, 1.442695
      %v3114 = vpow.pop %v3113
      %v3115 = vmul.f32 %v3098, 1.442695
      %v3116 = vpow.pop %v3115
      %v3117 = vmul.f32 %v3099, 1.442695
      %v3118 = vpow.pop %v3117
      %v3119 = vmul.f32 %v3100, 1.442695
      %v3120 = vpow.pop %v3119
      %v3121 = vmul.f32 %v3101, 1.442695
      %v3122 = vpow.pop %v3121
      %v3123 = vmul.f32 %v3102, 1.442695
      %v3124 = vpow.pop %v3123
      %v3125 = vmul.f32 %v3103, 1.442695
      %v3126 = vpow.pop %v3125
      %v3127 = vmul.f32 %v3104, 1.442695
      %v3128 = vpow.pop %v3127
      %v3129 = vmul.f32 %v3105, 1.442695
      %v3130 = vpow.pop %v3129
      %v3131 = vmul.f32 %v3106, 1.442695
      %v3132 = vpow.pop %v3131
      %v3133 = vmul.f32 %v3107, 1.442695
      %v3134 = vpow.pop %v3133
      %v3135 = vmul.f32 %v3108, 1.442695
      %v3136 = vpow.pop %v3135
      %v3137 = vmul.f32 %v3109, 1.442695
      %v3138 = vpow.pop %v3137
      %v3139 = vmul.f32 %v3110, 1.442695
      %v3140 = vpow.pop %v3139
      %v3141 = vmul.f32 %v3111, 1.442695
      %v3142 = vpow.pop %v3141
      %v3143 = vmul.f32 %v3112, 1.442695
      %v3144 = vpow.pop %v3143
      %v3145 = vadd.f32 %v3114, 1.0
      %v3146 = vadd.f32 %v3116, 1.0
      %v3147 = vadd.f32 %v3118, 1.0
      %v3148 = vadd.f32 %v3120, 1.0
      %v3149 = vadd.f32 %v3122, 1.0
      %v3150 = vadd.f32 %v3124, 1.0
      %v3151 = vadd.f32 %v3126, 1.0
      %v3152 = vadd.f32 %v3128, 1.0
      %v3153 = vadd.f32 %v3130, 1.0
      %v3154 = vadd.f32 %v3132, 1.0
      %v3155 = vadd.f32 %v3134, 1.0
      %v3156 = vadd.f32 %v3136, 1.0
      %v3157 = vadd.f32 %v3138, 1.0
      %v3158 = vadd.f32 %v3140, 1.0
      %v3159 = vadd.f32 %v3142, 1.0
      %v3160 = vadd.f32 %v3144, 1.0
      %v3161 = vrcp.pop %v3145
      %v3162 = vmul.f32 %v3145, %v3161
      %v3163 = vsub.f32 1.0, %v3162
      %v3164 = vmul.f32 %v3161, %v3163
      %v3165 = vadd.f32 %v3161, %v3164
      %vm3166 = vweird.f32 %v3145
      %vm3167 = vweird.f32 %v3161
      %vm3168 = vmor %vm3166, %vm3167
      %v3169 = vsel %vm3168, %v3161, %v3165
      %v3170 = vand.u32 2147483647, %v3145
      %vm3171 = vcmp.eq.f32.partialorder %v3170, 8.507059e+37
      %v3172 = vand.u32 %v3145, 2147483648
      %v3173 = vor.u32 1.1754944e-38, %v3172
      %v3174 = vsel %vm3171, %v3173, %v3169
      %v3175 = vmul.f32 1.0, %v3174
      %v3176 = vrcp.pop %v3146
      %v3177 = vmul.f32 %v3146, %v3176
      %v3178 = vsub.f32 1.0, %v3177
      %v3179 = vmul.f32 %v3176, %v3178
      %v3180 = vadd.f32 %v3176, %v3179
      %vm3181 = vweird.f32 %v3146
      %vm3182 = vweird.f32 %v3176
      %vm3183 = vmor %vm3181, %vm3182
      %v3184 = vsel %vm3183, %v3176, %v3180
      %v3185 = vand.u32 2147483647, %v3146
      %vm3186 = vcmp.eq.f32.partialorder %v3185, 8.507059e+37
      %v3187 = vand.u32 %v3146, 2147483648
      %v3188 = vor.u32 1.1754944e-38, %v3187
      %v3189 = vsel %vm3186, %v3188, %v3184
      %v3190 = vmul.f32 1.0, %v3189
      %v3191 = vrcp.pop %v3147
      %v3192 = vmul.f32 %v3147, %v3191
      %v3193 = vsub.f32 1.0, %v3192
      %v3194 = vmul.f32 %v3191, %v3193
      %v3195 = vadd.f32 %v3191, %v3194
      %vm3196 = vweird.f32 %v3147
      %vm3197 = vweird.f32 %v3191
      %vm3198 = vmor %vm3196, %vm3197
      %v3199 = vsel %vm3198, %v3191, %v3195
      %v3200 = vand.u32 2147483647, %v3147
      %vm3201 = vcmp.eq.f32.partialorder %v3200, 8.507059e+37
      %v3202 = vand.u32 %v3147, 2147483648
      %v3203 = vor.u32 1.1754944e-38, %v3202
      %v3204 = vsel %vm3201, %v3203, %v3199
      %v3205 = vmul.f32 1.0, %v3204
      %v3206 = vrcp.pop %v3148
      %v3207 = vmul.f32 %v3148, %v3206
      %v3208 = vsub.f32 1.0, %v3207
      %v3209 = vmul.f32 %v3206, %v3208
      %v3210 = vadd.f32 %v3206, %v3209
      %vm3211 = vweird.f32 %v3148
      %vm3212 = vweird.f32 %v3206
      %vm3213 = vmor %vm3211, %vm3212
      %v3214 = vsel %vm3213, %v3206, %v3210
      %v3215 = vand.u32 2147483647, %v3148
      %vm3216 = vcmp.eq.f32.partialorder %v3215, 8.507059e+37
      %v3217 = vand.u32 %v3148, 2147483648
      %v3218 = vor.u32 1.1754944e-38, %v3217
      %v3219 = vsel %vm3216, %v3218, %v3214
      %v3220 = vmul.f32 1.0, %v3219
      %v3221 = vrcp.pop %v3149
      %v3222 = vmul.f32 %v3149, %v3221
      %v3223 = vsub.f32 1.0, %v3222
      %v3224 = vmul.f32 %v3221, %v3223
      %v3225 = vadd.f32 %v3221, %v3224
      %vm3226 = vweird.f32 %v3149
      %vm3227 = vweird.f32 %v3221
      %vm3228 = vmor %vm3226, %vm3227
      %v3229 = vsel %vm3228, %v3221, %v3225
      %v3230 = vand.u32 2147483647, %v3149
      %vm3231 = vcmp.eq.f32.partialorder %v3230, 8.507059e+37
      %v3232 = vand.u32 %v3149, 2147483648
      %v3233 = vor.u32 1.1754944e-38, %v3232
      %v3234 = vsel %vm3231, %v3233, %v3229
      %v3235 = vmul.f32 1.0, %v3234
      %v3236 = vrcp.pop %v3150
      %v3237 = vmul.f32 %v3150, %v3236
      %v3238 = vsub.f32 1.0, %v3237
      %v3239 = vmul.f32 %v3236, %v3238
      %v3240 = vadd.f32 %v3236, %v3239
      %vm3241 = vweird.f32 %v3150
      %vm3242 = vweird.f32 %v3236
      %vm3243 = vmor %vm3241, %vm3242
      %v3244 = vsel %vm3243, %v3236, %v3240
      %v3245 = vand.u32 2147483647, %v3150
      %vm3246 = vcmp.eq.f32.partialorder %v3245, 8.507059e+37
      %v3247 = vand.u32 %v3150, 2147483648
      %v3248 = vor.u32 1.1754944e-38, %v3247
      %v3249 = vsel %vm3246, %v3248, %v3244
      %v3250 = vmul.f32 1.0, %v3249
      %v3251 = vrcp.pop %v3151
      %v3252 = vmul.f32 %v3151, %v3251
      %v3253 = vsub.f32 1.0, %v3252
      %v3254 = vmul.f32 %v3251, %v3253
      %v3255 = vadd.f32 %v3251, %v3254
      %vm3256 = vweird.f32 %v3151
      %vm3257 = vweird.f32 %v3251
      %vm3258 = vmor %vm3256, %vm3257
      %v3259 = vsel %vm3258, %v3251, %v3255
      %v3260 = vand.u32 2147483647, %v3151
      %vm3261 = vcmp.eq.f32.partialorder %v3260, 8.507059e+37
      %v3262 = vand.u32 %v3151, 2147483648
      %v3263 = vor.u32 1.1754944e-38, %v3262
      %v3264 = vsel %vm3261, %v3263, %v3259
      %v3265 = vmul.f32 1.0, %v3264
      %v3266 = vrcp.pop %v3152
      %v3267 = vmul.f32 %v3152, %v3266
      %v3268 = vsub.f32 1.0, %v3267
      %v3269 = vmul.f32 %v3266, %v3268
      %v3270 = vadd.f32 %v3266, %v3269
      %vm3271 = vweird.f32 %v3152
      %vm3272 = vweird.f32 %v3266
      %vm3273 = vmor %vm3271, %vm3272
      %v3274 = vsel %vm3273, %v3266, %v3270
      %v3275 = vand.u32 2147483647, %v3152
      %vm3276 = vcmp.eq.f32.partialorder %v3275, 8.507059e+37
      %v3277 = vand.u32 %v3152, 2147483648
      %v3278 = vor.u32 1.1754944e-38, %v3277
      %v3279 = vsel %vm3276, %v3278, %v3274
      %v3280 = vmul.f32 1.0, %v3279
      %v3281 = vrcp.pop %v3153
      %v3282 = vmul.f32 %v3153, %v3281
      %v3283 = vsub.f32 1.0, %v3282
      %v3284 = vmul.f32 %v3281, %v3283
      %v3285 = vadd.f32 %v3281, %v3284
      %vm3286 = vweird.f32 %v3153
      %vm3287 = vweird.f32 %v3281
      %vm3288 = vmor %vm3286, %vm3287
      %v3289 = vsel %vm3288, %v3281, %v3285
      %v3290 = vand.u32 2147483647, %v3153
      %vm3291 = vcmp.eq.f32.partialorder %v3290, 8.507059e+37
      %v3292 = vand.u32 %v3153, 2147483648
      %v3293 = vor.u32 1.1754944e-38, %v3292
      %v3294 = vsel %vm3291, %v3293, %v3289
      %v3295 = vmul.f32 1.0, %v3294
      %v3296 = vrcp.pop %v3154
      %v3297 = vmul.f32 %v3154, %v3296
      %v3298 = vsub.f32 1.0, %v3297
      %v3299 = vmul.f32 %v3296, %v3298
      %v3300 = vadd.f32 %v3296, %v3299
      %vm3301 = vweird.f32 %v3154
      %vm3302 = vweird.f32 %v3296
      %vm3303 = vmor %vm3301, %vm3302
      %v3304 = vsel %vm3303, %v3296, %v3300
      %v3305 = vand.u32 2147483647, %v3154
      %vm3306 = vcmp.eq.f32.partialorder %v3305, 8.507059e+37
      %v3307 = vand.u32 %v3154, 2147483648
      %v3308 = vor.u32 1.1754944e-38, %v3307
      %v3309 = vsel %vm3306, %v3308, %v3304
      %v3310 = vmul.f32 1.0, %v3309
      %v3311 = vrcp.pop %v3155
      %v3312 = vmul.f32 %v3155, %v3311
      %v3313 = vsub.f32 1.0, %v3312
      %v3314 = vmul.f32 %v3311, %v3313
      %v3315 = vadd.f32 %v3311, %v3314
      %vm3316 = vweird.f32 %v3155
      %vm3317 = vweird.f32 %v3311
      %vm3318 = vmor %vm3316, %vm3317
      %v3319 = vsel %vm3318, %v3311, %v3315
      %v3320 = vand.u32 2147483647, %v3155
      %vm3321 = vcmp.eq.f32.partialorder %v3320, 8.507059e+37
      %v3322 = vand.u32 %v3155, 2147483648
      %v3323 = vor.u32 1.1754944e-38, %v3322
      %v3324 = vsel %vm3321, %v3323, %v3319
      %v3325 = vmul.f32 1.0, %v3324
      %v3326 = vrcp.pop %v3156
      %v3327 = vmul.f32 %v3156, %v3326
      %v3328 = vsub.f32 1.0, %v3327
      %v3329 = vmul.f32 %v3326, %v3328
      %v3330 = vadd.f32 %v3326, %v3329
      %vm3331 = vweird.f32 %v3156
      %vm3332 = vweird.f32 %v3326
      %vm3333 = vmor %vm3331, %vm3332
      %v3334 = vsel %vm3333, %v3326, %v3330
      %v3335 = vand.u32 2147483647, %v3156
      %vm3336 = vcmp.eq.f32.partialorder %v3335, 8.507059e+37
      %v3337 = vand.u32 %v3156, 2147483648
      %v3338 = vor.u32 1.1754944e-38, %v3337
      %v3339 = vsel %vm3336, %v3338, %v3334
      %v3340 = vmul.f32 1.0, %v3339
      %v3341 = vrcp.pop %v3157
      %v3342 = vmul.f32 %v3157, %v3341
      %v3343 = vsub.f32 1.0, %v3342
      %v3344 = vmul.f32 %v3341, %v3343
      %v3345 = vadd.f32 %v3341, %v3344
      %vm3346 = vweird.f32 %v3157
      %vm3347 = vweird.f32 %v3341
      %vm3348 = vmor %vm3346, %vm3347
      %v3349 = vsel %vm3348, %v3341, %v3345
      %v3350 = vand.u32 2147483647, %v3157
      %vm3351 = vcmp.eq.f32.partialorder %v3350, 8.507059e+37
      %v3352 = vand.u32 %v3157, 2147483648
      %v3353 = vor.u32 1.1754944e-38, %v3352
      %v3354 = vsel %vm3351, %v3353, %v3349
      %v3355 = vmul.f32 1.0, %v3354
      %v3356 = vrcp.pop %v3158
      %v3357 = vmul.f32 %v3158, %v3356
      %v3358 = vsub.f32 1.0, %v3357
      %v3359 = vmul.f32 %v3356, %v3358
      %v3360 = vadd.f32 %v3356, %v3359
      %vm3361 = vweird.f32 %v3158
      %vm3362 = vweird.f32 %v3356
      %vm3363 = vmor %vm3361, %vm3362
      %v3364 = vsel %vm3363, %v3356, %v3360
      %v3365 = vand.u32 2147483647, %v3158
      %vm3366 = vcmp.eq.f32.partialorder %v3365, 8.507059e+37
      %v3367 = vand.u32 %v3158, 2147483648
      %v3368 = vor.u32 1.1754944e-38, %v3367
      %v3369 = vsel %vm3366, %v3368, %v3364
      %v3370 = vmul.f32 1.0, %v3369
      %v3371 = vrcp.pop %v3159
      %v3372 = vmul.f32 %v3159, %v3371
      %v3373 = vsub.f32 1.0, %v3372
      %v3374 = vmul.f32 %v3371, %v3373
      %v3375 = vadd.f32 %v3371, %v3374
      %vm3376 = vweird.f32 %v3159
      %vm3377 = vweird.f32 %v3371
      %vm3378 = vmor %vm3376, %vm3377
      %v3379 = vsel %vm3378, %v3371, %v3375
      %v3380 = vand.u32 2147483647, %v3159
      %vm3381 = vcmp.eq.f32.partialorder %v3380, 8.507059e+37
      %v3382 = vand.u32 %v3159, 2147483648
      %v3383 = vor.u32 1.1754944e-38, %v3382
      %v3384 = vsel %vm3381, %v3383, %v3379
      %v3385 = vmul.f32 1.0, %v3384
      %v3386 = vrcp.pop %v3160
      %v3387 = vmul.f32 %v3160, %v3386
      %v3388 = vsub.f32 1.0, %v3387
      %v3389 = vmul.f32 %v3386, %v3388
      %v3390 = vadd.f32 %v3386, %v3389
      %vm3391 = vweird.f32 %v3160
      %vm3392 = vweird.f32 %v3386
      %vm3393 = vmor %vm3391, %vm3392
      %v3394 = vsel %vm3393, %v3386, %v3390
      %v3395 = vand.u32 2147483647, %v3160
      %vm3396 = vcmp.eq.f32.partialorder %v3395, 8.507059e+37
      %v3397 = vand.u32 %v3160, 2147483648
      %v3398 = vor.u32 1.1754944e-38, %v3397
      %v3399 = vsel %vm3396, %v3398, %v3394
      %v3400 = vmul.f32 1.0, %v3399
      %v3401 = vmul.f32 %v3058, %v3175
      %v3402 = vmul.f32 %v3060, %v3190
      %v3403 = vmul.f32 %v3063, %v3205
      %v3404 = vmul.f32 %v3065, %v3220
      %v3405 = vmul.f32 %v3068, %v3235
      %v3406 = vmul.f32 %v3070, %v3250
      %v3407 = vmul.f32 %v3073, %v3265
      %v3408 = vmul.f32 %v3075, %v3280
      %v3409 = vmul.f32 %v3078, %v3295
      %v3410 = vmul.f32 %v3080, %v3310
      %v3411 = vmul.f32 %v3083, %v3325
      %v3412 = vmul.f32 %v3085, %v3340
      %v3413 = vmul.f32 %v3088, %v3355
      %v3414 = vmul.f32 %v3090, %v3370
      %v3415 = vmul.f32 %v3093, %v3385
      %v3416 = vmul.f32 %v3095, %v3400
      %v3417 = vpack.c.bf16 %v3402, %v3401
      %v3418 = vpack.c.bf16 %v3404, %v3403
      %v3419 = vpack.c.bf16 %v3406, %v3405
      %v3420 = vpack.c.bf16 %v3408, %v3407
      %v3421 = vpack.c.bf16 %v3410, %v3409
      %v3422 = vpack.c.bf16 %v3412, %v3411
      %v3423 = vpack.c.bf16 %v3414, %v3413
      %v3424 = vpack.c.bf16 %v3416, %v3415
      %v3425 = vld [vmem:[%s678] sm:$0xf]
      %v3426 = vld [vmem:[%s678 + $0x4] sm:$0xf]
      %v3427 = vld [vmem:[%s678 + $0x8] sm:$0xf]
      %v3428 = vld [vmem:[%s678 + $0xc] sm:$0xf]
      %v3429 = vld [vmem:[%s681] sm:$0x1]
      %v3431 = vperm.slane %v3429, 0
      %v3437 = vunpack.c.l.b16 %v3425
      %v3438 = vunpack.c.l.b16 %v3426
      %v3439 = vunpack.c.l.b16 %v3427
      %v3440 = vunpack.c.l.b16 %v3428
      %v3441 = vpack.c.b16 %v3438, %v3437
      %v3442 = vpack.c.b16 %v3440, %v3439
      %v3446 = vsel %vm928, %v3417, 0
      %v3449 = vsel %vm928, %v3418, 0
      %v3452 = vsel %vm928, %v3419, 0
      %v3455 = vsel %vm928, %v3420, 0
      %v3458 = vsel %vm928, %v3421, 0
      %v3461 = vsel %vm928, %v3422, 0
      %v3464 = vsel %vm928, %v3423, 0
      %v3467 = vsel %vm928, %v3424, 0
      %3469 = vmatpush.bf16.msra.mxu0 0
      %3470 = vmatpush.bf16.msra.mxu0 0
      %3471 = vmatpush.bf16.msra.mxu0 0
      %3472 = vmatpush.bf16.msra.mxu0 0
      %3473 = vmatpush.bf16.msra.mxu0 0
      %3474 = vmatpush.bf16.msra.mxu0 0
      %3475 = vmatpush.bf16.msra.mxu0 %v3442
      %3476 = vmatpush.bf16.msra.mxu0 %v3441
      %3477 = vmatmul.bf16.gmra.mxu0 %v3446
      %v3478 = vpop.f32.mrf.mxu0
      %v3479 = vadd.f32 %v3431, %v3478
      %v3480 = vpop.f32.mrf.mxu0
      %v3481 = vadd.f32 %v3431, %v3480
      %3482 = vmatmul.bf16.gmra.mxu0 %v3449
      %v3483 = vpop.f32.mrf.mxu0
      %v3484 = vadd.f32 %v3431, %v3483
      %v3485 = vpop.f32.mrf.mxu0
      %v3486 = vadd.f32 %v3431, %v3485
      %3487 = vmatmul.bf16.gmra.mxu0 %v3452
      %v3488 = vpop.f32.mrf.mxu0
      %v3489 = vadd.f32 %v3431, %v3488
      %v3490 = vpop.f32.mrf.mxu0
      %v3491 = vadd.f32 %v3431, %v3490
      %3492 = vmatmul.bf16.gmra.mxu0 %v3455
      %v3493 = vpop.f32.mrf.mxu0
      %v3494 = vadd.f32 %v3431, %v3493
      %v3495 = vpop.f32.mrf.mxu0
      %v3496 = vadd.f32 %v3431, %v3495
      %3497 = vmatmul.bf16.gmra.mxu0 %v3458
      %v3498 = vpop.f32.mrf.mxu0
      %v3499 = vadd.f32 %v3431, %v3498
      %v3500 = vpop.f32.mrf.mxu0
      %v3501 = vadd.f32 %v3431, %v3500
      %3502 = vmatmul.bf16.gmra.mxu0 %v3461
      %v3503 = vpop.f32.mrf.mxu0
      %v3504 = vadd.f32 %v3431, %v3503
      %v3505 = vpop.f32.mrf.mxu0
      %v3506 = vadd.f32 %v3431, %v3505
      %3507 = vmatmul.bf16.gmra.mxu0 %v3464
      %v3508 = vpop.f32.mrf.mxu0
      %v3509 = vadd.f32 %v3431, %v3508
      %v3510 = vpop.f32.mrf.mxu0
      %v3511 = vadd.f32 %v3431, %v3510
      %3512 = vmatmul.bf16.gmra.mxu0 %v3467
      %v3513 = vpop.f32.mrf.mxu0
      %v3514 = vadd.f32 %v3431, %v3513
      %v3515 = vpop.f32.mrf.mxu0
      %v3516 = vadd.f32 %v3431, %v3515
      %3517 = vdwg.mxu0
      %v3518 = vadd.f32 %v2980, %v3479
      %v3519 = vadd.f32 %v2981, %v3481
      %v3520 = vadd.f32 %v2982, %v3484
      %v3521 = vadd.f32 %v2983, %v3486
      %v3522 = vadd.f32 %v2984, %v3489
      %v3523 = vadd.f32 %v2985, %v3491
      %v3524 = vadd.f32 %v2986, %v3494
      %v3525 = vadd.f32 %v2987, %v3496
      %v3526 = vadd.f32 %v2988, %v3499
      %v3527 = vadd.f32 %v2989, %v3501
      %v3528 = vadd.f32 %v2990, %v3504
      %v3529 = vadd.f32 %v2991, %v3506
      %v3530 = vadd.f32 %v2992, %v3509
      %v3531 = vadd.f32 %v2993, %v3511
      %v3532 = vadd.f32 %v2994, %v3514
      %v3533 = vadd.f32 %v2995, %v3516
      %v3534 = vld [vmem:[%s684] sm:$0x1]
      %v3535 = vld [vmem:[%s687] sm:$0x1]
      %v3536 = vsel %vm928, %v3518, 0.0
      %3537 = vadd.xlane.f32.xlu0 %v3536
      %v3538 = vpop.xlane.xlu0 %3537
      %v3539 = vsel %vm928, %v3519, 0.0
      %3540 = vadd.xlane.f32.xlu0 %v3539
      %v3541 = vpop.xlane.xlu0 %3540
      %v3542 = vsel %vm928, %v3520, 0.0
      %3543 = vadd.xlane.f32.xlu0 %v3542
      %v3544 = vpop.xlane.xlu0 %3543
      %v3545 = vsel %vm928, %v3521, 0.0
      %3546 = vadd.xlane.f32.xlu0 %v3545
      %v3547 = vpop.xlane.xlu0 %3546
      %v3548 = vsel %vm928, %v3522, 0.0
      %3549 = vadd.xlane.f32.xlu0 %v3548
      %v3550 = vpop.xlane.xlu0 %3549
      %v3551 = vsel %vm928, %v3523, 0.0
      %3552 = vadd.xlane.f32.xlu0 %v3551
      %v3553 = vpop.xlane.xlu0 %3552
      %v3554 = vsel %vm928, %v3524, 0.0
      %3555 = vadd.xlane.f32.xlu0 %v3554
      %v3556 = vpop.xlane.xlu0 %3555
      %v3557 = vsel %vm928, %v3525, 0.0
      %3558 = vadd.xlane.f32.xlu0 %v3557
      %v3559 = vpop.xlane.xlu0 %3558
      %v3560 = vsel %vm928, %v3526, 0.0
      %3561 = vadd.xlane.f32.xlu0 %v3560
      %v3562 = vpop.xlane.xlu0 %3561
      %v3563 = vsel %vm928, %v3527, 0.0
      %3564 = vadd.xlane.f32.xlu0 %v3563
      %v3565 = vpop.xlane.xlu0 %3564
      %v3566 = vsel %vm928, %v3528, 0.0
      %3567 = vadd.xlane.f32.xlu0 %v3566
      %v3568 = vpop.xlane.xlu0 %3567
      %v3569 = vsel %vm928, %v3529, 0.0
      %3570 = vadd.xlane.f32.xlu0 %v3569
      %v3571 = vpop.xlane.xlu0 %3570
      %v3572 = vsel %vm928, %v3530, 0.0
      %3573 = vadd.xlane.f32.xlu0 %v3572
      %v3574 = vpop.xlane.xlu0 %3573
      %v3575 = vsel %vm928, %v3531, 0.0
      %3576 = vadd.xlane.f32.xlu0 %v3575
      %v3577 = vpop.xlane.xlu0 %3576
      %v3578 = vsel %vm928, %v3532, 0.0
      %3579 = vadd.xlane.f32.xlu0 %v3578
      %v3580 = vpop.xlane.xlu0 %3579
      %v3581 = vsel %vm928, %v3533, 0.0
      %3582 = vadd.xlane.f32.xlu0 %v3581
      %v3583 = vpop.xlane.xlu0 %3582
      %v3584 = vmul.f32 %v3538, %v2653
      %v3585 = vmul.f32 %v3541, %v2653
      %v3586 = vmul.f32 %v3544, %v2653
      %v3587 = vmul.f32 %v3547, %v2653
      %v3588 = vmul.f32 %v3550, %v2653
      %v3589 = vmul.f32 %v3553, %v2653
      %v3590 = vmul.f32 %v3556, %v2653
      %v3591 = vmul.f32 %v3559, %v2653
      %v3592 = vmul.f32 %v3562, %v2653
      %v3593 = vmul.f32 %v3565, %v2653
      %v3594 = vmul.f32 %v3568, %v2653
      %v3595 = vmul.f32 %v3571, %v2653
      %v3596 = vmul.f32 %v3574, %v2653
      %v3597 = vmul.f32 %v3577, %v2653
      %v3598 = vmul.f32 %v3580, %v2653
      %v3599 = vmul.f32 %v3583, %v2653
      %v3600 = vsub.f32 %v3518, %v3584
      %v3601 = vsub.f32 %v3519, %v3585
      %v3602 = vsub.f32 %v3520, %v3586
      %v3603 = vsub.f32 %v3521, %v3587
      %v3604 = vsub.f32 %v3522, %v3588
      %v3605 = vsub.f32 %v3523, %v3589
      %v3606 = vsub.f32 %v3524, %v3590
      %v3607 = vsub.f32 %v3525, %v3591
      %v3608 = vsub.f32 %v3526, %v3592
      %v3609 = vsub.f32 %v3527, %v3593
      %v3610 = vsub.f32 %v3528, %v3594
      %v3611 = vsub.f32 %v3529, %v3595
      %v3612 = vsub.f32 %v3530, %v3596
      %v3613 = vsub.f32 %v3531, %v3597
      %v3614 = vsub.f32 %v3532, %v3598
      %v3615 = vsub.f32 %v3533, %v3599
      %v3616 = vmul.f32 %v3600, %v3600
      %v3617 = vmul.f32 %v3601, %v3601
      %v3618 = vmul.f32 %v3602, %v3602
      %v3619 = vmul.f32 %v3603, %v3603
      %v3620 = vmul.f32 %v3604, %v3604
      %v3621 = vmul.f32 %v3605, %v3605
      %v3622 = vmul.f32 %v3606, %v3606
      %v3623 = vmul.f32 %v3607, %v3607
      %v3624 = vmul.f32 %v3608, %v3608
      %v3625 = vmul.f32 %v3609, %v3609
      %v3626 = vmul.f32 %v3610, %v3610
      %v3627 = vmul.f32 %v3611, %v3611
      %v3628 = vmul.f32 %v3612, %v3612
      %v3629 = vmul.f32 %v3613, %v3613
      %v3630 = vmul.f32 %v3614, %v3614
      %v3631 = vmul.f32 %v3615, %v3615
      %v3632 = vsel %vm928, %v3616, 0.0
      %3633 = vadd.xlane.f32.xlu0 %v3632
      %v3634 = vpop.xlane.xlu0 %3633
      %v3635 = vsel %vm928, %v3617, 0.0
      %3636 = vadd.xlane.f32.xlu0 %v3635
      %v3637 = vpop.xlane.xlu0 %3636
      %v3638 = vsel %vm928, %v3618, 0.0
      %3639 = vadd.xlane.f32.xlu0 %v3638
      %v3640 = vpop.xlane.xlu0 %3639
      %v3641 = vsel %vm928, %v3619, 0.0
      %3642 = vadd.xlane.f32.xlu0 %v3641
      %v3643 = vpop.xlane.xlu0 %3642
      %v3644 = vsel %vm928, %v3620, 0.0
      %3645 = vadd.xlane.f32.xlu0 %v3644
      %v3646 = vpop.xlane.xlu0 %3645
      %v3647 = vsel %vm928, %v3621, 0.0
      %3648 = vadd.xlane.f32.xlu0 %v3647
      %v3649 = vpop.xlane.xlu0 %3648
      %v3650 = vsel %vm928, %v3622, 0.0
      %3651 = vadd.xlane.f32.xlu0 %v3650
      %v3652 = vpop.xlane.xlu0 %3651
      %v3653 = vsel %vm928, %v3623, 0.0
      %3654 = vadd.xlane.f32.xlu0 %v3653
      %v3655 = vpop.xlane.xlu0 %3654
      %v3656 = vsel %vm928, %v3624, 0.0
      %3657 = vadd.xlane.f32.xlu0 %v3656
      %v3658 = vpop.xlane.xlu0 %3657
      %v3659 = vsel %vm928, %v3625, 0.0
      %3660 = vadd.xlane.f32.xlu0 %v3659
      %v3661 = vpop.xlane.xlu0 %3660
      %v3662 = vsel %vm928, %v3626, 0.0
      %3663 = vadd.xlane.f32.xlu0 %v3662
      %v3664 = vpop.xlane.xlu0 %3663
      %v3665 = vsel %vm928, %v3627, 0.0
      %3666 = vadd.xlane.f32.xlu0 %v3665
      %v3667 = vpop.xlane.xlu0 %3666
      %v3668 = vsel %vm928, %v3628, 0.0
      %3669 = vadd.xlane.f32.xlu0 %v3668
      %v3670 = vpop.xlane.xlu0 %3669
      %v3671 = vsel %vm928, %v3629, 0.0
      %3672 = vadd.xlane.f32.xlu0 %v3671
      %v3673 = vpop.xlane.xlu0 %3672
      %v3674 = vsel %vm928, %v3630, 0.0
      %3675 = vadd.xlane.f32.xlu0 %v3674
      %v3676 = vpop.xlane.xlu0 %3675
      %v3677 = vsel %vm928, %v3631, 0.0
      %3678 = vadd.xlane.f32.xlu0 %v3677
      %v3679 = vpop.xlane.xlu0 %3678
      %v3680 = vmul.f32 %v3634, %v2653
      %v3681 = vmul.f32 %v3637, %v2653
      %v3682 = vmul.f32 %v3640, %v2653
      %v3683 = vmul.f32 %v3643, %v2653
      %v3684 = vmul.f32 %v3646, %v2653
      %v3685 = vmul.f32 %v3649, %v2653
      %v3686 = vmul.f32 %v3652, %v2653
      %v3687 = vmul.f32 %v3655, %v2653
      %v3688 = vmul.f32 %v3658, %v2653
      %v3689 = vmul.f32 %v3661, %v2653
      %v3690 = vmul.f32 %v3664, %v2653
      %v3691 = vmul.f32 %v3667, %v2653
      %v3692 = vmul.f32 %v3670, %v2653
      %v3693 = vmul.f32 %v3673, %v2653
      %v3694 = vmul.f32 %v3676, %v2653
      %v3695 = vmul.f32 %v3679, %v2653
      %v3696 = vadd.f32 %v3680, 1e-05
      %v3697 = vadd.f32 %v3681, 1e-05
      %v3698 = vadd.f32 %v3682, 1e-05
      %v3699 = vadd.f32 %v3683, 1e-05
      %v3700 = vadd.f32 %v3684, 1e-05
      %v3701 = vadd.f32 %v3685, 1e-05
      %v3702 = vadd.f32 %v3686, 1e-05
      %v3703 = vadd.f32 %v3687, 1e-05
      %v3704 = vadd.f32 %v3688, 1e-05
      %v3705 = vadd.f32 %v3689, 1e-05
      %v3706 = vadd.f32 %v3690, 1e-05
      %v3707 = vadd.f32 %v3691, 1e-05
      %v3708 = vadd.f32 %v3692, 1e-05
      %v3709 = vadd.f32 %v3693, 1e-05
      %v3710 = vadd.f32 %v3694, 1e-05
      %v3711 = vadd.f32 %v3695, 1e-05
      %v3712 = vrsqrt.pop %v3696
      %v3713 = vmul.f32 %v3712, %v3696
      %v3714 = vmul.f32 %v3713, %v3712
      %v3715 = vmul.f32 0.5, %v3714
      %v3716 = vsub.f32 1.5, %v3715
      %v3717 = vmul.f32 %v3712, %v3716
      %vm3718 = vweird.f32 %v3696
      %vm3719 = vweird.f32 %v3712
      %vm3720 = vmor %vm3718, %vm3719
      %v3721 = vsel %vm3720, %v3712, %v3717
      %v3722 = vrsqrt.pop %v3697
      %v3723 = vmul.f32 %v3722, %v3697
      %v3724 = vmul.f32 %v3723, %v3722
      %v3725 = vmul.f32 0.5, %v3724
      %v3726 = vsub.f32 1.5, %v3725
      %v3727 = vmul.f32 %v3722, %v3726
      %vm3728 = vweird.f32 %v3697
      %vm3729 = vweird.f32 %v3722
      %vm3730 = vmor %vm3728, %vm3729
      %v3731 = vsel %vm3730, %v3722, %v3727
      %v3732 = vrsqrt.pop %v3698
      %v3733 = vmul.f32 %v3732, %v3698
      %v3734 = vmul.f32 %v3733, %v3732
      %v3735 = vmul.f32 0.5, %v3734
      %v3736 = vsub.f32 1.5, %v3735
      %v3737 = vmul.f32 %v3732, %v3736
      %vm3738 = vweird.f32 %v3698
      %vm3739 = vweird.f32 %v3732
      %vm3740 = vmor %vm3738, %vm3739
      %v3741 = vsel %vm3740, %v3732, %v3737
      %v3742 = vrsqrt.pop %v3699
      %v3743 = vmul.f32 %v3742, %v3699
      %v3744 = vmul.f32 %v3743, %v3742
      %v3745 = vmul.f32 0.5, %v3744
      %v3746 = vsub.f32 1.5, %v3745
      %v3747 = vmul.f32 %v3742, %v3746
      %vm3748 = vweird.f32 %v3699
      %vm3749 = vweird.f32 %v3742
      %vm3750 = vmor %vm3748, %vm3749
      %v3751 = vsel %vm3750, %v3742, %v3747
      %v3752 = vrsqrt.pop %v3700
      %v3753 = vmul.f32 %v3752, %v3700
      %v3754 = vmul.f32 %v3753, %v3752
      %v3755 = vmul.f32 0.5, %v3754
      %v3756 = vsub.f32 1.5, %v3755
      %v3757 = vmul.f32 %v3752, %v3756
      %vm3758 = vweird.f32 %v3700
      %vm3759 = vweird.f32 %v3752
      %vm3760 = vmor %vm3758, %vm3759
      %v3761 = vsel %vm3760, %v3752, %v3757
      %v3762 = vrsqrt.pop %v3701
      %v3763 = vmul.f32 %v3762, %v3701
      %v3764 = vmul.f32 %v3763, %v3762
      %v3765 = vmul.f32 0.5, %v3764
      %v3766 = vsub.f32 1.5, %v3765
      %v3767 = vmul.f32 %v3762, %v3766
      %vm3768 = vweird.f32 %v3701
      %vm3769 = vweird.f32 %v3762
      %vm3770 = vmor %vm3768, %vm3769
      %v3771 = vsel %vm3770, %v3762, %v3767
      %v3772 = vrsqrt.pop %v3702
      %v3773 = vmul.f32 %v3772, %v3702
      %v3774 = vmul.f32 %v3773, %v3772
      %v3775 = vmul.f32 0.5, %v3774
      %v3776 = vsub.f32 1.5, %v3775
      %v3777 = vmul.f32 %v3772, %v3776
      %vm3778 = vweird.f32 %v3702
      %vm3779 = vweird.f32 %v3772
      %vm3780 = vmor %vm3778, %vm3779
      %v3781 = vsel %vm3780, %v3772, %v3777
      %v3782 = vrsqrt.pop %v3703
      %v3783 = vmul.f32 %v3782, %v3703
      %v3784 = vmul.f32 %v3783, %v3782
      %v3785 = vmul.f32 0.5, %v3784
      %v3786 = vsub.f32 1.5, %v3785
      %v3787 = vmul.f32 %v3782, %v3786
      %vm3788 = vweird.f32 %v3703
      %vm3789 = vweird.f32 %v3782
      %vm3790 = vmor %vm3788, %vm3789
      %v3791 = vsel %vm3790, %v3782, %v3787
      %v3792 = vrsqrt.pop %v3704
      %v3793 = vmul.f32 %v3792, %v3704
      %v3794 = vmul.f32 %v3793, %v3792
      %v3795 = vmul.f32 0.5, %v3794
      %v3796 = vsub.f32 1.5, %v3795
      %v3797 = vmul.f32 %v3792, %v3796
      %vm3798 = vweird.f32 %v3704
      %vm3799 = vweird.f32 %v3792
      %vm3800 = vmor %vm3798, %vm3799
      %v3801 = vsel %vm3800, %v3792, %v3797
      %v3802 = vrsqrt.pop %v3705
      %v3803 = vmul.f32 %v3802, %v3705
      %v3804 = vmul.f32 %v3803, %v3802
      %v3805 = vmul.f32 0.5, %v3804
      %v3806 = vsub.f32 1.5, %v3805
      %v3807 = vmul.f32 %v3802, %v3806
      %vm3808 = vweird.f32 %v3705
      %vm3809 = vweird.f32 %v3802
      %vm3810 = vmor %vm3808, %vm3809
      %v3811 = vsel %vm3810, %v3802, %v3807
      %v3812 = vrsqrt.pop %v3706
      %v3813 = vmul.f32 %v3812, %v3706
      %v3814 = vmul.f32 %v3813, %v3812
      %v3815 = vmul.f32 0.5, %v3814
      %v3816 = vsub.f32 1.5, %v3815
      %v3817 = vmul.f32 %v3812, %v3816
      %vm3818 = vweird.f32 %v3706
      %vm3819 = vweird.f32 %v3812
      %vm3820 = vmor %vm3818, %vm3819
      %v3821 = vsel %vm3820, %v3812, %v3817
      %v3822 = vrsqrt.pop %v3707
      %v3823 = vmul.f32 %v3822, %v3707
      %v3824 = vmul.f32 %v3823, %v3822
      %v3825 = vmul.f32 0.5, %v3824
      %v3826 = vsub.f32 1.5, %v3825
      %v3827 = vmul.f32 %v3822, %v3826
      %vm3828 = vweird.f32 %v3707
      %vm3829 = vweird.f32 %v3822
      %vm3830 = vmor %vm3828, %vm3829
      %v3831 = vsel %vm3830, %v3822, %v3827
      %v3832 = vrsqrt.pop %v3708
      %v3833 = vmul.f32 %v3832, %v3708
      %v3834 = vmul.f32 %v3833, %v3832
      %v3835 = vmul.f32 0.5, %v3834
      %v3836 = vsub.f32 1.5, %v3835
      %v3837 = vmul.f32 %v3832, %v3836
      %vm3838 = vweird.f32 %v3708
      %vm3839 = vweird.f32 %v3832
      %vm3840 = vmor %vm3838, %vm3839
      %v3841 = vsel %vm3840, %v3832, %v3837
      %v3842 = vrsqrt.pop %v3709
      %v3843 = vmul.f32 %v3842, %v3709
      %v3844 = vmul.f32 %v3843, %v3842
      %v3845 = vmul.f32 0.5, %v3844
      %v3846 = vsub.f32 1.5, %v3845
      %v3847 = vmul.f32 %v3842, %v3846
      %vm3848 = vweird.f32 %v3709
      %vm3849 = vweird.f32 %v3842
      %vm3850 = vmor %vm3848, %vm3849
      %v3851 = vsel %vm3850, %v3842, %v3847
      %v3852 = vrsqrt.pop %v3710
      %v3853 = vmul.f32 %v3852, %v3710
      %v3854 = vmul.f32 %v3853, %v3852
      %v3855 = vmul.f32 0.5, %v3854
      %v3856 = vsub.f32 1.5, %v3855
      %v3857 = vmul.f32 %v3852, %v3856
      %vm3858 = vweird.f32 %v3710
      %vm3859 = vweird.f32 %v3852
      %vm3860 = vmor %vm3858, %vm3859
      %v3861 = vsel %vm3860, %v3852, %v3857
      %v3862 = vrsqrt.pop %v3711
      %v3863 = vmul.f32 %v3862, %v3711
      %v3864 = vmul.f32 %v3863, %v3862
      %v3865 = vmul.f32 0.5, %v3864
      %v3866 = vsub.f32 1.5, %v3865
      %v3867 = vmul.f32 %v3862, %v3866
      %vm3868 = vweird.f32 %v3711
      %vm3869 = vweird.f32 %v3862
      %vm3870 = vmor %vm3868, %vm3869
      %v3871 = vsel %vm3870, %v3862, %v3867
      %v3872 = vmul.f32 %v3600, %v3721
      %v3873 = vmul.f32 %v3601, %v3731
      %v3874 = vmul.f32 %v3602, %v3741
      %v3875 = vmul.f32 %v3603, %v3751
      %v3876 = vmul.f32 %v3604, %v3761
      %v3877 = vmul.f32 %v3605, %v3771
      %v3878 = vmul.f32 %v3606, %v3781
      %v3879 = vmul.f32 %v3607, %v3791
      %v3880 = vmul.f32 %v3608, %v3801
      %v3881 = vmul.f32 %v3609, %v3811
      %v3882 = vmul.f32 %v3610, %v3821
      %v3883 = vmul.f32 %v3611, %v3831
      %v3884 = vmul.f32 %v3612, %v3841
      %v3885 = vmul.f32 %v3613, %v3851
      %v3886 = vmul.f32 %v3614, %v3861
      %v3887 = vmul.f32 %v3615, %v3871
      %v3889 = vperm.slane %v3534, 0
      %v3891 = vmul.f32 %v3872, %v3889
      %v3892 = vmul.f32 %v3873, %v3889
      %v3893 = vmul.f32 %v3874, %v3889
      %v3894 = vmul.f32 %v3875, %v3889
      %v3895 = vmul.f32 %v3876, %v3889
      %v3896 = vmul.f32 %v3877, %v3889
      %v3897 = vmul.f32 %v3878, %v3889
      %v3898 = vmul.f32 %v3879, %v3889
      %v3899 = vmul.f32 %v3880, %v3889
      %v3900 = vmul.f32 %v3881, %v3889
      %v3901 = vmul.f32 %v3882, %v3889
      %v3902 = vmul.f32 %v3883, %v3889
      %v3903 = vmul.f32 %v3884, %v3889
      %v3904 = vmul.f32 %v3885, %v3889
      %v3905 = vmul.f32 %v3886, %v3889
      %v3906 = vmul.f32 %v3887, %v3889
      %v3908 = vperm.slane %v3535, 0
      %v3910 = vadd.f32 %v3891, %v3908
      %v3911 = vadd.f32 %v3892, %v3908
      %v3912 = vadd.f32 %v3893, %v3908
      %v3913 = vadd.f32 %v3894, %v3908
      %v3914 = vadd.f32 %v3895, %v3908
      %v3915 = vadd.f32 %v3896, %v3908
      %v3916 = vadd.f32 %v3897, %v3908
      %v3917 = vadd.f32 %v3898, %v3908
      %v3918 = vadd.f32 %v3899, %v3908
      %v3919 = vadd.f32 %v3900, %v3908
      %v3920 = vadd.f32 %v3901, %v3908
      %v3921 = vadd.f32 %v3902, %v3908
      %v3922 = vadd.f32 %v3903, %v3908
      %v3923 = vadd.f32 %v3904, %v3908
      %v3924 = vadd.f32 %v3905, %v3908
      %v3925 = vadd.f32 %v3906, %v3908
      %3926 = vst.msk [vmem:[#allocation2] sm:$0xff] %vm928, %v3910
      %3927 = vst.msk [vmem:[#allocation2 + $0x8] sm:$0xff] %vm928, %v3911
      %3928 = vst.msk [vmem:[#allocation2 + $0x10] sm:$0xff] %vm928, %v3912
      %3929 = vst.msk [vmem:[#allocation2 + $0x18] sm:$0xff] %vm928, %v3913
      %3930 = vst.msk [vmem:[#allocation2 + $0x20] sm:$0xff] %vm928, %v3914
      %3931 = vst.msk [vmem:[#allocation2 + $0x28] sm:$0xff] %vm928, %v3915
      %3932 = vst.msk [vmem:[#allocation2 + $0x30] sm:$0xff] %vm928, %v3916
      %3933 = vst.msk [vmem:[#allocation2 + $0x38] sm:$0xff] %vm928, %v3917
      %3934 = vst.msk [vmem:[#allocation2 + $0x40] sm:$0xff] %vm928, %v3918
      %3935 = vst.msk [vmem:[#allocation2 + $0x48] sm:$0xff] %vm928, %v3919
      %3936 = vst.msk [vmem:[#allocation2 + $0x50] sm:$0xff] %vm928, %v3920
      %3937 = vst.msk [vmem:[#allocation2 + $0x58] sm:$0xff] %vm928, %v3921
      %3938 = vst.msk [vmem:[#allocation2 + $0x60] sm:$0xff] %vm928, %v3922
      %3939 = vst.msk [vmem:[#allocation2 + $0x68] sm:$0xff] %vm928, %v3923
      %3940 = vst.msk [vmem:[#allocation2 + $0x70] sm:$0xff] %vm928, %v3924
      %3941 = vst.msk [vmem:[#allocation2 + $0x78] sm:$0xff] %vm928, %v3925
      %p3942 = scmp.eq.s32.totalorder %s31, 1
      // Predicated region
      $region85: #{sparse_transformer_forward.1} parent=79 // pred_check
        %p3943 = pneg %p3942
      $region86: #{sparse_transformer_forward.1} parent=79 // pred_check_branch
        %3945 = sbr.rel (%p3943) target = $region88
      $region87: #{sparse_transformer_forward.1} parent=79 // pred_region
        %v3946 = vld [vmem:[#allocation3] sm:$0xff]
        %v3947 = vld [vmem:[#allocation3 + $0x8] sm:$0xff]
        %v3948 = vld [vmem:[#allocation3 + $0x10] sm:$0xff]
        %v3949 = vld [vmem:[#allocation3 + $0x18] sm:$0xff]
        %v3950 = vld [vmem:[#allocation3 + $0x20] sm:$0xff]
        %v3951 = vld [vmem:[#allocation3 + $0x28] sm:$0xff]
        %v3952 = vld [vmem:[#allocation3 + $0x30] sm:$0xff]
        %v3953 = vld [vmem:[#allocation3 + $0x38] sm:$0xff]
        %v3954 = vld [vmem:[#allocation3 + $0x40] sm:$0xff]
        %v3955 = vld [vmem:[#allocation3 + $0x48] sm:$0xff]
        %v3956 = vld [vmem:[#allocation3 + $0x50] sm:$0xff]
        %v3957 = vld [vmem:[#allocation3 + $0x58] sm:$0xff]
        %v3958 = vld [vmem:[#allocation3 + $0x60] sm:$0xff]
        %v3959 = vld [vmem:[#allocation3 + $0x68] sm:$0xff]
        %v3960 = vld [vmem:[#allocation3 + $0x70] sm:$0xff]
        %v3961 = vld [vmem:[#allocation3 + $0x78] sm:$0xff]
        %v3962 = vadd.f32 %v3910, %v3946
        %v3963 = vadd.f32 %v3911, %v3947
        %v3964 = vadd.f32 %v3912, %v3948
        %v3965 = vadd.f32 %v3913, %v3949
        %v3966 = vadd.f32 %v3914, %v3950
        %v3967 = vadd.f32 %v3915, %v3951
        %v3968 = vadd.f32 %v3916, %v3952
        %v3969 = vadd.f32 %v3917, %v3953
        %v3970 = vadd.f32 %v3918, %v3954
        %v3971 = vadd.f32 %v3919, %v3955
        %v3972 = vadd.f32 %v3920, %v3956
        %v3973 = vadd.f32 %v3921, %v3957
        %v3974 = vadd.f32 %v3922, %v3958
        %v3975 = vadd.f32 %v3923, %v3959
        %v3976 = vadd.f32 %v3924, %v3960
        %v3977 = vadd.f32 %v3925, %v3961
        %v3978 = vld [vmem:[%s3] sm:$0xf]
        %v3979 = vld [vmem:[%s3 + $0x4] sm:$0xf]
        %v3980 = vld [vmem:[%s3 + $0x8] sm:$0xf]
        %v3981 = vld [vmem:[%s3 + $0xc] sm:$0xf]
        %v3982 = vpack.c.bf16 %v3963, %v3962
        %v3983 = vpack.c.bf16 %v3965, %v3964
        %v3984 = vpack.c.bf16 %v3967, %v3966
        %v3985 = vpack.c.bf16 %v3969, %v3968
        %v3986 = vpack.c.bf16 %v3971, %v3970
        %v3987 = vpack.c.bf16 %v3973, %v3972
        %v3988 = vpack.c.bf16 %v3975, %v3974
        %v3989 = vpack.c.bf16 %v3977, %v3976
        %v3994 = vunpack.c.l.b16 %v3978
        %v3995 = vunpack.c.l.b16 %v3979
        %v3996 = vunpack.c.l.b16 %v3980
        %v3997 = vunpack.c.l.b16 %v3981
        %v3998 = vpack.c.b16 %v3995, %v3994
        %v3999 = vpack.c.b16 %v3997, %v3996
        %4002 = vxpose.xlu0.c.b16.start [1/8] %v3998, 128
        %4003 = vxpose.xlu0.c.b16.cont [2/8] %v3999, 128
        %4004 = vxpose.xlu0.c.b16.cont [3/8] 0, 128
        %4005 = vxpose.xlu0.c.b16.cont [4/8] 0, 128
        %4006 = vxpose.xlu0.c.b16.cont [5/8] 0, 128
        %4007 = vxpose.xlu0.c.b16.cont [6/8] 0, 128
        %4008 = vxpose.xlu0.c.b16.cont [7/8] 0, 128
        %4009 = vxpose.xlu0.c.b16.end [8/8] 0, 128
        %v4010 = vpop.trf.xlu0
        %v4011 = vpop.trf.xlu0
        %v4012 = vpop.trf.xlu0
        %v4013 = vpop.trf.xlu0
        %v4014 = vpop.trf.xlu0
        %v4015 = vpop.trf.xlu0
        %v4016 = vpop.trf.xlu0
        %v4017 = vpop.trf.xlu0
        %v4019 = vsel %vm928, %v4010, 0
        %v4022 = vsel %vm928, %v4011, 0
        %v4025 = vsel %vm928, %v3982, 0
        %v4028 = vsel %vm928, %v3983, 0
        %v4031 = vsel %vm928, %v3984, 0
        %v4034 = vsel %vm928, %v3985, 0
        %v4037 = vsel %vm928, %v3986, 0
        %v4040 = vsel %vm928, %v3987, 0
        %v4043 = vsel %vm928, %v3988, 0
        %v4046 = vsel %vm928, %v3989, 0
        %4048 = vmatpush.bf16.xpose.msra.mxu0 %v4046
        %4049 = vmatpush.bf16.xpose.msra.mxu0 %v4043
        %4050 = vmatpush.bf16.xpose.msra.mxu0 %v4040
        %4051 = vmatpush.bf16.xpose.msra.mxu0 %v4037
        %4052 = vmatpush.bf16.xpose.msra.mxu0 %v4034
        %4053 = vmatpush.bf16.xpose.msra.mxu0 %v4031
        %4054 = vmatpush.bf16.xpose.msra.mxu0 %v4028
        %4055 = vmatpush.bf16.xpose.msra.mxu0 %v4025
        %4056 = vmatmul.bf16.gmra.mxu0 %v4019
        %v4057 = vpop.f32.mrf.mxu0
        %v4058 = vadd.f32 0.0, %v4057
        %v4059 = vpop.f32.mrf.mxu0
        %v4060 = vadd.f32 0.0, %v4059
        %4061 = vmatmul.bf16.gmra.mxu0 %v4022
        %v4062 = vpop.f32.mrf.mxu0
        %v4063 = vadd.f32 0.0, %v4062
        %v4064 = vpop.f32.mrf.mxu0
        %v4065 = vadd.f32 0.0, %v4064
        %4066 = vdwg.mxu0
        %4067 = vst [vmem:[%s692] sm:$0xff] %v4058
        %4068 = vst [vmem:[%s692 + $0x8] sm:$0xff] %v4060
        %4069 = vst [vmem:[%s692 + $0x10] sm:$0xff] %v4063
        %4070 = vst [vmem:[%s692 + $0x18] sm:$0xff] %v4065
      $region88: #{sparse_transformer_forward.1} parent=79 // pred_fallthru
        _
      %p4071 = scmp.lt.s32.totalorder %s30, 1
      %s4072 = scalar_select %p4071, %s30, 1
      %s4073 = smul.addr %s4072, 4
      %s4074 = smul.addr %s4073, 8
      %s4075 = scalar_lea.vmem %s15, %s4074
      // Predicated region
      $region89: #{sparse_transformer_forward.1} parent=79 // pred_check
        %p4076 = pneg %p436
      $region90: #{sparse_transformer_forward.1} parent=79 // pred_check_branch
        %4078 = sbr.rel (%p4076) target = $region92
      $region91: #{sparse_transformer_forward.1} parent=79 // pred_region
        _
      $region92: #{sparse_transformer_forward.1} parent=79 // pred_fallthru
        _
    $region80: #{sparse_transformer_forward.1} parent=5 // pred_fallthru
      _
    %p4079 = scmp.le.s32.totalorder 2, %s21
    // Predicated region
    $region93: #{sparse_transformer_forward.1} parent=5 // pred_check
      %p4080 = pneg %p4079
    $region94: #{sparse_transformer_forward.1} parent=5 // pred_check_branch
      %4082 = sbr.rel (%p4080) target = $region96
    $region95: #{sparse_transformer_forward.1} parent=5 // pred_region
      %s4083 = ssub.s32 %s21, 2
      // Predicated region
      $region97: #{sparse_transformer_forward.1} parent=95 // pred_check
        %p4084 = pneg %p442
      $region98: #{sparse_transformer_forward.1} parent=95 // pred_check_branch
        %4086 = sbr.rel (%p4084) target = $region100
      $region99: #{sparse_transformer_forward.1} parent=95 // pred_region
        %p4087 = scmp.lt.s32.totalorder %s32, 1
        %s4088 = scalar_select %p4087, %s32, 1
        %s4089 = smul.addr %s4088, 4
        %s4090 = smul.addr %s4089, 8
        %s4091 = scalar_lea.vmem %s15, %s4090
      $region100: #{sparse_transformer_forward.1} parent=95 // pred_fallthru
        _
    $region96: #{sparse_transformer_forward.1} parent=5 // pred_fallthru
      _
  $region6: #{sparse_transformer_forward.1} parent=0 // loop_footer
    %s25 = sadd.s32 1, %s21
  $region7: #{sparse_transformer_forward.1} parent=0 // loop_footer_branch
    %20 = sbr.rel target = $region3
  $region8: #{sparse_transformer_forward.1} parent=0 // loop_exit
    _

</llo_original>
